<compile_context>
chip_gen: v7x
topology: tpu7x:2x2x1
jax: 0.10.0
libtpu: 0.0.40
codegen_flags: <defaults>
</compile_context>

<pallas_src>
import functools

import numpy as np
import jax
import jax.numpy as jnp
from jax import lax
from jax.experimental import pallas as pl
from jax.experimental.pallas import tpu as pltpu

MIN_VALUE = float(np.finfo(np.float32).min)
LN_EPS = 1e-5                      # PyTorch nn.LayerNorm default
MATMUL_DTYPE = jnp.bfloat16        # MXU operand dtype (f32 accumulate)
VMEM_LIMIT_BYTES = 64 * 1024 * 1024


# ----------------------------------------------------------------------------
# Shared math helpers (used by kernel AND reference so cast points match)
# ----------------------------------------------------------------------------
def _layernorm(x, g, b):
    x = x.astype(jnp.float32)
    mu = jnp.mean(x, axis=-1, keepdims=True)
    var = jnp.mean((x - mu) ** 2, axis=-1, keepdims=True)
    return (x - mu) * lax.rsqrt(var + LN_EPS) * g + b


def _mm(a, b):
    """MXU matmul: bf16 operands, f32 accumulation."""
    return jnp.dot(a.astype(MATMUL_DTYPE), b.astype(MATMUL_DTYPE),
                   preferred_element_type=jnp.float32)


def _bmm(a, b, eq):
    """Batched MXU matmul: bf16 operands, f32 accumulation."""
    return jnp.einsum(eq, a.astype(MATMUL_DTYPE), b.astype(MATMUL_DTYPE),
                      preferred_element_type=jnp.float32)


# ----------------------------------------------------------------------------
# Kernel 1: fused decoder layer stack
#   grid = (batch_tiles ['parallel'], n_layers ['arbitrary'])
#   activations for the current batch tile stay resident in a VMEM scratch.
# ----------------------------------------------------------------------------
def fused_decoder_kernel(x_ref,
                         ln1g_ref, ln1b_ref,
                         wq_ref, bq_ref, wk_ref, bk_ref, wv_ref, bv_ref,
                         wo_ref, bo_ref,
                         ln3g_ref, ln3b_ref,
                         w1_ref, b1_ref, w2_ref, b2_ref,
                         dec_out_ref,
                         x_scr,
                         *, n_head, d_k, d_v, T):
    l = pl.program_id(1)

    # Load this batch tile's embedded tokens into the resident scratch once.
    @pl.when(l == 0)
    def _():
        x_scr[...] = x_ref[...]

    x = x_scr[...]                           # (R, D) f32, R = Bt * T
    R, D = x.shape
    Bt = R // T

    # ---------------- self-attention sublayer (pre-norm) ----------------
    nx = _layernorm(x, ln1g_ref[0], ln1b_ref[0])
    q = _mm(nx, wq_ref[0]) + bq_ref[0]       # (R, H*d_k) f32
    k = _mm(nx, wk_ref[0]) + bk_ref[0]
    v = _mm(nx, wv_ref[0]) + bv_ref[0]

    # Combined-head batched attention: one score matmul + one context matmul
    # over a (Bt*H) batch, then a single full-contraction W_o matmul.
    def to_heads(t, dh):
        return (t.reshape(Bt, T, n_head, dh)
                 .transpose(0, 2, 1, 3)
                 .reshape(Bt * n_head, T, dh))

    qb = to_heads(q, d_k)                    # (Bt*H, T, d_k)
    kb = to_heads(k, d_k)
    vb = to_heads(v, d_v)

    inv_temp = 1.0 / (d_k ** 0.5)
    s = _bmm(qb, kb, "bqd,bkd->bqk") * inv_temp          # (Bt*H, T, T) f32
    row = lax.broadcasted_iota(jnp.int32, (T, T), 0)
    col = lax.broadcasted_iota(jnp.int32, (T, T), 1)
    causal = (row >= col)[None, :, :]                    # subsequent mask
    s = jnp.where(causal, s, MIN_VALUE)
    s = s - jnp.max(s, axis=-1, keepdims=True)
    p = jnp.exp(s)
    p = p / jnp.sum(p, axis=-1, keepdims=True)           # EXACT softmax

    ctx = _bmm(p, vb, "bqk,bkd->bqd")                    # (Bt*H, T, d_v) f32
    ctx = (ctx.reshape(Bt, n_head, T, d_v)
              .transpose(0, 2, 1, 3)
              .reshape(R, n_head * d_v))                 # (R, H*d_v)

    x = x + _mm(ctx, wo_ref[0]) + bo_ref[0]              # residual (dropout=id)

    # ---------------- position-wise FFN sublayer (pre-norm) ----------------
    nx = _layernorm(x, ln3g_ref[0], ln3b_ref[0])
    h1 = jnp.maximum(_mm(nx, w1_ref[0]) + b1_ref[0], 0.0)
    x = x + _mm(h1, w2_ref[0]) + b2_ref[0]               # residual (dropout=id)

    x_scr[...] = x
    dec_out_ref[0] = x                                   # per-layer output


# ----------------------------------------------------------------------------
# Kernel 2: final LayerNorm + tied vocab projection, tiled over (rows, vocab)
# ----------------------------------------------------------------------------
def output_proj_kernel(x_ref, g_ref, b_ref, w_ref, pb_ref, out_ref):
    nx = _layernorm(x_ref[...], g_ref[...], b_ref[...])
    out_ref[...] = _mm(nx, w_ref[...]) + pb_ref[...]


# ----------------------------------------------------------------------------
# Tile-size helpers
# ----------------------------------------------------------------------------
def _pick_batch_tile(B, T):
    """Whole sequences per tile; target a few hundred rows; tile divides B."""
    target_rows = 512
    bt = max(1, min(B, target_rows // max(T, 1)))
    while B % bt:
        bt -= 1
    if (bt * T) % 8 and bt != B:   # keep the (8, 128) block constraint happy
        bt = B
    return bt


def _pick_divisor_tile(n, candidates=(512, 256, 128)):
    for c in candidates:
        if c <= n and n % c == 0:
            return c
    return n


# ----------------------------------------------------------------------------
# pallas_call wrappers
# ----------------------------------------------------------------------------
def decoder_stack(x2d, params, *, n_layers, n_head, d_k, d_v, B, T):
    BT, D = x2d.shape
    b_tile = _pick_batch_tile(B, T)
    rows = b_tile * T
    n_b_tiles = BT // rows

    stacked_names = ["ln1_g", "ln1_b", "wq", "bq", "wk", "bk", "wv", "bv",
                     "wo", "bo", "ln3_g", "ln3_b", "w1", "b1", "w2", "b2"]
    stacked = [params[n] for n in stacked_names]           # leading L axis

    def per_layer_spec(a):
        nd = a.ndim
        return pl.BlockSpec((1,) + a.shape[1:],
                            lambda b, l, _nd=nd: (l,) + (0,) * (_nd - 1))

    x_spec = pl.BlockSpec((rows, D), lambda b, l: (b, 0))

    kernel = functools.partial(fused_decoder_kernel,
                               n_head=n_head, d_k=d_k, d_v=d_v, T=T)

    dec_outs = pl.pallas_call(
        kernel,
        out_shape=jax.ShapeDtypeStruct((n_layers, BT, D), jnp.float32),
        grid=(n_b_tiles, n_layers),
        in_specs=[x_spec] + [per_layer_spec(a) for a in stacked],
        out_specs=pl.BlockSpec((1, rows, D), lambda b, l: (l, b, 0)),
        scratch_shapes=[pltpu.VMEM((rows, D), jnp.float32)],
        compiler_params=pltpu.CompilerParams(
            dimension_semantics=("parallel", "arbitrary"),
            vmem_limit_bytes=VMEM_LIMIT_BYTES),
    )(x2d, *stacked)
    return dec_outs


def output_projection(x2d, params):
    BT, D = x2d.shape
    V = params["prj_w"].shape[1]
    tr = _pick_divisor_tile(BT)
    tv = _pick_divisor_tile(V)

    logits = pl.pallas_call(
        output_proj_kernel,
        out_shape=jax.ShapeDtypeStruct((BT, V), jnp.float32),
        grid=(BT // tr, V // tv),
        in_specs=[pl.BlockSpec((tr, D), lambda i, j: (i, 0)),
                  pl.BlockSpec((1, D), lambda i, j: (0, 0)),
                  pl.BlockSpec((1, D), lambda i, j: (0, 0)),
                  pl.BlockSpec((D, tv), lambda i, j: (0, j)),
                  pl.BlockSpec((1, tv), lambda i, j: (0, j))],
        out_specs=pl.BlockSpec((tr, tv), lambda i, j: (i, j)),
        compiler_params=pltpu.CompilerParams(
            dimension_semantics=("parallel", "parallel"),
            vmem_limit_bytes=VMEM_LIMIT_BYTES),
    )(x2d, params["out_ln_g"], params["out_ln_b"],
      params["prj_w"], params["prj_b"])
    return logits


def decoder_forward(ys_in_pad, params, *, n_head, d_k, d_v):
    """Mirrors Decoder.forward after preprocess (eval semantics)."""
    emb = params["emb"]
    B, T = ys_in_pad.shape
    D = emb.shape[1]
    n_layers = params["wq"].shape[0]
    # embedding gather (glue) -- reference forward() applies no scaling / PE.
    x = jnp.take(emb, ys_in_pad, axis=0).astype(jnp.float32)   # (B, T, D)
    x2d = x.reshape(B * T, D)
    dec_outs = decoder_stack(x2d, params, n_layers=n_layers, n_head=n_head,
                             d_k=d_k, d_v=d_v, B=B, T=T)
    logits2d = output_projection(dec_outs[n_layers - 1], params)
    dec_output_list = [dec_outs[i].reshape(B, T, D) for i in range(n_layers)]
    logits = logits2d.reshape(B, T, -1)
    return logits, dec_output_list


# ----------------------------------------------------------------------------
# Pure-JAX reference (same math, same bf16 cast points, for correctness check)
# ----------------------------------------------------------------------------
def ref_forward(ys_in_pad, params, *, n_head, d_k, d_v):
    x = jnp.take(params["emb"], ys_in_pad, axis=0).astype(jnp.float32)
    B, T, D = x.shape
    causal = jnp.tril(jnp.ones((T, T), dtype=bool))
    L = params["wq"].shape[0]
    inv_temp = 1.0 / (d_k ** 0.5)
    outs = []
    for i in range(L):
        nx = _layernorm(x, params["ln1_g"][i], params["ln1_b"][i])
        q = _mm(nx, params["wq"][i]) + params["bq"][i]
        k = _mm(nx, params["wk"][i]) + params["bk"][i]
        v = _mm(nx, params["wv"][i]) + params["bv"][i]
        q = q.reshape(B, T, n_head, d_k).transpose(0, 2, 1, 3)
        k = k.reshape(B, T, n_head, d_k).transpose(0, 2, 1, 3)
        v = v.reshape(B, T, n_head, d_v).transpose(0, 2, 1, 3)
        attn = jnp.einsum("bhqd,bhkd->bhqk",
                          q.astype(MATMUL_DTYPE), k.astype(MATMUL_DTYPE),
                          preferred_element_type=jnp.float32) * inv_temp
        attn = jnp.where(causal[None, None], attn, MIN_VALUE)
        attn = attn - jnp.max(attn, axis=-1, keepdims=True)
        p = jnp.exp(attn)
        p = p / jnp.sum(p, axis=-1, keepdims=True)
        o = jnp.einsum("bhqk,bhkd->bhqd",
                       p.astype(MATMUL_DTYPE), v.astype(MATMUL_DTYPE),
                       preferred_element_type=jnp.float32)
        o = o.transpose(0, 2, 1, 3).reshape(B, T, n_head * d_v)
        x = x + (_mm(o, params["wo"][i]) + params["bo"][i])
        nx = _layernorm(x, params["ln3_g"][i], params["ln3_b"][i])
        h1 = jnp.maximum(_mm(nx, params["w1"][i]) + params["b1"][i], 0.0)
        x = x + (_mm(h1, params["w2"][i]) + params["b2"][i])
        outs.append(x)
    nx = _layernorm(x, params["out_ln_g"], params["out_ln_b"])
    return _mm(nx, params["prj_w"]) + params["prj_b"], outs


# ----------------------------------------------------------------------------
# Host-side preprocess (token-id manipulation, mirrors Decoder.preprocess)
# ----------------------------------------------------------------------------
def preprocess(padded_input, ignore_id, sos_id, eos_id):
    ys = [y[y != ignore_id] for y in padded_input]
    max_len = max(len(y) for y in ys) + 1
    ys_in = np.full((len(ys), max_len), eos_id, dtype=np.int32)
    ys_out = np.full((len(ys), max_len), ignore_id, dtype=np.int32)
    for i, y in enumerate(ys):
        ys_in[i, 0] = sos_id
        ys_in[i, 1:1 + len(y)] = y
        ys_out[i, :len(y)] = y
        ys_out[i, len(y)] = eos_id
    return ys_in, ys_out


# ----------------------------------------------------------------------------
# Deterministic parameter construction (weights stacked along leading L axis;
# matmul weights stored in bf16, LayerNorm params / biases in f32)
# ----------------------------------------------------------------------------
def make_params(key, *, n_vocab, d_model, n_layers, n_head, d_k, d_v, d_inner):
    ks = iter(jax.random.split(key, 32))

    def rand(shape, scale=0.1, dtype=jnp.float32):
        return (scale * jax.random.normal(next(ks), shape)).astype(dtype)

    L = n_layers
    HK, HV = n_head * d_k, n_head * d_v
    wdt = MATMUL_DTYPE
    emb = rand((n_vocab, d_model))                 # f32 embedding table
    params = {
        "emb": emb,
        # tied projection weight (emb.T) materialised ONCE (eval semantics;
        # would need re-derivation if emb were ever updated).
        "prj_w": jnp.asarray(emb.T, dtype=wdt),
        "prj_b": rand((1, n_vocab), 0.02),
        "out_ln_g": jnp.ones((1, d_model), jnp.float32),
        "out_ln_b": jnp.zeros((1, d_model), jnp.float32),
        "ln1_g": jnp.ones((L, 1, d_model), jnp.float32),
        "ln1_b": jnp.zeros((L, 1, d_model), jnp.float32),
        "wq": rand((L, d_model, HK), dtype=wdt), "bq": rand((L, 1, HK), 0.02),
        "wk": rand((L, d_model, HK), dtype=wdt), "bk": rand((L, 1, HK), 0.02),
        "wv": rand((L, d_model, HV), dtype=wdt), "bv": rand((L, 1, HV), 0.02),
        "wo": rand((L, HV, d_model), dtype=wdt), "bo": rand((L, 1, d_model), 0.02),
        "ln3_g": jnp.ones((L, 1, d_model), jnp.float32),
        "ln3_b": jnp.zeros((L, 1, d_model), jnp.float32),
        "w1": rand((L, d_model, d_inner), dtype=wdt), "b1": rand((L, 1, d_inner), 0.02),
        "w2": rand((L, d_inner, d_model), dtype=wdt), "b2": rand((L, 1, d_model), 0.02),
    }
    return params


# ----------------------------------------------------------------------------
if __name__ == "__main__":
    # Small config consistent with the module's __init__ signature.
    n_vocab, d_model, d_inner = 64, 32, 64
    n_layers, n_head, d_k, d_v = 2, 2, 16, 16
    sos_id, eos_id, ignore_id = 1, 2, -1
    B, To = 2, 7   # T = To + 1 = 8 after preprocess

    key = jax.random.PRNGKey(0)
    pkey, tkey = jax.random.split(key)
    params = make_params(pkey, n_vocab=n_vocab, d_model=d_model,
                         n_layers=n_layers, n_head=n_head, d_k=d_k, d_v=d_v,
                         d_inner=d_inner)

    # padded_input: N x To integer targets (no IGNORE_ID padding here)
    padded_input = np.asarray(
        jax.random.randint(tkey, (B, To), 3, n_vocab), dtype=np.int32)

    ys_in_pad, ys_out_pad = preprocess(padded_input, ignore_id, sos_id, eos_id)
    ys_in = jnp.asarray(ys_in_pad)      # (B, T)

    pred, dec_output_list = decoder_forward(
        ys_in, params, n_head=n_head, d_k=d_k, d_v=d_v)
    pred = jax.block_until_ready(pred)
    _ = [jax.block_until_ready(o) for o in dec_output_list]
    gold = jnp.asarray(ys_out_pad)

    # Correctness check against a pure-JAX reference of the same (mixed-
    # precision) math.  Tolerance absorbs bf16-operand rounding differences
    # between the two op decompositions; the softmax itself is exact.
    ref_pred, ref_outs = ref_forward(ys_in, params, n_head=n_head,
                                     d_k=d_k, d_v=d_v)
    np.testing.assert_allclose(np.asarray(pred), np.asarray(ref_pred),
                               atol=1e-2, rtol=1e-2)
    for a, b in zip(dec_output_list, ref_outs):
        np.testing.assert_allclose(np.asarray(a), np.asarray(b),
                                   atol=1e-2, rtol=1e-2)

    print("KERNEL_OK")
</pallas_src>

<mosaic_0001>
module attributes {stable_mosaic.version = 11 : i64} {
  func.func @fused_decoder_kernel(%arg0: i32, %arg1: i32, %arg2: memref<16x32xf32, #tpu.memory_space<vmem>>, %arg3: memref<1x1x32xf32, #tpu.memory_space<vmem>>, %arg4: memref<1x1x32xf32, #tpu.memory_space<vmem>>, %arg5: memref<1x32x32xbf16, #tpu.memory_space<vmem>>, %arg6: memref<1x1x32xf32, #tpu.memory_space<vmem>>, %arg7: memref<1x32x32xbf16, #tpu.memory_space<vmem>>, %arg8: memref<1x1x32xf32, #tpu.memory_space<vmem>>, %arg9: memref<1x32x32xbf16, #tpu.memory_space<vmem>>, %arg10: memref<1x1x32xf32, #tpu.memory_space<vmem>>, %arg11: memref<1x32x32xbf16, #tpu.memory_space<vmem>>, %arg12: memref<1x1x32xf32, #tpu.memory_space<vmem>>, %arg13: memref<1x1x32xf32, #tpu.memory_space<vmem>>, %arg14: memref<1x1x32xf32, #tpu.memory_space<vmem>>, %arg15: memref<1x32x64xbf16, #tpu.memory_space<vmem>>, %arg16: memref<1x1x64xf32, #tpu.memory_space<vmem>>, %arg17: memref<1x64x32xbf16, #tpu.memory_space<vmem>>, %arg18: memref<1x1x32xf32, #tpu.memory_space<vmem>>, %arg19: memref<1x16x32xf32, #tpu.memory_space<vmem>>, %arg20: memref<16x32xf32, #tpu.memory_space<vmem>>) attributes {dimension_semantics = [#tpu.dimension_semantics<parallel>, #tpu.dimension_semantics<arbitrary>], iteration_bounds = array<i64: 1, 2>, scalar_prefetch = 0 : i64, scratch_operands = 1 : i64, tpu.core_type = #tpu.core_type<tc>, window_params = [{transform_indices = @transform_0, window_bounds = array<i64: 16, 32>}, {transform_indices = @transform_1, window_bounds = array<i64: 1, 1, 32>}, {transform_indices = @transform_2, window_bounds = array<i64: 1, 1, 32>}, {transform_indices = @transform_3, window_bounds = array<i64: 1, 32, 32>}, {transform_indices = @transform_4, window_bounds = array<i64: 1, 1, 32>}, {transform_indices = @transform_5, window_bounds = array<i64: 1, 32, 32>}, {transform_indices = @transform_6, window_bounds = array<i64: 1, 1, 32>}, {transform_indices = @transform_7, window_bounds = array<i64: 1, 32, 32>}, {transform_indices = @transform_8, window_bounds = array<i64: 1, 1, 32>}, {transform_indices = @transform_9, window_bounds = array<i64: 1, 32, 32>}, {transform_indices = @transform_10, window_bounds = array<i64: 1, 1, 32>}, {transform_indices = @transform_11, window_bounds = array<i64: 1, 1, 32>}, {transform_indices = @transform_12, window_bounds = array<i64: 1, 1, 32>}, {transform_indices = @transform_13, window_bounds = array<i64: 1, 32, 64>}, {transform_indices = @transform_14, window_bounds = array<i64: 1, 1, 64>}, {transform_indices = @transform_15, window_bounds = array<i64: 1, 64, 32>}, {transform_indices = @transform_16, window_bounds = array<i64: 1, 1, 32>}, {transform_indices = @transform_17, window_bounds = array<i64: 1, 16, 32>}]} {
    %c0_i32 = arith.constant 0 : i32
    %0 = arith.cmpi eq, %arg1, %c0_i32 : i32
    %1 = arith.extui %0 : i1 to i32
    %c0_i32_0 = arith.constant 0 : i32
    %2 = arith.cmpi ne, %1, %c0_i32_0 : i32
    scf.if %2 {
      %c0_77 = arith.constant 0 : index
      %c0_78 = arith.constant 0 : index
      %149 = vector.load %arg2[%c0_77, %c0_78] : memref<16x32xf32, #tpu.memory_space<vmem>>, vector<16x32xf32>
      %c0_79 = arith.constant 0 : index
      %c0_80 = arith.constant 0 : index
      %150 = vector.load %arg20[%c0_79, %c0_80] : memref<16x32xf32, #tpu.memory_space<vmem>>, vector<16x32xf32>
      tpu.vector_store %arg20[%c0_79, %c0_80], %149 {strides = array<i32>} : memref<16x32xf32, #tpu.memory_space<vmem>>, vector<16x32xf32>,
    } else {
    }
    %c0 = arith.constant 0 : index
    %c0_1 = arith.constant 0 : index
    %3 = vector.load %arg20[%c0, %c0_1] : memref<16x32xf32, #tpu.memory_space<vmem>>, vector<16x32xf32>
    %c0_2 = arith.constant 0 : index
    %c0_3 = arith.constant 0 : index
    %c0_4 = arith.constant 0 : index
    %4 = vector.load %arg3[%c0_2, %c0_3, %c0_4] : memref<1x1x32xf32, #tpu.memory_space<vmem>>, vector<1x1x32xf32>
    %5 = vector.shape_cast %4 : vector<1x1x32xf32> to vector<1x32xf32>
    %c0_5 = arith.constant 0 : index
    %c0_6 = arith.constant 0 : index
    %c0_7 = arith.constant 0 : index
    %6 = vector.load %arg4[%c0_5, %c0_6, %c0_7] : memref<1x1x32xf32, #tpu.memory_space<vmem>>, vector<1x1x32xf32>
    %7 = vector.shape_cast %6 : vector<1x1x32xf32> to vector<1x32xf32>
    %cst = arith.constant dense<0.000000e+00> : vector<16xf32>
    %8 = vector.multi_reduction <add>, %3, %cst [1] : vector<16x32xf32> to vector<16xf32>
    %9 = vector.shape_cast %8 : vector<16xf32> to vector<16x1xf32>
    %cst_8 = arith.constant 3.200000e+01 : f32
    %10 = vector.broadcast %cst_8 : f32 to vector<16x1xf32>
    %11 = arith.divf %9, %10 : vector<16x1xf32>
    %12 = vector.broadcast %11 : vector<16x1xf32> to vector<16x32xf32>
    %13 = arith.subf %3, %12 : vector<16x32xf32>
    %14 = arith.mulf %13, %13 : vector<16x32xf32>
    %cst_9 = arith.constant dense<0.000000e+00> : vector<16xf32>
    %15 = vector.multi_reduction <add>, %14, %cst_9 [1] : vector<16x32xf32> to vector<16xf32>
    %16 = vector.shape_cast %15 : vector<16xf32> to vector<16x1xf32>
    %cst_10 = arith.constant 3.200000e+01 : f32
    %17 = vector.broadcast %cst_10 : f32 to vector<16x1xf32>
    %18 = arith.divf %16, %17 : vector<16x1xf32>
    %19 = vector.broadcast %11 : vector<16x1xf32> to vector<16x32xf32>
    %20 = arith.subf %3, %19 : vector<16x32xf32>
    %cst_11 = arith.constant 9.99999974E-6 : f32
    %21 = vector.broadcast %cst_11 : f32 to vector<16x1xf32>
    %22 = arith.addf %18, %21 : vector<16x1xf32>
    %23 = math.rsqrt %22 : vector<16x1xf32>
    %24 = vector.broadcast %23 : vector<16x1xf32> to vector<16x32xf32>
    %25 = arith.mulf %20, %24 : vector<16x32xf32>
    %26 = vector.broadcast %5 : vector<1x32xf32> to vector<16x32xf32>
    %27 = arith.mulf %25, %26 : vector<16x32xf32>
    %28 = vector.broadcast %7 : vector<1x32xf32> to vector<16x32xf32>
    %29 = arith.addf %27, %28 : vector<16x32xf32>
    %c0_12 = arith.constant 0 : index
    %c0_13 = arith.constant 0 : index
    %c0_14 = arith.constant 0 : index
    %30 = vector.load %arg5[%c0_12, %c0_13, %c0_14] : memref<1x32x32xbf16, #tpu.memory_space<vmem>>, vector<1x32x32xbf16>
    %31 = vector.shape_cast %30 : vector<1x32x32xbf16> to vector<32x32xbf16>
    %32 = arith.truncf %29 : vector<16x32xf32> to vector<16x32xbf16>
    %cst_15 = arith.constant dense<0.000000e+00> : vector<16x32xf32>
    %33 = tpu.matmul %32, %31, %cst_15 {dimension_numbers = #tpu.dot_dimension_numbers<[1], [0], [0], [1], [0, 0, 1, 1], [], []>} : vector<16x32xbf16>, vector<32x32xbf16>, vector<16x32xf32> -> vector<16x32xf32>
    %c0_16 = arith.constant 0 : index
    %c0_17 = arith.constant 0 : index
    %c0_18 = arith.constant 0 : index
    %34 = vector.load %arg6[%c0_16, %c0_17, %c0_18] : memref<1x1x32xf32, #tpu.memory_space<vmem>>, vector<1x1x32xf32>
    %35 = vector.shape_cast %34 : vector<1x1x32xf32> to vector<1x32xf32>
    %36 = vector.broadcast %35 : vector<1x32xf32> to vector<16x32xf32>
    %37 = arith.addf %33, %36 : vector<16x32xf32>
    %c0_19 = arith.constant 0 : index
    %c0_20 = arith.constant 0 : index
    %c0_21 = arith.constant 0 : index
    %38 = vector.load %arg7[%c0_19, %c0_20, %c0_21] : memref<1x32x32xbf16, #tpu.memory_space<vmem>>, vector<1x32x32xbf16>
    %39 = vector.shape_cast %38 : vector<1x32x32xbf16> to vector<32x32xbf16>
    %40 = arith.truncf %29 : vector<16x32xf32> to vector<16x32xbf16>
    %cst_22 = arith.constant dense<0.000000e+00> : vector<16x32xf32>
    %41 = tpu.matmul %40, %39, %cst_22 {dimension_numbers = #tpu.dot_dimension_numbers<[1], [0], [0], [1], [0, 0, 1, 1], [], []>} : vector<16x32xbf16>, vector<32x32xbf16>, vector<16x32xf32> -> vector<16x32xf32>
    %c0_23 = arith.constant 0 : index
    %c0_24 = arith.constant 0 : index
    %c0_25 = arith.constant 0 : index
    %42 = vector.load %arg8[%c0_23, %c0_24, %c0_25] : memref<1x1x32xf32, #tpu.memory_space<vmem>>, vector<1x1x32xf32>
    %43 = vector.shape_cast %42 : vector<1x1x32xf32> to vector<1x32xf32>
    %44 = vector.broadcast %43 : vector<1x32xf32> to vector<16x32xf32>
    %45 = arith.addf %41, %44 : vector<16x32xf32>
    %c0_26 = arith.constant 0 : index
    %c0_27 = arith.constant 0 : index
    %c0_28 = arith.constant 0 : index
    %46 = vector.load %arg9[%c0_26, %c0_27, %c0_28] : memref<1x32x32xbf16, #tpu.memory_space<vmem>>, vector<1x32x32xbf16>
    %47 = vector.shape_cast %46 : vector<1x32x32xbf16> to vector<32x32xbf16>
    %48 = arith.truncf %29 : vector<16x32xf32> to vector<16x32xbf16>
    %cst_29 = arith.constant dense<0.000000e+00> : vector<16x32xf32>
    %49 = tpu.matmul %48, %47, %cst_29 {dimension_numbers = #tpu.dot_dimension_numbers<[1], [0], [0], [1], [0, 0, 1, 1], [], []>} : vector<16x32xbf16>, vector<32x32xbf16>, vector<16x32xf32> -> vector<16x32xf32>
    %c0_30 = arith.constant 0 : index
    %c0_31 = arith.constant 0 : index
    %c0_32 = arith.constant 0 : index
    %50 = vector.load %arg10[%c0_30, %c0_31, %c0_32] : memref<1x1x32xf32, #tpu.memory_space<vmem>>, vector<1x1x32xf32>
    %51 = vector.shape_cast %50 : vector<1x1x32xf32> to vector<1x32xf32>
    %52 = vector.broadcast %51 : vector<1x32xf32> to vector<16x32xf32>
    %53 = arith.addf %49, %52 : vector<16x32xf32>
    %54 = vector.shape_cast %37 : vector<16x32xf32> to vector<2x8x2x16xf32>
    %55 = tpu.transpose %54, [0, 2, 1, 3] : vector<2x8x2x16xf32> -> vector<2x2x8x16xf32>
    %56 = vector.shape_cast %55 : vector<2x2x8x16xf32> to vector<4x8x16xf32>
    %57 = vector.shape_cast %45 : vector<16x32xf32> to vector<2x8x2x16xf32>
    %58 = tpu.transpose %57, [0, 2, 1, 3] : vector<2x8x2x16xf32> -> vector<2x2x8x16xf32>
    %59 = vector.shape_cast %58 : vector<2x2x8x16xf32> to vector<4x8x16xf32>
    %60 = vector.shape_cast %53 : vector<16x32xf32> to vector<2x8x2x16xf32>
    %61 = tpu.transpose %60, [0, 2, 1, 3] : vector<2x8x2x16xf32> -> vector<2x2x8x16xf32>
    %62 = vector.shape_cast %61 : vector<2x2x8x16xf32> to vector<4x8x16xf32>
    %63 = arith.truncf %56 : vector<4x8x16xf32> to vector<4x8x16xbf16>
    %64 = arith.truncf %59 : vector<4x8x16xf32> to vector<4x8x16xbf16>
    "tpu.trace_start"() <{level = 10 : i32, message = "bqd,bkd->bqk"}> : () -> ()
    %cst_33 = arith.constant dense<0.000000e+00> : vector<4x8x8xf32>
    %65 = tpu.matmul %63, %64, %cst_33 {dimension_numbers = #tpu.dot_dimension_numbers<[2], [2], [1], [1], [0, 0, 0, 1, 1, 1], [0], [0]>} : vector<4x8x16xbf16>, vector<4x8x16xbf16>, vector<4x8x8xf32> -> vector<4x8x8xf32>
    "tpu.trace_stop"() : () -> ()
    %cst_34 = arith.constant 2.500000e-01 : f32
    %66 = vector.broadcast %cst_34 : f32 to vector<4x8x8xf32>
    %67 = arith.mulf %65, %66 : vector<4x8x8xf32>
    %68 = tpu.iota {dimensions = array<i32: 0>} : vector<8x8xi32>
    %69 = tpu.iota {dimensions = array<i32: 1>} : vector<8x8xi32>
    %70 = arith.cmpi sge, %68, %69 : vector<8x8xi32>
    %71 = vector.shape_cast %70 : vector<8x8xi1> to vector<1x8x8xi1>
    %cst_35 = arith.constant -3.40282347E+38 : f32
    %72 = vector.shape_cast %71 : vector<1x8x8xi1> to vector<1x8x8xi1>
    %73 = vector.broadcast %72 : vector<1x8x8xi1> to vector<4x8x8xi1>
    %74 = vector.broadcast %cst_35 : f32 to vector<4x8x8xf32>
    %75 = arith.select %73, %67, %74 : vector<4x8x8xi1>, vector<4x8x8xf32>
    %cst_36 = arith.constant dense<0xFF800000> : vector<4x8xf32>
    %76 = vector.multi_reduction <maximumf>, %75, %cst_36 [2] : vector<4x8x8xf32> to vector<4x8xf32>
    %77 = vector.shape_cast %76 : vector<4x8xf32> to vector<4x8x1xf32>
    %78 = vector.broadcast %77 : vector<4x8x1xf32> to vector<4x8x8xf32>
    %79 = arith.subf %75, %78 : vector<4x8x8xf32>
    %80 = math.exp %79 : vector<4x8x8xf32>
    %cst_37 = arith.constant dense<0.000000e+00> : vector<4x8xf32>
    %81 = vector.multi_reduction <add>, %80, %cst_37 [2] : vector<4x8x8xf32> to vector<4x8xf32>
    %82 = vector.shape_cast %81 : vector<4x8xf32> to vector<4x8x1xf32>
    %83 = vector.broadcast %82 : vector<4x8x1xf32> to vector<4x8x8xf32>
    %84 = arith.divf %80, %83 : vector<4x8x8xf32>
    %85 = arith.truncf %84 : vector<4x8x8xf32> to vector<4x8x8xbf16>
    %86 = arith.truncf %62 : vector<4x8x16xf32> to vector<4x8x16xbf16>
    "tpu.trace_start"() <{level = 10 : i32, message = "bqk,bkd->bqd"}> : () -> ()
    %cst_38 = arith.constant dense<0.000000e+00> : vector<4x8x16xf32>
    %87 = tpu.matmul %85, %86, %cst_38 {dimension_numbers = #tpu.dot_dimension_numbers<[2], [1], [1], [2], [0, 0, 0, 1, 1, 2], [0], [0]>} : vector<4x8x8xbf16>, vector<4x8x16xbf16>, vector<4x8x16xf32> -> vector<4x8x16xf32>
    "tpu.trace_stop"() : () -> ()
    %88 = vector.shape_cast %87 : vector<4x8x16xf32> to vector<2x2x8x16xf32>
    %89 = tpu.transpose %88, [0, 2, 1, 3] : vector<2x2x8x16xf32> -> vector<2x8x2x16xf32>
    %90 = vector.shape_cast %89 : vector<2x8x2x16xf32> to vector<16x32xf32>
    %c0_39 = arith.constant 0 : index
    %c0_40 = arith.constant 0 : index
    %c0_41 = arith.constant 0 : index
    %91 = vector.load %arg11[%c0_39, %c0_40, %c0_41] : memref<1x32x32xbf16, #tpu.memory_space<vmem>>, vector<1x32x32xbf16>
    %92 = vector.shape_cast %91 : vector<1x32x32xbf16> to vector<32x32xbf16>
    %93 = arith.truncf %90 : vector<16x32xf32> to vector<16x32xbf16>
    %cst_42 = arith.constant dense<0.000000e+00> : vector<16x32xf32>
    %94 = tpu.matmul %93, %92, %cst_42 {dimension_numbers = #tpu.dot_dimension_numbers<[1], [0], [0], [1], [0, 0, 1, 1], [], []>} : vector<16x32xbf16>, vector<32x32xbf16>, vector<16x32xf32> -> vector<16x32xf32>
    %95 = arith.addf %3, %94 : vector<16x32xf32>
    %c0_43 = arith.constant 0 : index
    %c0_44 = arith.constant 0 : index
    %c0_45 = arith.constant 0 : index
    %96 = vector.load %arg12[%c0_43, %c0_44, %c0_45] : memref<1x1x32xf32, #tpu.memory_space<vmem>>, vector<1x1x32xf32>
    %97 = vector.shape_cast %96 : vector<1x1x32xf32> to vector<1x32xf32>
    %98 = vector.broadcast %97 : vector<1x32xf32> to vector<16x32xf32>
    %99 = arith.addf %95, %98 : vector<16x32xf32>
    %c0_46 = arith.constant 0 : index
    %c0_47 = arith.constant 0 : index
    %c0_48 = arith.constant 0 : index
    %100 = vector.load %arg13[%c0_46, %c0_47, %c0_48] : memref<1x1x32xf32, #tpu.memory_space<vmem>>, vector<1x1x32xf32>
    %101 = vector.shape_cast %100 : vector<1x1x32xf32> to vector<1x32xf32>
    %c0_49 = arith.constant 0 : index
    %c0_50 = arith.constant 0 : index
    %c0_51 = arith.constant 0 : index
    %102 = vector.load %arg14[%c0_49, %c0_50, %c0_51] : memref<1x1x32xf32, #tpu.memory_space<vmem>>, vector<1x1x32xf32>
    %103 = vector.shape_cast %102 : vector<1x1x32xf32> to vector<1x32xf32>
    %cst_52 = arith.constant dense<0.000000e+00> : vector<16xf32>
    %104 = vector.multi_reduction <add>, %99, %cst_52 [1] : vector<16x32xf32> to vector<16xf32>
    %105 = vector.shape_cast %104 : vector<16xf32> to vector<16x1xf32>
    %cst_53 = arith.constant 3.200000e+01 : f32
    %106 = vector.broadcast %cst_53 : f32 to vector<16x1xf32>
    %107 = arith.divf %105, %106 : vector<16x1xf32>
    %108 = vector.broadcast %107 : vector<16x1xf32> to vector<16x32xf32>
    %109 = arith.subf %99, %108 : vector<16x32xf32>
    %110 = arith.mulf %109, %109 : vector<16x32xf32>
    %cst_54 = arith.constant dense<0.000000e+00> : vector<16xf32>
    %111 = vector.multi_reduction <add>, %110, %cst_54 [1] : vector<16x32xf32> to vector<16xf32>
    %112 = vector.shape_cast %111 : vector<16xf32> to vector<16x1xf32>
    %cst_55 = arith.constant 3.200000e+01 : f32
    %113 = vector.broadcast %cst_55 : f32 to vector<16x1xf32>
    %114 = arith.divf %112, %113 : vector<16x1xf32>
    %115 = vector.broadcast %107 : vector<16x1xf32> to vector<16x32xf32>
    %116 = arith.subf %99, %115 : vector<16x32xf32>
    %cst_56 = arith.constant 9.99999974E-6 : f32
    %117 = vector.broadcast %cst_56 : f32 to vector<16x1xf32>
    %118 = arith.addf %114, %117 : vector<16x1xf32>
    %119 = math.rsqrt %118 : vector<16x1xf32>
    %120 = vector.broadcast %119 : vector<16x1xf32> to vector<16x32xf32>
    %121 = arith.mulf %116, %120 : vector<16x32xf32>
    %122 = vector.broadcast %101 : vector<1x32xf32> to vector<16x32xf32>
    %123 = arith.mulf %121, %122 : vector<16x32xf32>
    %124 = vector.broadcast %103 : vector<1x32xf32> to vector<16x32xf32>
    %125 = arith.addf %123, %124 : vector<16x32xf32>
    %c0_57 = arith.constant 0 : index
    %c0_58 = arith.constant 0 : index
    %c0_59 = arith.constant 0 : index
    %126 = vector.load %arg15[%c0_57, %c0_58, %c0_59] : memref<1x32x64xbf16, #tpu.memory_space<vmem>>, vector<1x32x64xbf16>
    %127 = vector.shape_cast %126 : vector<1x32x64xbf16> to vector<32x64xbf16>
    %128 = arith.truncf %125 : vector<16x32xf32> to vector<16x32xbf16>
    %cst_60 = arith.constant dense<0.000000e+00> : vector<16x64xf32>
    %129 = tpu.matmul %128, %127, %cst_60 {dimension_numbers = #tpu.dot_dimension_numbers<[1], [0], [0], [1], [0, 0, 1, 1], [], []>} : vector<16x32xbf16>, vector<32x64xbf16>, vector<16x64xf32> -> vector<16x64xf32>
    %c0_61 = arith.constant 0 : index
    %c0_62 = arith.constant 0 : index
    %c0_63 = arith.constant 0 : index
    %130 = vector.load %arg16[%c0_61, %c0_62, %c0_63] : memref<1x1x64xf32, #tpu.memory_space<vmem>>, vector<1x1x64xf32>
    %131 = vector.shape_cast %130 : vector<1x1x64xf32> to vector<1x64xf32>
    %132 = vector.broadcast %131 : vector<1x64xf32> to vector<16x64xf32>
    %133 = arith.addf %129, %132 : vector<16x64xf32>
    %cst_64 = arith.constant 0.000000e+00 : f32
    %134 = vector.broadcast %cst_64 : f32 to vector<16x64xf32>
    %135 = arith.maximumf %133, %134 : vector<16x64xf32>
    %c0_65 = arith.constant 0 : index
    %c0_66 = arith.constant 0 : index
    %c0_67 = arith.constant 0 : index
    %136 = vector.load %arg17[%c0_65, %c0_66, %c0_67] : memref<1x64x32xbf16, #tpu.memory_space<vmem>>, vector<1x64x32xbf16>
    %137 = vector.shape_cast %136 : vector<1x64x32xbf16> to vector<64x32xbf16>
    %138 = arith.truncf %135 : vector<16x64xf32> to vector<16x64xbf16>
    %cst_68 = arith.constant dense<0.000000e+00> : vector<16x32xf32>
    %139 = tpu.matmul %138, %137, %cst_68 {dimension_numbers = #tpu.dot_dimension_numbers<[1], [0], [0], [1], [0, 0, 1, 1], [], []>} : vector<16x64xbf16>, vector<64x32xbf16>, vector<16x32xf32> -> vector<16x32xf32>
    %140 = arith.addf %99, %139 : vector<16x32xf32>
    %c0_69 = arith.constant 0 : index
    %c0_70 = arith.constant 0 : index
    %c0_71 = arith.constant 0 : index
    %141 = vector.load %arg18[%c0_69, %c0_70, %c0_71] : memref<1x1x32xf32, #tpu.memory_space<vmem>>, vector<1x1x32xf32>
    %142 = vector.shape_cast %141 : vector<1x1x32xf32> to vector<1x32xf32>
    %143 = vector.broadcast %142 : vector<1x32xf32> to vector<16x32xf32>
    %144 = arith.addf %140, %143 : vector<16x32xf32>
    %c0_72 = arith.constant 0 : index
    %c0_73 = arith.constant 0 : index
    %145 = vector.load %arg20[%c0_72, %c0_73] : memref<16x32xf32, #tpu.memory_space<vmem>>, vector<16x32xf32>
    tpu.vector_store %arg20[%c0_72, %c0_73], %144 {strides = array<i32>} : memref<16x32xf32, #tpu.memory_space<vmem>>, vector<16x32xf32>,
    %c0_74 = arith.constant 0 : index
    %c0_75 = arith.constant 0 : index
    %c0_76 = arith.constant 0 : index
    %146 = vector.load %arg19[%c0_74, %c0_75, %c0_76] : memref<1x16x32xf32, #tpu.memory_space<vmem>>, vector<1x16x32xf32>
    %147 = vector.shape_cast %146 : vector<1x16x32xf32> to vector<16x32xf32>
    %148 = vector.shape_cast %144 : vector<16x32xf32> to vector<1x16x32xf32>
    tpu.vector_store %arg19[%c0_74, %c0_75, %c0_76], %148 {strides = array<i32>} : memref<1x16x32xf32, #tpu.memory_space<vmem>>, vector<1x16x32xf32>,
    return
  }
  func.func @transform_0(%arg0: i32, %arg1: i32) -> (i32, i32) {
    %c0_i32 = arith.constant 0 : i32
    %c0_i32_0 = arith.constant 0 : i32
    return %arg0, %c0_i32 : i32, i32
  }
  func.func @transform_1(%arg0: i32, %arg1: i32) -> (i32, i32, i32) {
    %c0_i32 = arith.constant 0 : i32
    %c0_i32_0 = arith.constant 0 : i32
    %c0_i32_1 = arith.constant 0 : i32
    return %arg1, %c0_i32, %c0_i32_0 : i32, i32, i32
  }
  func.func @transform_2(%arg0: i32, %arg1: i32) -> (i32, i32, i32) {
    %c0_i32 = arith.constant 0 : i32
    %c0_i32_0 = arith.constant 0 : i32
    %c0_i32_1 = arith.constant 0 : i32
    return %arg1, %c0_i32, %c0_i32_0 : i32, i32, i32
  }
  func.func @transform_3(%arg0: i32, %arg1: i32) -> (i32, i32, i32) {
    %c0_i32 = arith.constant 0 : i32
    %c0_i32_0 = arith.constant 0 : i32
    %c0_i32_1 = arith.constant 0 : i32
    return %arg1, %c0_i32, %c0_i32_0 : i32, i32, i32
  }
  func.func @transform_4(%arg0: i32, %arg1: i32) -> (i32, i32, i32) {
    %c0_i32 = arith.constant 0 : i32
    %c0_i32_0 = arith.constant 0 : i32
    %c0_i32_1 = arith.constant 0 : i32
    return %arg1, %c0_i32, %c0_i32_0 : i32, i32, i32
  }
  func.func @transform_5(%arg0: i32, %arg1: i32) -> (i32, i32, i32) {
    %c0_i32 = arith.constant 0 : i32
    %c0_i32_0 = arith.constant 0 : i32
    %c0_i32_1 = arith.constant 0 : i32
    return %arg1, %c0_i32, %c0_i32_0 : i32, i32, i32
  }
  func.func @transform_6(%arg0: i32, %arg1: i32) -> (i32, i32, i32) {
    %c0_i32 = arith.constant 0 : i32
    %c0_i32_0 = arith.constant 0 : i32
    %c0_i32_1 = arith.constant 0 : i32
    return %arg1, %c0_i32, %c0_i32_0 : i32, i32, i32
  }
  func.func @transform_7(%arg0: i32, %arg1: i32) -> (i32, i32, i32) {
    %c0_i32 = arith.constant 0 : i32
    %c0_i32_0 = arith.constant 0 : i32
    %c0_i32_1 = arith.constant 0 : i32
    return %arg1, %c0_i32, %c0_i32_0 : i32, i32, i32
  }
  func.func @transform_8(%arg0: i32, %arg1: i32) -> (i32, i32, i32) {
    %c0_i32 = arith.constant 0 : i32
    %c0_i32_0 = arith.constant 0 : i32
    %c0_i32_1 = arith.constant 0 : i32
    return %arg1, %c0_i32, %c0_i32_0 : i32, i32, i32
  }
  func.func @transform_9(%arg0: i32, %arg1: i32) -> (i32, i32, i32) {
    %c0_i32 = arith.constant 0 : i32
    %c0_i32_0 = arith.constant 0 : i32
    %c0_i32_1 = arith.constant 0 : i32
    return %arg1, %c0_i32, %c0_i32_0 : i32, i32, i32
  }
  func.func @transform_10(%arg0: i32, %arg1: i32) -> (i32, i32, i32) {
    %c0_i32 = arith.constant 0 : i32
    %c0_i32_0 = arith.constant 0 : i32
    %c0_i32_1 = arith.constant 0 : i32
    return %arg1, %c0_i32, %c0_i32_0 : i32, i32, i32
  }
  func.func @transform_11(%arg0: i32, %arg1: i32) -> (i32, i32, i32) {
    %c0_i32 = arith.constant 0 : i32
    %c0_i32_0 = arith.constant 0 : i32
    %c0_i32_1 = arith.constant 0 : i32
    return %arg1, %c0_i32, %c0_i32_0 : i32, i32, i32
  }
  func.func @transform_12(%arg0: i32, %arg1: i32) -> (i32, i32, i32) {
    %c0_i32 = arith.constant 0 : i32
    %c0_i32_0 = arith.constant 0 : i32
    %c0_i32_1 = arith.constant 0 : i32
    return %arg1, %c0_i32, %c0_i32_0 : i32, i32, i32
  }
  func.func @transform_13(%arg0: i32, %arg1: i32) -> (i32, i32, i32) {
    %c0_i32 = arith.constant 0 : i32
    %c0_i32_0 = arith.constant 0 : i32
    %c0_i32_1 = arith.constant 0 : i32
    return %arg1, %c0_i32, %c0_i32_0 : i32, i32, i32
  }
  func.func @transform_14(%arg0: i32, %arg1: i32) -> (i32, i32, i32) {
    %c0_i32 = arith.constant 0 : i32
    %c0_i32_0 = arith.constant 0 : i32
    %c0_i32_1 = arith.constant 0 : i32
    return %arg1, %c0_i32, %c0_i32_0 : i32, i32, i32
  }
  func.func @transform_15(%arg0: i32, %arg1: i32) -> (i32, i32, i32) {
    %c0_i32 = arith.constant 0 : i32
    %c0_i32_0 = arith.constant 0 : i32
    %c0_i32_1 = arith.constant 0 : i32
    return %arg1, %c0_i32, %c0_i32_0 : i32, i32, i32
  }
  func.func @transform_16(%arg0: i32, %arg1: i32) -> (i32, i32, i32) {
    %c0_i32 = arith.constant 0 : i32
    %c0_i32_0 = arith.constant 0 : i32
    %c0_i32_1 = arith.constant 0 : i32
    return %arg1, %c0_i32, %c0_i32_0 : i32, i32, i32
  }
  func.func @transform_17(%arg0: i32, %arg1: i32) -> (i32, i32, i32) {
    %c0_i32 = arith.constant 0 : i32
    %c0_i32_0 = arith.constant 0 : i32
    return %arg1, %arg0, %c0_i32 : i32, i32, i32
  }
}

</mosaic_0001>

<llo_original>
// kernel: tpu_custom_call.1
$region0: #{tpu_custom_call.1}
  #allocation0 [shape = 'u32[]', space=smem, size = 0x4, offset = 0x4, fixed_abs, tag = 'smem constant byte address 0x4 - core index']
  #allocation1 [shape = 'u32[144,128]{1,0:T(1,128)}', space=vmem, size = 0x12000, scoped, tag = 'internal scratch']
  #allocation2 [shape = 'f32[16,32]{1,0:T(8,128)}', space=vmem, size = 0x2000, scoped, tag = 'scratch operand']
  %s0 = inlined_call_operand.hbm [shape: f32[16,32], index: 0, kind: input, shape index: {}]
  %s1 = inlined_call_operand.hbm [shape: f32[2,1,32], index: 1, kind: input, shape index: {}]
  %s2 = inlined_call_operand.hbm [shape: f32[2,1,32], index: 2, kind: input, shape index: {}]
  %s3 = inlined_call_operand.hbm [shape: bf16[2,32,32], index: 3, kind: input, shape index: {}]
  %s4 = inlined_call_operand.hbm [shape: f32[2,1,32], index: 4, kind: input, shape index: {}]
  %s5 = inlined_call_operand.hbm [shape: bf16[2,32,32], index: 5, kind: input, shape index: {}]
  %s6 = inlined_call_operand.hbm [shape: f32[2,1,32], index: 6, kind: input, shape index: {}]
  %s7 = inlined_call_operand.hbm [shape: bf16[2,32,32], index: 7, kind: input, shape index: {}]
  %s8 = inlined_call_operand.hbm [shape: f32[2,1,32], index: 8, kind: input, shape index: {}]
  %s9 = inlined_call_operand.hbm [shape: bf16[2,32,32], index: 9, kind: input, shape index: {}]
  %s10 = inlined_call_operand.hbm [shape: f32[2,1,32], index: 10, kind: input, shape index: {}]
  %s11 = inlined_call_operand.hbm [shape: f32[2,1,32], index: 11, kind: input, shape index: {}]
  %s12 = inlined_call_operand.hbm [shape: f32[2,1,32], index: 12, kind: input, shape index: {}]
  %s13 = inlined_call_operand.hbm [shape: bf16[2,32,64], index: 13, kind: input, shape index: {}]
  %s14 = inlined_call_operand.hbm [shape: f32[2,1,64], index: 14, kind: input, shape index: {}]
  %s15 = inlined_call_operand.hbm [shape: bf16[2,64,32], index: 15, kind: input, shape index: {}]
  %s16 = inlined_call_operand.hbm [shape: f32[2,1,32], index: 16, kind: input, shape index: {}]
  %s17 = inlined_call_operand.hbm [shape: f32[2,16,32], index: 17, kind: output, shape index: {}]
  %s18 = sld [smem:[#allocation0]]
  $region173: #{tpu_custom_call.1} parent=0
    _
  %s20 = ssub.s32 1, %s18
  %s21 = scalar_select 0, %s20, %s18
  $region1: #{tpu_custom_call.1} parent=0
    #allocation3 [shape = 'u8[8192]{0}', space=vmem, size = 0x2000, scoped, tag = 'input window, operand 0, single buffered']
    #allocation4 [shape = 's32[2]{0}', space=sflag, size = 0x8, scoped, tag = 'scoped memory for tpu_custom_call.1']
    #allocation5 [shape = 's32[2]{0}', space=sflag, size = 0x8, scoped, tag = 'scoped memory for tpu_custom_call.1']
    #allocation6 [shape = 'u8[1024]{0}', space=vmem, size = 0x400, scoped, tag = 'input window, operand 1']
    #allocation7 [shape = 's32[2]{0}', space=sflag, size = 0x8, scoped, tag = 'scoped memory for tpu_custom_call.1']
    #allocation8 [shape = 'u8[1024]{0}', space=vmem, size = 0x400, scoped, tag = 'input window, operand 2']
    #allocation9 [shape = 'u8[16384]{0}', space=vmem, size = 0x4000, scoped, tag = 'input window, operand 3']
    #allocation10 [shape = 's32[2]{0}', space=sflag, size = 0x8, scoped, tag = 'scoped memory for tpu_custom_call.1']
    #allocation11 [shape = 'u8[1024]{0}', space=vmem, size = 0x400, scoped, tag = 'input window, operand 4']
    #allocation12 [shape = 'u8[16384]{0}', space=vmem, size = 0x4000, scoped, tag = 'input window, operand 5']
    #allocation13 [shape = 's32[2]{0}', space=sflag, size = 0x8, scoped, tag = 'scoped memory for tpu_custom_call.1']
    #allocation14 [shape = 'u8[1024]{0}', space=vmem, size = 0x400, scoped, tag = 'input window, operand 6']
    #allocation15 [shape = 'u8[16384]{0}', space=vmem, size = 0x4000, scoped, tag = 'input window, operand 7']
    #allocation16 [shape = 's32[2]{0}', space=sflag, size = 0x8, scoped, tag = 'scoped memory for tpu_custom_call.1']
    #allocation17 [shape = 'u8[1024]{0}', space=vmem, size = 0x400, scoped, tag = 'input window, operand 8']
    #allocation18 [shape = 'u8[16384]{0}', space=vmem, size = 0x4000, scoped, tag = 'input window, operand 9']
    #allocation19 [shape = 's32[2]{0}', space=sflag, size = 0x8, scoped, tag = 'scoped memory for tpu_custom_call.1']
    #allocation20 [shape = 'u8[1024]{0}', space=vmem, size = 0x400, scoped, tag = 'input window, operand 10']
    #allocation21 [shape = 'u8[1024]{0}', space=vmem, size = 0x400, scoped, tag = 'input window, operand 11']
    #allocation22 [shape = 's32[2]{0}', space=sflag, size = 0x8, scoped, tag = 'scoped memory for tpu_custom_call.1']
    #allocation23 [shape = 'u8[1024]{0}', space=vmem, size = 0x400, scoped, tag = 'input window, operand 12']
    #allocation24 [shape = 'u8[16384]{0}', space=vmem, size = 0x4000, scoped, tag = 'input window, operand 13']
    #allocation25 [shape = 's32[2]{0}', space=sflag, size = 0x8, scoped, tag = 'scoped memory for tpu_custom_call.1']
    #allocation26 [shape = 'u8[1024]{0}', space=vmem, size = 0x400, scoped, tag = 'input window, operand 14']
    #allocation27 [shape = 'u8[32768]{0}', space=vmem, size = 0x8000, scoped, tag = 'input window, operand 15']
    #allocation28 [shape = 's32[2]{0}', space=sflag, size = 0x8, scoped, tag = 'scoped memory for tpu_custom_call.1']
    #allocation29 [shape = 'u8[1024]{0}', space=vmem, size = 0x400, scoped, tag = 'input window, operand 16']
    #allocation30 [shape = 'u8[16384]{0}', space=vmem, size = 0x4000, scoped, tag = 'output window, operand 0']
    %22 = vsyncpa [#allocation4], 0
    %23 = vsyncpa [#allocation7], 0
    %s24 = scalar_lea.sflag [#allocation7], 1
    %25 = vsyncpa %s24, 0
    %26 = vsyncpa [#allocation10], 0
    %s27 = scalar_lea.sflag [#allocation10], 1
    %28 = vsyncpa %s27, 0
    %29 = vsyncpa [#allocation13], 0
    %s30 = scalar_lea.sflag [#allocation13], 1
    %31 = vsyncpa %s30, 0
    %32 = vsyncpa [#allocation16], 0
    %s33 = scalar_lea.sflag [#allocation16], 1
    %34 = vsyncpa %s33, 0
    %35 = vsyncpa [#allocation19], 0
    %s36 = scalar_lea.sflag [#allocation19], 1
    %37 = vsyncpa %s36, 0
    %38 = vsyncpa [#allocation22], 0
    %s39 = scalar_lea.sflag [#allocation22], 1
    %40 = vsyncpa %s39, 0
    %41 = vsyncpa [#allocation25], 0
    %s42 = scalar_lea.sflag [#allocation25], 1
    %43 = vsyncpa %s42, 0
    %44 = vsyncpa [#allocation28], 0
    %s45 = scalar_lea.sflag [#allocation28], 1
    %46 = vsyncpa %s45, 0
    %47 = vsyncpa [#allocation5], 0
    %s48 = scalar_lea.sflag [#allocation5], 1
    %49 = vsyncpa %s48, 0
    loop: start=0, step=1, limit=4
    $region2: #{tpu_custom_call.1} parent=1 // loop_pre_header
      _
    $region3: #{tpu_custom_call.1} parent=1 // loop_header
      %s51 = sphi 0, %s55
      %p52 = scmp.ge.s32.totalorder %s51, 4
      %s58 = sphi 0, %s70
      %s59 = sphi 0, %s66
      %s60 = sphi 0, %s58
      %s61 = sphi 0, %s59
      %s62 = sphi 0, %s60
      %s63 = sphi 0, %s61
      %s73 = sphi 0, %s75
      %s76 = sphi 0, %s73
      %s77 = sphi 0, %s76
      %s93 = sphi 0, %s77
      %s99 = sphi 0, %s101
      %s102 = sphi 0, %s99
      %s103 = sphi 0, %s102
      %s119 = sphi 0, %s103
      %s125 = sphi 0, %s127
      %s128 = sphi 0, %s125
      %s129 = sphi 0, %s128
      %s145 = sphi 0, %s129
      %s151 = sphi 0, %s153
      %s154 = sphi 0, %s151
      %s155 = sphi 0, %s154
      %s171 = sphi 0, %s155
      %s177 = sphi 0, %s179
      %s180 = sphi 0, %s177
      %s181 = sphi 0, %s180
      %s197 = sphi 0, %s181
      %s203 = sphi 0, %s205
      %s206 = sphi 0, %s203
      %s207 = sphi 0, %s206
      %s223 = sphi 0, %s207
      %s229 = sphi 0, %s231
      %s232 = sphi 0, %s229
      %s233 = sphi 0, %s232
      %s249 = sphi 0, %s233
      %s255 = sphi 0, %s257
      %s258 = sphi 0, %s255
      %s259 = sphi 0, %s258
      %s275 = sphi 0, %s259
      %s281 = sphi 0, %s283
      %s284 = sphi 0, %s281
      %s285 = sphi 0, %s284
      %s301 = sphi 0, %s285
      %s307 = sphi 0, %s309
      %s310 = sphi 0, %s307
      %s311 = sphi 0, %s310
      %s327 = sphi 0, %s311
      %s333 = sphi 0, %s335
      %s336 = sphi 0, %s333
      %s337 = sphi 0, %s336
      %s353 = sphi 0, %s337
      %s359 = sphi 0, %s361
      %s362 = sphi 0, %s359
      %s363 = sphi 0, %s362
      %s379 = sphi 0, %s363
      %s385 = sphi 0, %s387
      %s388 = sphi 0, %s385
      %s389 = sphi 0, %s388
      %s405 = sphi 0, %s389
      %s411 = sphi 0, %s413
      %s414 = sphi 0, %s411
      %s415 = sphi 0, %s414
      %s431 = sphi 0, %s415
      %s437 = sphi 0, %s439
      %s440 = sphi 0, %s437
      %s441 = sphi 0, %s440
      %s457 = sphi 0, %s441
      %s463 = sphi 0, %s465
      %s466 = sphi 0, %s463
      %s467 = sphi 0, %s466
      %s483 = sphi 0, %s467
      %s489 = sphi 0, %s491
      %s492 = sphi 0, %s489
      %s493 = sphi 0, %s492
      %s509 = sphi 0, %s493
      %s517 = sphi 0, %s519
      %s520 = sphi 0, %s517
      %s521 = sphi 0, %s520
      %s537 = sphi 0, %s521
    $region4: #{tpu_custom_call.1} parent=1 // loop_header_branch
      %54 = sbr.rel (%p52) target = $region8
    $region5: #{tpu_custom_call.1} parent=1 // loop_body
      %s56 = ssub.s32 %s51, 1
      %s57 = ssub.s32 %s51, 2
      %s64 = sadd.s32 1, %s59
      %p65 = scmp.ge.s32.totalorder %s64, 2
      %s66 = scalar_select %p65, 0, %s64
      %s67 = sadd.s32 1, %s58
      %s68 = scalar_select %p65, %s67, %s58
      %p69 = scmp.ge.s32.totalorder %s68, 1
      %s70 = scalar_select %p69, 0, %s68
      %s71 = ssub.s32 %s58, %s70
      %p72 = scmp.eq.s32.totalorder %s71, 0
      %s74 = sadd.s32 %s73, 1
      %s75 = scalar_select %p72, %s73, %s74
      %p78 = pneg %p72
      %p79 = scmp.eq.s32.totalorder %s51, 1
      %p80 = por %p78, %p79
      %p81 = scmp.ne.s32.totalorder %s73, %s76
      %p82 = scmp.eq.s32.totalorder %s51, 0
      %p83 = por %p81, %p82
      %p84 = scmp.ne.s32.totalorder %s73, %s76
      %p85 = scmp.eq.s32.totalorder %s56, 1
      %p86 = por %p84, %p85
      %p87 = scmp.ne.s32.totalorder %s76, %s77
      %p88 = scmp.eq.s32.totalorder %s56, 0
      %p89 = por %p87, %p88
      %p90 = scmp.ne.s32.totalorder %s76, %s77
      %p91 = scmp.eq.s32.totalorder %s57, 1
      %p92 = por %p90, %p91
      %p94 = scmp.ne.s32.totalorder %s77, %s93
      %p95 = scmp.eq.s32.totalorder %s57, 0
      %p96 = por %p94, %p95
      %s97 = ssub.s32 %s59, %s66
      %p98 = scmp.eq.s32.totalorder %s97, 0
      %s100 = sadd.s32 %s99, 1
      %s101 = scalar_select %p98, %s99, %s100
      %p104 = pneg %p98
      %p105 = scmp.eq.s32.totalorder %s51, 1
      %p106 = por %p104, %p105
      %p107 = scmp.ne.s32.totalorder %s99, %s102
      %p108 = scmp.eq.s32.totalorder %s51, 0
      %p109 = por %p107, %p108
      %p110 = scmp.ne.s32.totalorder %s99, %s102
      %p111 = scmp.eq.s32.totalorder %s56, 1
      %p112 = por %p110, %p111
      %p113 = scmp.ne.s32.totalorder %s102, %s103
      %p114 = scmp.eq.s32.totalorder %s56, 0
      %p115 = por %p113, %p114
      %p116 = scmp.ne.s32.totalorder %s102, %s103
      %p117 = scmp.eq.s32.totalorder %s57, 1
      %p118 = por %p116, %p117
      %p120 = scmp.ne.s32.totalorder %s103, %s119
      %p121 = scmp.eq.s32.totalorder %s57, 0
      %p122 = por %p120, %p121
      %s123 = ssub.s32 %s59, %s66
      %p124 = scmp.eq.s32.totalorder %s123, 0
      %s126 = sadd.s32 %s125, 1
      %s127 = scalar_select %p124, %s125, %s126
      %p130 = pneg %p124
      %p131 = scmp.eq.s32.totalorder %s51, 1
      %p132 = por %p130, %p131
      %p133 = scmp.ne.s32.totalorder %s125, %s128
      %p134 = scmp.eq.s32.totalorder %s51, 0
      %p135 = por %p133, %p134
      %p136 = scmp.ne.s32.totalorder %s125, %s128
      %p137 = scmp.eq.s32.totalorder %s56, 1
      %p138 = por %p136, %p137
      %p139 = scmp.ne.s32.totalorder %s128, %s129
      %p140 = scmp.eq.s32.totalorder %s56, 0
      %p141 = por %p139, %p140
      %p142 = scmp.ne.s32.totalorder %s128, %s129
      %p143 = scmp.eq.s32.totalorder %s57, 1
      %p144 = por %p142, %p143
      %p146 = scmp.ne.s32.totalorder %s129, %s145
      %p147 = scmp.eq.s32.totalorder %s57, 0
      %p148 = por %p146, %p147
      %s149 = ssub.s32 %s59, %s66
      %p150 = scmp.eq.s32.totalorder %s149, 0
      %s152 = sadd.s32 %s151, 1
      %s153 = scalar_select %p150, %s151, %s152
      %p156 = pneg %p150
      %p157 = scmp.eq.s32.totalorder %s51, 1
      %p158 = por %p156, %p157
      %p159 = scmp.ne.s32.totalorder %s151, %s154
      %p160 = scmp.eq.s32.totalorder %s51, 0
      %p161 = por %p159, %p160
      %p162 = scmp.ne.s32.totalorder %s151, %s154
      %p163 = scmp.eq.s32.totalorder %s56, 1
      %p164 = por %p162, %p163
      %p165 = scmp.ne.s32.totalorder %s154, %s155
      %p166 = scmp.eq.s32.totalorder %s56, 0
      %p167 = por %p165, %p166
      %p168 = scmp.ne.s32.totalorder %s154, %s155
      %p169 = scmp.eq.s32.totalorder %s57, 1
      %p170 = por %p168, %p169
      %p172 = scmp.ne.s32.totalorder %s155, %s171
      %p173 = scmp.eq.s32.totalorder %s57, 0
      %p174 = por %p172, %p173
      %s175 = ssub.s32 %s59, %s66
      %p176 = scmp.eq.s32.totalorder %s175, 0
      %s178 = sadd.s32 %s177, 1
      %s179 = scalar_select %p176, %s177, %s178
      %p182 = pneg %p176
      %p183 = scmp.eq.s32.totalorder %s51, 1
      %p184 = por %p182, %p183
      %p185 = scmp.ne.s32.totalorder %s177, %s180
      %p186 = scmp.eq.s32.totalorder %s51, 0
      %p187 = por %p185, %p186
      %p188 = scmp.ne.s32.totalorder %s177, %s180
      %p189 = scmp.eq.s32.totalorder %s56, 1
      %p190 = por %p188, %p189
      %p191 = scmp.ne.s32.totalorder %s180, %s181
      %p192 = scmp.eq.s32.totalorder %s56, 0
      %p193 = por %p191, %p192
      %p194 = scmp.ne.s32.totalorder %s180, %s181
      %p195 = scmp.eq.s32.totalorder %s57, 1
      %p196 = por %p194, %p195
      %p198 = scmp.ne.s32.totalorder %s181, %s197
      %p199 = scmp.eq.s32.totalorder %s57, 0
      %p200 = por %p198, %p199
      %s201 = ssub.s32 %s59, %s66
      %p202 = scmp.eq.s32.totalorder %s201, 0
      %s204 = sadd.s32 %s203, 1
      %s205 = scalar_select %p202, %s203, %s204
      %p208 = pneg %p202
      %p209 = scmp.eq.s32.totalorder %s51, 1
      %p210 = por %p208, %p209
      %p211 = scmp.ne.s32.totalorder %s203, %s206
      %p212 = scmp.eq.s32.totalorder %s51, 0
      %p213 = por %p211, %p212
      %p214 = scmp.ne.s32.totalorder %s203, %s206
      %p215 = scmp.eq.s32.totalorder %s56, 1
      %p216 = por %p214, %p215
      %p217 = scmp.ne.s32.totalorder %s206, %s207
      %p218 = scmp.eq.s32.totalorder %s56, 0
      %p219 = por %p217, %p218
      %p220 = scmp.ne.s32.totalorder %s206, %s207
      %p221 = scmp.eq.s32.totalorder %s57, 1
      %p222 = por %p220, %p221
      %p224 = scmp.ne.s32.totalorder %s207, %s223
      %p225 = scmp.eq.s32.totalorder %s57, 0
      %p226 = por %p224, %p225
      %s227 = ssub.s32 %s59, %s66
      %p228 = scmp.eq.s32.totalorder %s227, 0
      %s230 = sadd.s32 %s229, 1
      %s231 = scalar_select %p228, %s229, %s230
      %p234 = pneg %p228
      %p235 = scmp.eq.s32.totalorder %s51, 1
      %p236 = por %p234, %p235
      %p237 = scmp.ne.s32.totalorder %s229, %s232
      %p238 = scmp.eq.s32.totalorder %s51, 0
      %p239 = por %p237, %p238
      %p240 = scmp.ne.s32.totalorder %s229, %s232
      %p241 = scmp.eq.s32.totalorder %s56, 1
      %p242 = por %p240, %p241
      %p243 = scmp.ne.s32.totalorder %s232, %s233
      %p244 = scmp.eq.s32.totalorder %s56, 0
      %p245 = por %p243, %p244
      %p246 = scmp.ne.s32.totalorder %s232, %s233
      %p247 = scmp.eq.s32.totalorder %s57, 1
      %p248 = por %p246, %p247
      %p250 = scmp.ne.s32.totalorder %s233, %s249
      %p251 = scmp.eq.s32.totalorder %s57, 0
      %p252 = por %p250, %p251
      %s253 = ssub.s32 %s59, %s66
      %p254 = scmp.eq.s32.totalorder %s253, 0
      %s256 = sadd.s32 %s255, 1
      %s257 = scalar_select %p254, %s255, %s256
      %p260 = pneg %p254
      %p261 = scmp.eq.s32.totalorder %s51, 1
      %p262 = por %p260, %p261
      %p263 = scmp.ne.s32.totalorder %s255, %s258
      %p264 = scmp.eq.s32.totalorder %s51, 0
      %p265 = por %p263, %p264
      %p266 = scmp.ne.s32.totalorder %s255, %s258
      %p267 = scmp.eq.s32.totalorder %s56, 1
      %p268 = por %p266, %p267
      %p269 = scmp.ne.s32.totalorder %s258, %s259
      %p270 = scmp.eq.s32.totalorder %s56, 0
      %p271 = por %p269, %p270
      %p272 = scmp.ne.s32.totalorder %s258, %s259
      %p273 = scmp.eq.s32.totalorder %s57, 1
      %p274 = por %p272, %p273
      %p276 = scmp.ne.s32.totalorder %s259, %s275
      %p277 = scmp.eq.s32.totalorder %s57, 0
      %p278 = por %p276, %p277
      %s279 = ssub.s32 %s59, %s66
      %p280 = scmp.eq.s32.totalorder %s279, 0
      %s282 = sadd.s32 %s281, 1
      %s283 = scalar_select %p280, %s281, %s282
      %p286 = pneg %p280
      %p287 = scmp.eq.s32.totalorder %s51, 1
      %p288 = por %p286, %p287
      %p289 = scmp.ne.s32.totalorder %s281, %s284
      %p290 = scmp.eq.s32.totalorder %s51, 0
      %p291 = por %p289, %p290
      %p292 = scmp.ne.s32.totalorder %s281, %s284
      %p293 = scmp.eq.s32.totalorder %s56, 1
      %p294 = por %p292, %p293
      %p295 = scmp.ne.s32.totalorder %s284, %s285
      %p296 = scmp.eq.s32.totalorder %s56, 0
      %p297 = por %p295, %p296
      %p298 = scmp.ne.s32.totalorder %s284, %s285
      %p299 = scmp.eq.s32.totalorder %s57, 1
      %p300 = por %p298, %p299
      %p302 = scmp.ne.s32.totalorder %s285, %s301
      %p303 = scmp.eq.s32.totalorder %s57, 0
      %p304 = por %p302, %p303
      %s305 = ssub.s32 %s59, %s66
      %p306 = scmp.eq.s32.totalorder %s305, 0
      %s308 = sadd.s32 %s307, 1
      %s309 = scalar_select %p306, %s307, %s308
      %p312 = pneg %p306
      %p313 = scmp.eq.s32.totalorder %s51, 1
      %p314 = por %p312, %p313
      %p315 = scmp.ne.s32.totalorder %s307, %s310
      %p316 = scmp.eq.s32.totalorder %s51, 0
      %p317 = por %p315, %p316
      %p318 = scmp.ne.s32.totalorder %s307, %s310
      %p319 = scmp.eq.s32.totalorder %s56, 1
      %p320 = por %p318, %p319
      %p321 = scmp.ne.s32.totalorder %s310, %s311
      %p322 = scmp.eq.s32.totalorder %s56, 0
      %p323 = por %p321, %p322
      %p324 = scmp.ne.s32.totalorder %s310, %s311
      %p325 = scmp.eq.s32.totalorder %s57, 1
      %p326 = por %p324, %p325
      %p328 = scmp.ne.s32.totalorder %s311, %s327
      %p329 = scmp.eq.s32.totalorder %s57, 0
      %p330 = por %p328, %p329
      %s331 = ssub.s32 %s59, %s66
      %p332 = scmp.eq.s32.totalorder %s331, 0
      %s334 = sadd.s32 %s333, 1
      %s335 = scalar_select %p332, %s333, %s334
      %p338 = pneg %p332
      %p339 = scmp.eq.s32.totalorder %s51, 1
      %p340 = por %p338, %p339
      %p341 = scmp.ne.s32.totalorder %s333, %s336
      %p342 = scmp.eq.s32.totalorder %s51, 0
      %p343 = por %p341, %p342
      %p344 = scmp.ne.s32.totalorder %s333, %s336
      %p345 = scmp.eq.s32.totalorder %s56, 1
      %p346 = por %p344, %p345
      %p347 = scmp.ne.s32.totalorder %s336, %s337
      %p348 = scmp.eq.s32.totalorder %s56, 0
      %p349 = por %p347, %p348
      %p350 = scmp.ne.s32.totalorder %s336, %s337
      %p351 = scmp.eq.s32.totalorder %s57, 1
      %p352 = por %p350, %p351
      %p354 = scmp.ne.s32.totalorder %s337, %s353
      %p355 = scmp.eq.s32.totalorder %s57, 0
      %p356 = por %p354, %p355
      %s357 = ssub.s32 %s59, %s66
      %p358 = scmp.eq.s32.totalorder %s357, 0
      %s360 = sadd.s32 %s359, 1
      %s361 = scalar_select %p358, %s359, %s360
      %p364 = pneg %p358
      %p365 = scmp.eq.s32.totalorder %s51, 1
      %p366 = por %p364, %p365
      %p367 = scmp.ne.s32.totalorder %s359, %s362
      %p368 = scmp.eq.s32.totalorder %s51, 0
      %p369 = por %p367, %p368
      %p370 = scmp.ne.s32.totalorder %s359, %s362
      %p371 = scmp.eq.s32.totalorder %s56, 1
      %p372 = por %p370, %p371
      %p373 = scmp.ne.s32.totalorder %s362, %s363
      %p374 = scmp.eq.s32.totalorder %s56, 0
      %p375 = por %p373, %p374
      %p376 = scmp.ne.s32.totalorder %s362, %s363
      %p377 = scmp.eq.s32.totalorder %s57, 1
      %p378 = por %p376, %p377
      %p380 = scmp.ne.s32.totalorder %s363, %s379
      %p381 = scmp.eq.s32.totalorder %s57, 0
      %p382 = por %p380, %p381
      %s383 = ssub.s32 %s59, %s66
      %p384 = scmp.eq.s32.totalorder %s383, 0
      %s386 = sadd.s32 %s385, 1
      %s387 = scalar_select %p384, %s385, %s386
      %p390 = pneg %p384
      %p391 = scmp.eq.s32.totalorder %s51, 1
      %p392 = por %p390, %p391
      %p393 = scmp.ne.s32.totalorder %s385, %s388
      %p394 = scmp.eq.s32.totalorder %s51, 0
      %p395 = por %p393, %p394
      %p396 = scmp.ne.s32.totalorder %s385, %s388
      %p397 = scmp.eq.s32.totalorder %s56, 1
      %p398 = por %p396, %p397
      %p399 = scmp.ne.s32.totalorder %s388, %s389
      %p400 = scmp.eq.s32.totalorder %s56, 0
      %p401 = por %p399, %p400
      %p402 = scmp.ne.s32.totalorder %s388, %s389
      %p403 = scmp.eq.s32.totalorder %s57, 1
      %p404 = por %p402, %p403
      %p406 = scmp.ne.s32.totalorder %s389, %s405
      %p407 = scmp.eq.s32.totalorder %s57, 0
      %p408 = por %p406, %p407
      %s409 = ssub.s32 %s59, %s66
      %p410 = scmp.eq.s32.totalorder %s409, 0
      %s412 = sadd.s32 %s411, 1
      %s413 = scalar_select %p410, %s411, %s412
      %p416 = pneg %p410
      %p417 = scmp.eq.s32.totalorder %s51, 1
      %p418 = por %p416, %p417
      %p419 = scmp.ne.s32.totalorder %s411, %s414
      %p420 = scmp.eq.s32.totalorder %s51, 0
      %p421 = por %p419, %p420
      %p422 = scmp.ne.s32.totalorder %s411, %s414
      %p423 = scmp.eq.s32.totalorder %s56, 1
      %p424 = por %p422, %p423
      %p425 = scmp.ne.s32.totalorder %s414, %s415
      %p426 = scmp.eq.s32.totalorder %s56, 0
      %p427 = por %p425, %p426
      %p428 = scmp.ne.s32.totalorder %s414, %s415
      %p429 = scmp.eq.s32.totalorder %s57, 1
      %p430 = por %p428, %p429
      %p432 = scmp.ne.s32.totalorder %s415, %s431
      %p433 = scmp.eq.s32.totalorder %s57, 0
      %p434 = por %p432, %p433
      %s435 = ssub.s32 %s59, %s66
      %p436 = scmp.eq.s32.totalorder %s435, 0
      %s438 = sadd.s32 %s437, 1
      %s439 = scalar_select %p436, %s437, %s438
      %p442 = pneg %p436
      %p443 = scmp.eq.s32.totalorder %s51, 1
      %p444 = por %p442, %p443
      %p445 = scmp.ne.s32.totalorder %s437, %s440
      %p446 = scmp.eq.s32.totalorder %s51, 0
      %p447 = por %p445, %p446
      %p448 = scmp.ne.s32.totalorder %s437, %s440
      %p449 = scmp.eq.s32.totalorder %s56, 1
      %p450 = por %p448, %p449
      %p451 = scmp.ne.s32.totalorder %s440, %s441
      %p452 = scmp.eq.s32.totalorder %s56, 0
      %p453 = por %p451, %p452
      %p454 = scmp.ne.s32.totalorder %s440, %s441
      %p455 = scmp.eq.s32.totalorder %s57, 1
      %p456 = por %p454, %p455
      %p458 = scmp.ne.s32.totalorder %s441, %s457
      %p459 = scmp.eq.s32.totalorder %s57, 0
      %p460 = por %p458, %p459
      %s461 = ssub.s32 %s59, %s66
      %p462 = scmp.eq.s32.totalorder %s461, 0
      %s464 = sadd.s32 %s463, 1
      %s465 = scalar_select %p462, %s463, %s464
      %p468 = pneg %p462
      %p469 = scmp.eq.s32.totalorder %s51, 1
      %p470 = por %p468, %p469
      %p471 = scmp.ne.s32.totalorder %s463, %s466
      %p472 = scmp.eq.s32.totalorder %s51, 0
      %p473 = por %p471, %p472
      %p474 = scmp.ne.s32.totalorder %s463, %s466
      %p475 = scmp.eq.s32.totalorder %s56, 1
      %p476 = por %p474, %p475
      %p477 = scmp.ne.s32.totalorder %s466, %s467
      %p478 = scmp.eq.s32.totalorder %s56, 0
      %p479 = por %p477, %p478
      %p480 = scmp.ne.s32.totalorder %s466, %s467
      %p481 = scmp.eq.s32.totalorder %s57, 1
      %p482 = por %p480, %p481
      %p484 = scmp.ne.s32.totalorder %s467, %s483
      %p485 = scmp.eq.s32.totalorder %s57, 0
      %p486 = por %p484, %p485
      %s487 = ssub.s32 %s59, %s66
      %p488 = scmp.eq.s32.totalorder %s487, 0
      %s490 = sadd.s32 %s489, 1
      %s491 = scalar_select %p488, %s489, %s490
      %p494 = pneg %p488
      %p495 = scmp.eq.s32.totalorder %s51, 1
      %p496 = por %p494, %p495
      %p497 = scmp.ne.s32.totalorder %s489, %s492
      %p498 = scmp.eq.s32.totalorder %s51, 0
      %p499 = por %p497, %p498
      %p500 = scmp.ne.s32.totalorder %s489, %s492
      %p501 = scmp.eq.s32.totalorder %s56, 1
      %p502 = por %p500, %p501
      %p503 = scmp.ne.s32.totalorder %s492, %s493
      %p504 = scmp.eq.s32.totalorder %s56, 0
      %p505 = por %p503, %p504
      %p506 = scmp.ne.s32.totalorder %s492, %s493
      %p507 = scmp.eq.s32.totalorder %s57, 1
      %p508 = por %p506, %p507
      %p510 = scmp.ne.s32.totalorder %s493, %s509
      %p511 = scmp.eq.s32.totalorder %s57, 0
      %p512 = por %p510, %p511
      %s513 = ssub.s32 %s59, %s66
      %s514 = ssub.s32 %s58, %s70
      %s515 = sor.u32 %s513, %s514
      %p516 = scmp.eq.s32.totalorder %s515, 0
      %s518 = sadd.s32 %s517, 1
      %s519 = scalar_select %p516, %s517, %s518
      %p522 = pneg %p516
      %p523 = scmp.eq.s32.totalorder %s51, 1
      %p524 = por %p522, %p523
      %p525 = scmp.ne.s32.totalorder %s517, %s520
      %p526 = scmp.eq.s32.totalorder %s51, 0
      %p527 = por %p525, %p526
      %p528 = scmp.ne.s32.totalorder %s517, %s520
      %p529 = scmp.eq.s32.totalorder %s56, 1
      %p530 = por %p528, %p529
      %p531 = scmp.ne.s32.totalorder %s520, %s521
      %p532 = scmp.eq.s32.totalorder %s56, 0
      %p533 = por %p531, %p532
      %p534 = scmp.ne.s32.totalorder %s520, %s521
      %p535 = scmp.eq.s32.totalorder %s57, 1
      %p536 = por %p534, %p535
      %p538 = scmp.ne.s32.totalorder %s521, %s537
      %p539 = scmp.eq.s32.totalorder %s57, 0
      %p540 = por %p538, %p539
      %p541 = scmp.le.s32.totalorder 1, %s51
      %p542 = scmp.lt.s32.totalorder %s51, 3
      %p543 = pnand %p541, %p542
      %p544 = pneg %p543
      // Predicated region
      $region9: #{tpu_custom_call.1} parent=5 // pred_check
        _
      $region10: #{tpu_custom_call.1} parent=5 // pred_check_branch
        %546 = sbr.rel (%p543) target = $region12
      $region11: #{tpu_custom_call.1} parent=5 // pred_region
        %s547 = ssub.s32 %s51, 1
        // Predicated region
        $region13: #{tpu_custom_call.1} parent=11 // pred_check
          %p548 = pneg %p89
        $region14: #{tpu_custom_call.1} parent=11 // pred_check_branch
          %550 = sbr.rel (%p548) target = $region16
        $region15: #{tpu_custom_call.1} parent=11 // pred_region
          %s551 = smul.u32 2, %s60
          %s553 = ssub.s32 256, 256
          %554 = vsyncadd [#allocation4], %s553
          %s555 = smul.addr %s551, 128
          %s556 = scalar_lea.hbm %s0, %s555
          %s557 = sshll.u32 [#allocation3], 4
          %s558 = int_to_ptr.vmem [resolvable:$true] %s557
          %563 = dma.hbm_to_vmem [thread:$0]  %s556, 256, %s558, [#allocation4], 128, 128, 8
        $region16: #{tpu_custom_call.1} parent=11 // pred_fallthru
          _
      $region12: #{tpu_custom_call.1} parent=5 // pred_fallthru
        _
      %p564 = scmp.lt.s32.totalorder %s51, 2
      // Predicated region
      $region17: #{tpu_custom_call.1} parent=5 // pred_check
        %p565 = pneg %p564
      $region18: #{tpu_custom_call.1} parent=5 // pred_check_branch
        %567 = sbr.rel (%p565) target = $region20
      $region19: #{tpu_custom_call.1} parent=5 // pred_region
        // Predicated region
        $region21: #{tpu_custom_call.1} parent=19 // pred_check
          %p568 = pneg %p109
        $region22: #{tpu_custom_call.1} parent=19 // pred_check_branch
          %570 = sbr.rel (%p568) target = $region24
        $region23: #{tpu_custom_call.1} parent=19 // pred_region
          %s571 = sand.u32 %s51, 1
          %s572 = scalar_lea.sflag [#allocation7], %s571
          %s573 = sand.u32 %s99, 1
          %s574 = scalar_lea.vmem [#allocation6], %s573
          %s576 = ssub.s32 16, 16
          %577 = vsyncadd %s572, %s576
          %s578 = smul.addr %s59, 16
          %s579 = scalar_lea.hbm %s1, %s578
          %s581 = sshll.u32 %s574, 4
          %s582 = int_to_ptr.vmem [resolvable:$true] %s581
          %584 = dma.hbm_to_vmem [thread:$0]  %s579, 16, %s582, %s572
        $region24: #{tpu_custom_call.1} parent=19 // pred_fallthru
          _
        // Predicated region
        $region25: #{tpu_custom_call.1} parent=19 // pred_check
          %p585 = pneg %p135
        $region26: #{tpu_custom_call.1} parent=19 // pred_check_branch
          %587 = sbr.rel (%p585) target = $region28
        $region27: #{tpu_custom_call.1} parent=19 // pred_region
          %s588 = sand.u32 %s51, 1
          %s589 = scalar_lea.sflag [#allocation7], %s588
          %s590 = sand.u32 %s125, 1
          %s591 = scalar_lea.vmem [#allocation8], %s590
          %s593 = ssub.s32 16, 16
          %594 = vsyncadd %s589, %s593
          %s595 = smul.addr %s59, 16
          %s596 = scalar_lea.hbm %s2, %s595
          %s598 = sshll.u32 %s591, 4
          %s599 = int_to_ptr.vmem [resolvable:$true] %s598
          %601 = dma.hbm_to_vmem [thread:$0]  %s596, 16, %s599, %s589
        $region28: #{tpu_custom_call.1} parent=19 // pred_fallthru
          _
        // Predicated region
        $region29: #{tpu_custom_call.1} parent=19 // pred_check
          %p602 = pneg %p161
        $region30: #{tpu_custom_call.1} parent=19 // pred_check_branch
          %604 = sbr.rel (%p602) target = $region32
        $region31: #{tpu_custom_call.1} parent=19 // pred_region
          %s605 = sand.u32 %s51, 1
          %s606 = scalar_lea.sflag [#allocation10], %s605
          %s607 = sand.u32 %s151, 1
          %s608 = smul.addr %s607, 16
          %s609 = scalar_lea.vmem [#allocation9], %s608
          %s611 = ssub.s32 256, 256
          %612 = vsyncadd %s606, %s611
          %s613 = smul.addr %s59, 4
          %s614 = smul.addr %s613, 64
          %s615 = scalar_lea.hbm %s3, %s614
          %s616 = sshll.u32 %s609, 4
          %s617 = int_to_ptr.vmem [resolvable:$true] %s616
          %622 = dma.hbm_to_vmem [thread:$0]  %s615, 256, %s617, %s606, 64, 64, 4
        $region32: #{tpu_custom_call.1} parent=19 // pred_fallthru
          _
        // Predicated region
        $region33: #{tpu_custom_call.1} parent=19 // pred_check
          %p623 = pneg %p187
        $region34: #{tpu_custom_call.1} parent=19 // pred_check_branch
          %625 = sbr.rel (%p623) target = $region36
        $region35: #{tpu_custom_call.1} parent=19 // pred_region
          %s626 = sand.u32 %s51, 1
          %s627 = scalar_lea.sflag [#allocation10], %s626
          %s628 = sand.u32 %s177, 1
          %s629 = scalar_lea.vmem [#allocation11], %s628
          %s631 = ssub.s32 16, 16
          %632 = vsyncadd %s627, %s631
          %s633 = smul.addr %s59, 16
          %s634 = scalar_lea.hbm %s4, %s633
          %s636 = sshll.u32 %s629, 4
          %s637 = int_to_ptr.vmem [resolvable:$true] %s636
          %639 = dma.hbm_to_vmem [thread:$0]  %s634, 16, %s637, %s627
        $region36: #{tpu_custom_call.1} parent=19 // pred_fallthru
          _
        // Predicated region
        $region37: #{tpu_custom_call.1} parent=19 // pred_check
          %p640 = pneg %p213
        $region38: #{tpu_custom_call.1} parent=19 // pred_check_branch
          %642 = sbr.rel (%p640) target = $region40
        $region39: #{tpu_custom_call.1} parent=19 // pred_region
          %s643 = sand.u32 %s51, 1
          %s644 = scalar_lea.sflag [#allocation13], %s643
          %s645 = sand.u32 %s203, 1
          %s646 = smul.addr %s645, 16
          %s647 = scalar_lea.vmem [#allocation12], %s646
          %s649 = ssub.s32 256, 256
          %650 = vsyncadd %s644, %s649
          %s651 = smul.addr %s59, 4
          %s652 = smul.addr %s651, 64
          %s653 = scalar_lea.hbm %s5, %s652
          %s654 = sshll.u32 %s647, 4
          %s655 = int_to_ptr.vmem [resolvable:$true] %s654
          %660 = dma.hbm_to_vmem [thread:$0]  %s653, 256, %s655, %s644, 64, 64, 4
        $region40: #{tpu_custom_call.1} parent=19 // pred_fallthru
          _
        // Predicated region
        $region41: #{tpu_custom_call.1} parent=19 // pred_check
          %p661 = pneg %p239
        $region42: #{tpu_custom_call.1} parent=19 // pred_check_branch
          %663 = sbr.rel (%p661) target = $region44
        $region43: #{tpu_custom_call.1} parent=19 // pred_region
          %s664 = sand.u32 %s51, 1
          %s665 = scalar_lea.sflag [#allocation13], %s664
          %s666 = sand.u32 %s229, 1
          %s667 = scalar_lea.vmem [#allocation14], %s666
          %s669 = ssub.s32 16, 16
          %670 = vsyncadd %s665, %s669
          %s671 = smul.addr %s59, 16
          %s672 = scalar_lea.hbm %s6, %s671
          %s674 = sshll.u32 %s667, 4
          %s675 = int_to_ptr.vmem [resolvable:$true] %s674
          %677 = dma.hbm_to_vmem [thread:$0]  %s672, 16, %s675, %s665
        $region44: #{tpu_custom_call.1} parent=19 // pred_fallthru
          _
        // Predicated region
        $region45: #{tpu_custom_call.1} parent=19 // pred_check
          %p678 = pneg %p265
        $region46: #{tpu_custom_call.1} parent=19 // pred_check_branch
          %680 = sbr.rel (%p678) target = $region48
        $region47: #{tpu_custom_call.1} parent=19 // pred_region
          %s681 = sand.u32 %s51, 1
          %s682 = scalar_lea.sflag [#allocation16], %s681
          %s683 = sand.u32 %s255, 1
          %s684 = smul.addr %s683, 16
          %s685 = scalar_lea.vmem [#allocation15], %s684
          %s687 = ssub.s32 256, 256
          %688 = vsyncadd %s682, %s687
          %s689 = smul.addr %s59, 4
          %s690 = smul.addr %s689, 64
          %s691 = scalar_lea.hbm %s7, %s690
          %s692 = sshll.u32 %s685, 4
          %s693 = int_to_ptr.vmem [resolvable:$true] %s692
          %698 = dma.hbm_to_vmem [thread:$0]  %s691, 256, %s693, %s682, 64, 64, 4
        $region48: #{tpu_custom_call.1} parent=19 // pred_fallthru
          _
        // Predicated region
        $region49: #{tpu_custom_call.1} parent=19 // pred_check
          %p699 = pneg %p291
        $region50: #{tpu_custom_call.1} parent=19 // pred_check_branch
          %701 = sbr.rel (%p699) target = $region52
        $region51: #{tpu_custom_call.1} parent=19 // pred_region
          %s702 = sand.u32 %s51, 1
          %s703 = scalar_lea.sflag [#allocation16], %s702
          %s704 = sand.u32 %s281, 1
          %s705 = scalar_lea.vmem [#allocation17], %s704
          %s707 = ssub.s32 16, 16
          %708 = vsyncadd %s703, %s707
          %s709 = smul.addr %s59, 16
          %s710 = scalar_lea.hbm %s8, %s709
          %s712 = sshll.u32 %s705, 4
          %s713 = int_to_ptr.vmem [resolvable:$true] %s712
          %715 = dma.hbm_to_vmem [thread:$0]  %s710, 16, %s713, %s703
        $region52: #{tpu_custom_call.1} parent=19 // pred_fallthru
          _
        // Predicated region
        $region53: #{tpu_custom_call.1} parent=19 // pred_check
          %p716 = pneg %p317
        $region54: #{tpu_custom_call.1} parent=19 // pred_check_branch
          %718 = sbr.rel (%p716) target = $region56
        $region55: #{tpu_custom_call.1} parent=19 // pred_region
          %s719 = sand.u32 %s51, 1
          %s720 = scalar_lea.sflag [#allocation19], %s719
          %s721 = sand.u32 %s307, 1
          %s722 = smul.addr %s721, 16
          %s723 = scalar_lea.vmem [#allocation18], %s722
          %s725 = ssub.s32 256, 256
          %726 = vsyncadd %s720, %s725
          %s727 = smul.addr %s59, 4
          %s728 = smul.addr %s727, 64
          %s729 = scalar_lea.hbm %s9, %s728
          %s730 = sshll.u32 %s723, 4
          %s731 = int_to_ptr.vmem [resolvable:$true] %s730
          %736 = dma.hbm_to_vmem [thread:$0]  %s729, 256, %s731, %s720, 64, 64, 4
        $region56: #{tpu_custom_call.1} parent=19 // pred_fallthru
          _
        // Predicated region
        $region57: #{tpu_custom_call.1} parent=19 // pred_check
          %p737 = pneg %p343
        $region58: #{tpu_custom_call.1} parent=19 // pred_check_branch
          %739 = sbr.rel (%p737) target = $region60
        $region59: #{tpu_custom_call.1} parent=19 // pred_region
          %s740 = sand.u32 %s51, 1
          %s741 = scalar_lea.sflag [#allocation19], %s740
          %s742 = sand.u32 %s333, 1
          %s743 = scalar_lea.vmem [#allocation20], %s742
          %s745 = ssub.s32 16, 16
          %746 = vsyncadd %s741, %s745
          %s747 = smul.addr %s59, 16
          %s748 = scalar_lea.hbm %s10, %s747
          %s750 = sshll.u32 %s743, 4
          %s751 = int_to_ptr.vmem [resolvable:$true] %s750
          %753 = dma.hbm_to_vmem [thread:$0]  %s748, 16, %s751, %s741
        $region60: #{tpu_custom_call.1} parent=19 // pred_fallthru
          _
        // Predicated region
        $region61: #{tpu_custom_call.1} parent=19 // pred_check
          %p754 = pneg %p369
        $region62: #{tpu_custom_call.1} parent=19 // pred_check_branch
          %756 = sbr.rel (%p754) target = $region64
        $region63: #{tpu_custom_call.1} parent=19 // pred_region
          %s757 = sand.u32 %s51, 1
          %s758 = scalar_lea.sflag [#allocation22], %s757
          %s759 = sand.u32 %s359, 1
          %s760 = scalar_lea.vmem [#allocation21], %s759
          %s762 = ssub.s32 16, 16
          %763 = vsyncadd %s758, %s762
          %s764 = smul.addr %s59, 16
          %s765 = scalar_lea.hbm %s11, %s764
          %s767 = sshll.u32 %s760, 4
          %s768 = int_to_ptr.vmem [resolvable:$true] %s767
          %770 = dma.hbm_to_vmem [thread:$0]  %s765, 16, %s768, %s758
        $region64: #{tpu_custom_call.1} parent=19 // pred_fallthru
          _
        // Predicated region
        $region65: #{tpu_custom_call.1} parent=19 // pred_check
          %p771 = pneg %p395
        $region66: #{tpu_custom_call.1} parent=19 // pred_check_branch
          %773 = sbr.rel (%p771) target = $region68
        $region67: #{tpu_custom_call.1} parent=19 // pred_region
          %s774 = sand.u32 %s51, 1
          %s775 = scalar_lea.sflag [#allocation22], %s774
          %s776 = sand.u32 %s385, 1
          %s777 = scalar_lea.vmem [#allocation23], %s776
          %s779 = ssub.s32 16, 16
          %780 = vsyncadd %s775, %s779
          %s781 = smul.addr %s59, 16
          %s782 = scalar_lea.hbm %s12, %s781
          %s784 = sshll.u32 %s777, 4
          %s785 = int_to_ptr.vmem [resolvable:$true] %s784
          %787 = dma.hbm_to_vmem [thread:$0]  %s782, 16, %s785, %s775
        $region68: #{tpu_custom_call.1} parent=19 // pred_fallthru
          _
        // Predicated region
        $region69: #{tpu_custom_call.1} parent=19 // pred_check
          %p788 = pneg %p421
        $region70: #{tpu_custom_call.1} parent=19 // pred_check_branch
          %790 = sbr.rel (%p788) target = $region72
        $region71: #{tpu_custom_call.1} parent=19 // pred_region
          %s791 = sand.u32 %s51, 1
          %s792 = scalar_lea.sflag [#allocation25], %s791
          %s793 = sand.u32 %s411, 1
          %s794 = smul.addr %s793, 16
          %s795 = scalar_lea.vmem [#allocation24], %s794
          %s797 = ssub.s32 256, 256
          %798 = vsyncadd %s792, %s797
          %s799 = smul.addr %s59, 4
          %s800 = smul.addr %s799, 64
          %s801 = scalar_lea.hbm %s13, %s800
          %s802 = sshll.u32 %s795, 4
          %s803 = int_to_ptr.vmem [resolvable:$true] %s802
          %808 = dma.hbm_to_vmem [thread:$0]  %s801, 256, %s803, %s792, 64, 64, 4
        $region72: #{tpu_custom_call.1} parent=19 // pred_fallthru
          _
        // Predicated region
        $region73: #{tpu_custom_call.1} parent=19 // pred_check
          %p809 = pneg %p447
        $region74: #{tpu_custom_call.1} parent=19 // pred_check_branch
          %811 = sbr.rel (%p809) target = $region76
        $region75: #{tpu_custom_call.1} parent=19 // pred_region
          %s812 = sand.u32 %s51, 1
          %s813 = scalar_lea.sflag [#allocation25], %s812
          %s814 = sand.u32 %s437, 1
          %s815 = scalar_lea.vmem [#allocation26], %s814
          %s817 = ssub.s32 16, 16
          %818 = vsyncadd %s813, %s817
          %s819 = smul.addr %s59, 16
          %s820 = scalar_lea.hbm %s14, %s819
          %s822 = sshll.u32 %s815, 4
          %s823 = int_to_ptr.vmem [resolvable:$true] %s822
          %825 = dma.hbm_to_vmem [thread:$0]  %s820, 16, %s823, %s813
        $region76: #{tpu_custom_call.1} parent=19 // pred_fallthru
          _
        // Predicated region
        $region77: #{tpu_custom_call.1} parent=19 // pred_check
          %p826 = pneg %p473
        $region78: #{tpu_custom_call.1} parent=19 // pred_check_branch
          %828 = sbr.rel (%p826) target = $region80
        $region79: #{tpu_custom_call.1} parent=19 // pred_region
          %s829 = sand.u32 %s51, 1
          %s830 = scalar_lea.sflag [#allocation28], %s829
          %s831 = sand.u32 %s463, 1
          %s832 = smul.addr %s831, 32
          %s833 = scalar_lea.vmem [#allocation27], %s832
          %s835 = ssub.s32 512, 512
          %836 = vsyncadd %s830, %s835
          %s837 = smul.addr %s59, 8
          %s838 = smul.addr %s837, 64
          %s839 = scalar_lea.hbm %s15, %s838
          %s840 = sshll.u32 %s833, 4
          %s841 = int_to_ptr.vmem [resolvable:$true] %s840
          %846 = dma.hbm_to_vmem [thread:$0]  %s839, 512, %s841, %s830, 64, 64, 4
        $region80: #{tpu_custom_call.1} parent=19 // pred_fallthru
          _
        // Predicated region
        $region81: #{tpu_custom_call.1} parent=19 // pred_check
          %p847 = pneg %p499
        $region82: #{tpu_custom_call.1} parent=19 // pred_check_branch
          %849 = sbr.rel (%p847) target = $region84
        $region83: #{tpu_custom_call.1} parent=19 // pred_region
          %s850 = sand.u32 %s51, 1
          %s851 = scalar_lea.sflag [#allocation28], %s850
          %s852 = sand.u32 %s489, 1
          %s853 = scalar_lea.vmem [#allocation29], %s852
          %s855 = ssub.s32 16, 16
          %856 = vsyncadd %s851, %s855
          %s857 = smul.addr %s59, 16
          %s858 = scalar_lea.hbm %s16, %s857
          %s860 = sshll.u32 %s853, 4
          %s861 = int_to_ptr.vmem [resolvable:$true] %s860
          %863 = dma.hbm_to_vmem [thread:$0]  %s858, 16, %s861, %s851
        $region84: #{tpu_custom_call.1} parent=19 // pred_fallthru
          _
      $region20: #{tpu_custom_call.1} parent=5 // pred_fallthru
        _
      %p864 = scmp.le.s32.totalorder 1, %s51
      %p865 = scmp.lt.s32.totalorder %s51, 3
      %p866 = pnand %p864, %p865
      %p867 = pneg %p866
      // Predicated region
      $region85: #{tpu_custom_call.1} parent=5 // pred_check
        _
      $region86: #{tpu_custom_call.1} parent=5 // pred_check_branch
        %869 = sbr.rel (%p866) target = $region88
      $region87: #{tpu_custom_call.1} parent=5 // pred_region
        %s870 = ssub.s32 %s51, 1
        // Predicated region
        $region89: #{tpu_custom_call.1} parent=87 // pred_check
          %p871 = pneg %p89
        $region90: #{tpu_custom_call.1} parent=87 // pred_check_branch
          %873 = sbr.rel (%p871) target = $region92
        $region91: #{tpu_custom_call.1} parent=87 // pred_region
          %874 = dma.done [#allocation4], 256
        $region92: #{tpu_custom_call.1} parent=87 // pred_fallthru
          _
        %s875 = sand.u32 %s56, 1
        %s876 = scalar_lea.sflag [#allocation7], %s875
        %s877 = sand.u32 %s102, 1
        %s878 = scalar_lea.vmem [#allocation6], %s877
        // Predicated region
        $region93: #{tpu_custom_call.1} parent=87 // pred_check
          %p879 = pneg %p115
        $region94: #{tpu_custom_call.1} parent=87 // pred_check_branch
          %881 = sbr.rel (%p879) target = $region96
        $region95: #{tpu_custom_call.1} parent=87 // pred_region
          %882 = dma.done %s876, 16
        $region96: #{tpu_custom_call.1} parent=87 // pred_fallthru
          _
        %s883 = sand.u32 %s56, 1
        %s884 = scalar_lea.sflag [#allocation7], %s883
        %s885 = sand.u32 %s128, 1
        %s886 = scalar_lea.vmem [#allocation8], %s885
        // Predicated region
        $region97: #{tpu_custom_call.1} parent=87 // pred_check
          %p887 = pneg %p141
        $region98: #{tpu_custom_call.1} parent=87 // pred_check_branch
          %889 = sbr.rel (%p887) target = $region100
        $region99: #{tpu_custom_call.1} parent=87 // pred_region
          %890 = dma.done %s884, 16
        $region100: #{tpu_custom_call.1} parent=87 // pred_fallthru
          _
        %s891 = sand.u32 %s56, 1
        %s892 = scalar_lea.sflag [#allocation10], %s891
        %s893 = sand.u32 %s154, 1
        %s894 = smul.addr %s893, 16
        %s895 = scalar_lea.vmem [#allocation9], %s894
        // Predicated region
        $region101: #{tpu_custom_call.1} parent=87 // pred_check
          %p896 = pneg %p167
        $region102: #{tpu_custom_call.1} parent=87 // pred_check_branch
          %898 = sbr.rel (%p896) target = $region104
        $region103: #{tpu_custom_call.1} parent=87 // pred_region
          %899 = dma.done %s892, 256
        $region104: #{tpu_custom_call.1} parent=87 // pred_fallthru
          _
        %s900 = sand.u32 %s56, 1
        %s901 = scalar_lea.sflag [#allocation10], %s900
        %s902 = sand.u32 %s180, 1
        %s903 = scalar_lea.vmem [#allocation11], %s902
        // Predicated region
        $region105: #{tpu_custom_call.1} parent=87 // pred_check
          %p904 = pneg %p193
        $region106: #{tpu_custom_call.1} parent=87 // pred_check_branch
          %906 = sbr.rel (%p904) target = $region108
        $region107: #{tpu_custom_call.1} parent=87 // pred_region
          %907 = dma.done %s901, 16
        $region108: #{tpu_custom_call.1} parent=87 // pred_fallthru
          _
        %s908 = sand.u32 %s56, 1
        %s909 = scalar_lea.sflag [#allocation13], %s908
        %s910 = sand.u32 %s206, 1
        %s911 = smul.addr %s910, 16
        %s912 = scalar_lea.vmem [#allocation12], %s911
        // Predicated region
        $region109: #{tpu_custom_call.1} parent=87 // pred_check
          %p913 = pneg %p219
        $region110: #{tpu_custom_call.1} parent=87 // pred_check_branch
          %915 = sbr.rel (%p913) target = $region112
        $region111: #{tpu_custom_call.1} parent=87 // pred_region
          %916 = dma.done %s909, 256
        $region112: #{tpu_custom_call.1} parent=87 // pred_fallthru
          _
        %s917 = sand.u32 %s56, 1
        %s918 = scalar_lea.sflag [#allocation13], %s917
        %s919 = sand.u32 %s232, 1
        %s920 = scalar_lea.vmem [#allocation14], %s919
        // Predicated region
        $region113: #{tpu_custom_call.1} parent=87 // pred_check
          %p921 = pneg %p245
        $region114: #{tpu_custom_call.1} parent=87 // pred_check_branch
          %923 = sbr.rel (%p921) target = $region116
        $region115: #{tpu_custom_call.1} parent=87 // pred_region
          %924 = dma.done %s918, 16
        $region116: #{tpu_custom_call.1} parent=87 // pred_fallthru
          _
        %s925 = sand.u32 %s56, 1
        %s926 = scalar_lea.sflag [#allocation16], %s925
        %s927 = sand.u32 %s258, 1
        %s928 = smul.addr %s927, 16
        %s929 = scalar_lea.vmem [#allocation15], %s928
        // Predicated region
        $region117: #{tpu_custom_call.1} parent=87 // pred_check
          %p930 = pneg %p271
        $region118: #{tpu_custom_call.1} parent=87 // pred_check_branch
          %932 = sbr.rel (%p930) target = $region120
        $region119: #{tpu_custom_call.1} parent=87 // pred_region
          %933 = dma.done %s926, 256
        $region120: #{tpu_custom_call.1} parent=87 // pred_fallthru
          _
        %s934 = sand.u32 %s56, 1
        %s935 = scalar_lea.sflag [#allocation16], %s934
        %s936 = sand.u32 %s284, 1
        %s937 = scalar_lea.vmem [#allocation17], %s936
        // Predicated region
        $region121: #{tpu_custom_call.1} parent=87 // pred_check
          %p938 = pneg %p297
        $region122: #{tpu_custom_call.1} parent=87 // pred_check_branch
          %940 = sbr.rel (%p938) target = $region124
        $region123: #{tpu_custom_call.1} parent=87 // pred_region
          %941 = dma.done %s935, 16
        $region124: #{tpu_custom_call.1} parent=87 // pred_fallthru
          _
        %s942 = sand.u32 %s56, 1
        %s943 = scalar_lea.sflag [#allocation19], %s942
        %s944 = sand.u32 %s310, 1
        %s945 = smul.addr %s944, 16
        %s946 = scalar_lea.vmem [#allocation18], %s945
        // Predicated region
        $region125: #{tpu_custom_call.1} parent=87 // pred_check
          %p947 = pneg %p323
        $region126: #{tpu_custom_call.1} parent=87 // pred_check_branch
          %949 = sbr.rel (%p947) target = $region128
        $region127: #{tpu_custom_call.1} parent=87 // pred_region
          %950 = dma.done %s943, 256
        $region128: #{tpu_custom_call.1} parent=87 // pred_fallthru
          _
        %s951 = sand.u32 %s56, 1
        %s952 = scalar_lea.sflag [#allocation19], %s951
        %s953 = sand.u32 %s336, 1
        %s954 = scalar_lea.vmem [#allocation20], %s953
        // Predicated region
        $region129: #{tpu_custom_call.1} parent=87 // pred_check
          %p955 = pneg %p349
        $region130: #{tpu_custom_call.1} parent=87 // pred_check_branch
          %957 = sbr.rel (%p955) target = $region132
        $region131: #{tpu_custom_call.1} parent=87 // pred_region
          %958 = dma.done %s952, 16
        $region132: #{tpu_custom_call.1} parent=87 // pred_fallthru
          _
        %s959 = sand.u32 %s56, 1
        %s960 = scalar_lea.sflag [#allocation22], %s959
        %s961 = sand.u32 %s362, 1
        %s962 = scalar_lea.vmem [#allocation21], %s961
        // Predicated region
        $region133: #{tpu_custom_call.1} parent=87 // pred_check
          %p963 = pneg %p375
        $region134: #{tpu_custom_call.1} parent=87 // pred_check_branch
          %965 = sbr.rel (%p963) target = $region136
        $region135: #{tpu_custom_call.1} parent=87 // pred_region
          %966 = dma.done %s960, 16
        $region136: #{tpu_custom_call.1} parent=87 // pred_fallthru
          _
        %s967 = sand.u32 %s56, 1
        %s968 = scalar_lea.sflag [#allocation22], %s967
        %s969 = sand.u32 %s388, 1
        %s970 = scalar_lea.vmem [#allocation23], %s969
        // Predicated region
        $region137: #{tpu_custom_call.1} parent=87 // pred_check
          %p971 = pneg %p401
        $region138: #{tpu_custom_call.1} parent=87 // pred_check_branch
          %973 = sbr.rel (%p971) target = $region140
        $region139: #{tpu_custom_call.1} parent=87 // pred_region
          %974 = dma.done %s968, 16
        $region140: #{tpu_custom_call.1} parent=87 // pred_fallthru
          _
        %s975 = sand.u32 %s56, 1
        %s976 = scalar_lea.sflag [#allocation25], %s975
        %s977 = sand.u32 %s414, 1
        %s978 = smul.addr %s977, 16
        %s979 = scalar_lea.vmem [#allocation24], %s978
        // Predicated region
        $region141: #{tpu_custom_call.1} parent=87 // pred_check
          %p980 = pneg %p427
        $region142: #{tpu_custom_call.1} parent=87 // pred_check_branch
          %982 = sbr.rel (%p980) target = $region144
        $region143: #{tpu_custom_call.1} parent=87 // pred_region
          %983 = dma.done %s976, 256
        $region144: #{tpu_custom_call.1} parent=87 // pred_fallthru
          _
        %s984 = sand.u32 %s56, 1
        %s985 = scalar_lea.sflag [#allocation25], %s984
        %s986 = sand.u32 %s440, 1
        %s987 = scalar_lea.vmem [#allocation26], %s986
        // Predicated region
        $region145: #{tpu_custom_call.1} parent=87 // pred_check
          %p988 = pneg %p453
        $region146: #{tpu_custom_call.1} parent=87 // pred_check_branch
          %990 = sbr.rel (%p988) target = $region148
        $region147: #{tpu_custom_call.1} parent=87 // pred_region
          %991 = dma.done %s985, 16
        $region148: #{tpu_custom_call.1} parent=87 // pred_fallthru
          _
        %s992 = sand.u32 %s56, 1
        %s993 = scalar_lea.sflag [#allocation28], %s992
        %s994 = sand.u32 %s466, 1
        %s995 = smul.addr %s994, 32
        %s996 = scalar_lea.vmem [#allocation27], %s995
        // Predicated region
        $region149: #{tpu_custom_call.1} parent=87 // pred_check
          %p997 = pneg %p479
        $region150: #{tpu_custom_call.1} parent=87 // pred_check_branch
          %999 = sbr.rel (%p997) target = $region152
        $region151: #{tpu_custom_call.1} parent=87 // pred_region
          %1000 = dma.done %s993, 512
        $region152: #{tpu_custom_call.1} parent=87 // pred_fallthru
          _
        %s1001 = sand.u32 %s56, 1
        %s1002 = scalar_lea.sflag [#allocation28], %s1001
        %s1003 = sand.u32 %s492, 1
        %s1004 = scalar_lea.vmem [#allocation29], %s1003
        // Predicated region
        $region153: #{tpu_custom_call.1} parent=87 // pred_check
          %p1005 = pneg %p505
        $region154: #{tpu_custom_call.1} parent=87 // pred_check_branch
          %1007 = sbr.rel (%p1005) target = $region156
        $region155: #{tpu_custom_call.1} parent=87 // pred_region
          %1008 = dma.done %s1002, 16
        $region156: #{tpu_custom_call.1} parent=87 // pred_fallthru
          _
        %p1009 = pneg %p89
        %p1010 = pneg %p86
        %s1011 = sand.u32 %s56, 1
        %s1012 = scalar_lea.sflag [#allocation7], %s1011
        %s1013 = sand.u32 %s102, 1
        %s1014 = scalar_lea.vmem [#allocation6], %s1013
        %p1015 = pneg %p115
        %p1016 = pneg %p112
        %s1017 = sand.u32 %s56, 1
        %s1018 = scalar_lea.sflag [#allocation7], %s1017
        %s1019 = sand.u32 %s128, 1
        %s1020 = scalar_lea.vmem [#allocation8], %s1019
        %p1021 = pneg %p141
        %p1022 = pneg %p138
        %s1023 = sand.u32 %s56, 1
        %s1024 = scalar_lea.sflag [#allocation10], %s1023
        %s1025 = sand.u32 %s154, 1
        %s1026 = smul.addr %s1025, 16
        %s1027 = scalar_lea.vmem [#allocation9], %s1026
        %p1028 = pneg %p167
        %p1029 = pneg %p164
        %s1030 = sand.u32 %s56, 1
        %s1031 = scalar_lea.sflag [#allocation10], %s1030
        %s1032 = sand.u32 %s180, 1
        %s1033 = scalar_lea.vmem [#allocation11], %s1032
        %p1034 = pneg %p193
        %p1035 = pneg %p190
        %s1036 = sand.u32 %s56, 1
        %s1037 = scalar_lea.sflag [#allocation13], %s1036
        %s1038 = sand.u32 %s206, 1
        %s1039 = smul.addr %s1038, 16
        %s1040 = scalar_lea.vmem [#allocation12], %s1039
        %p1041 = pneg %p219
        %p1042 = pneg %p216
        %s1043 = sand.u32 %s56, 1
        %s1044 = scalar_lea.sflag [#allocation13], %s1043
        %s1045 = sand.u32 %s232, 1
        %s1046 = scalar_lea.vmem [#allocation14], %s1045
        %p1047 = pneg %p245
        %p1048 = pneg %p242
        %s1049 = sand.u32 %s56, 1
        %s1050 = scalar_lea.sflag [#allocation16], %s1049
        %s1051 = sand.u32 %s258, 1
        %s1052 = smul.addr %s1051, 16
        %s1053 = scalar_lea.vmem [#allocation15], %s1052
        %p1054 = pneg %p271
        %p1055 = pneg %p268
        %s1056 = sand.u32 %s56, 1
        %s1057 = scalar_lea.sflag [#allocation16], %s1056
        %s1058 = sand.u32 %s284, 1
        %s1059 = scalar_lea.vmem [#allocation17], %s1058
        %p1060 = pneg %p297
        %p1061 = pneg %p294
        %s1062 = sand.u32 %s56, 1
        %s1063 = scalar_lea.sflag [#allocation19], %s1062
        %s1064 = sand.u32 %s310, 1
        %s1065 = smul.addr %s1064, 16
        %s1066 = scalar_lea.vmem [#allocation18], %s1065
        %p1067 = pneg %p323
        %p1068 = pneg %p320
        %s1069 = sand.u32 %s56, 1
        %s1070 = scalar_lea.sflag [#allocation19], %s1069
        %s1071 = sand.u32 %s336, 1
        %s1072 = scalar_lea.vmem [#allocation20], %s1071
        %p1073 = pneg %p349
        %p1074 = pneg %p346
        %s1075 = sand.u32 %s56, 1
        %s1076 = scalar_lea.sflag [#allocation22], %s1075
        %s1077 = sand.u32 %s362, 1
        %s1078 = scalar_lea.vmem [#allocation21], %s1077
        %p1079 = pneg %p375
        %p1080 = pneg %p372
        %s1081 = sand.u32 %s56, 1
        %s1082 = scalar_lea.sflag [#allocation22], %s1081
        %s1083 = sand.u32 %s388, 1
        %s1084 = scalar_lea.vmem [#allocation23], %s1083
        %p1085 = pneg %p401
        %p1086 = pneg %p398
        %s1087 = sand.u32 %s56, 1
        %s1088 = scalar_lea.sflag [#allocation25], %s1087
        %s1089 = sand.u32 %s414, 1
        %s1090 = smul.addr %s1089, 16
        %s1091 = scalar_lea.vmem [#allocation24], %s1090
        %p1092 = pneg %p427
        %p1093 = pneg %p424
        %s1094 = sand.u32 %s56, 1
        %s1095 = scalar_lea.sflag [#allocation25], %s1094
        %s1096 = sand.u32 %s440, 1
        %s1097 = scalar_lea.vmem [#allocation26], %s1096
        %p1098 = pneg %p453
        %p1099 = pneg %p450
        %s1100 = sand.u32 %s56, 1
        %s1101 = scalar_lea.sflag [#allocation28], %s1100
        %s1102 = sand.u32 %s466, 1
        %s1103 = smul.addr %s1102, 32
        %s1104 = scalar_lea.vmem [#allocation27], %s1103
        %p1105 = pneg %p479
        %p1106 = pneg %p476
        %s1107 = sand.u32 %s56, 1
        %s1108 = scalar_lea.sflag [#allocation28], %s1107
        %s1109 = sand.u32 %s492, 1
        %s1110 = scalar_lea.vmem [#allocation29], %s1109
        %p1111 = pneg %p505
        %p1112 = pneg %p502
        %p1113 = pneg %p533
        %p1114 = pneg %p530
        %s1115 = sand.u32 %s520, 1
        %s1116 = scalar_lea.sflag [#allocation5], %s1115
        %s1117 = sand.u32 %s520, 1
        %s1118 = smul.addr %s1117, 16
        %s1119 = scalar_lea.vmem [#allocation30], %s1118
        %s1120 = smul.u32 2, %s60
        %s1121 = smul.u32 2, %s60
        %p1123 = scmp.eq.s32.totalorder %s61, 0
        // Predicated region
        $region157: #{tpu_custom_call.1} parent=87 // pred_check
          %p1124 = pneg %p1123
        $region158: #{tpu_custom_call.1} parent=87 // pred_check_branch
          %1126 = sbr.rel (%p1124) target = $region160
        $region159: #{tpu_custom_call.1} parent=87 // pred_region
          %v1127 = vld [vmem:[#allocation3] sm:$0xff]
          %v1128 = vld [vmem:[#allocation3 + $0x8] sm:$0xff]
          %vm1129 = vcmask 261120
          %1130 = vst.msk [vmem:[#allocation2] sm:$0xff] %vm1129, %v1127
          %1131 = vst.msk [vmem:[#allocation2 + $0x8] sm:$0xff] %vm1129, %v1128
        $region160: #{tpu_custom_call.1} parent=87 // pred_fallthru
          _
        %v1132 = vld [vmem:[#allocation2] sm:$0xff]
        %v1133 = vld [vmem:[#allocation2 + $0x8] sm:$0xff]
        %v1134 = vld [vmem:[%s878] sm:$0x1]
        %v1135 = vld [vmem:[%s886] sm:$0x1]
        %vm1136 = vcmask 261120
        %v1137 = vsel %vm1136, %v1132, 0.0
        %1138 = vadd.xlane.f32.xlu0 %v1137
        %v1139 = vpop.xlane.xlu0 %1138
        %v1140 = vsel %vm1136, %v1133, 0.0
        %1141 = vadd.xlane.f32.xlu0 %v1140
        %v1142 = vpop.xlane.xlu0 %1141
        %v1143 = vrcp.pop 32.0
        %v1144 = vmul.f32 %v1139, %v1143
        %v1145 = vmul.f32 %v1142, %v1143
        %v1146 = vsub.f32 %v1132, %v1144
        %v1147 = vsub.f32 %v1133, %v1145
        %v1148 = vmul.f32 %v1146, %v1146
        %v1149 = vmul.f32 %v1147, %v1147
        %v1150 = vsel %vm1136, %v1148, 0.0
        %1151 = vadd.xlane.f32.xlu0 %v1150
        %v1152 = vpop.xlane.xlu0 %1151
        %v1153 = vsel %vm1136, %v1149, 0.0
        %1154 = vadd.xlane.f32.xlu0 %v1153
        %v1155 = vpop.xlane.xlu0 %1154
        %v1156 = vmul.f32 %v1152, %v1143
        %v1157 = vmul.f32 %v1155, %v1143
        %v1158 = vadd.f32 %v1156, 1e-05
        %v1159 = vadd.f32 %v1157, 1e-05
        %v1160 = vrsqrt.pop %v1158
        %v1161 = vrsqrt.pop %v1159
        %v1162 = vmul.f32 %v1146, %v1160
        %v1163 = vmul.f32 %v1147, %v1161
        %v1165 = vlaneseq
        %v1166 = vshrl.u32 %v1165, 7
        %v1167 = vsub.s32 0, %v1166
        %v1168 = vrot.slane %v1134, %v1167
        %v1170 = vmul.f32 %v1162, %v1168
        %v1171 = vmul.f32 %v1163, %v1168
        %v1173 = vlaneseq
        %v1174 = vshrl.u32 %v1173, 7
        %v1175 = vsub.s32 0, %v1174
        %v1176 = vrot.slane %v1135, %v1175
        %v1178 = vadd.f32 %v1170, %v1176
        %v1179 = vadd.f32 %v1171, %v1176
        %v1180 = vld [vmem:[%s895] sm:$0xf]
        %v1181 = vld [vmem:[%s895 + $0x4] sm:$0xf]
        %v1182 = vld [vmem:[%s895 + $0x8] sm:$0xf]
        %v1183 = vld [vmem:[%s895 + $0xc] sm:$0xf]
        %v1184 = vpack.c.bf16 %v1179, %v1178
        %v1185 = vld [vmem:[%s903] sm:$0x1]
        %v1187 = vlaneseq
        %v1188 = vshrl.u32 %v1187, 7
        %v1189 = vsub.s32 0, %v1188
        %v1190 = vrot.slane %v1185, %v1189
        %v1196 = vunpack.c.l.b16 %v1180
        %v1197 = vunpack.c.l.b16 %v1181
        %v1198 = vunpack.c.l.b16 %v1182
        %v1199 = vunpack.c.l.b16 %v1183
        %v1200 = vpack.c.b16 %v1197, %v1196
        %v1201 = vpack.c.b16 %v1199, %v1198
        %v1205 = vsel %vm1136, %v1184, 0
        %1207 = vmatprep.subr.bf16.mxu0 0
        %1208 = vmatpush1.bf16.msra.mxu0 %v1200
        %1209 = vmatprep.subr.bf16.mxu0 0
        %1210 = vmatpush1.bf16.msra.mxu0 %v1201
        %1211 = vmatprep.subr.bf16.mxu0 0
        %1212 = vmatpush1.bf16.msra.mxu0 0
        %1213 = vmatprep.subr.bf16.mxu0 0
        %1214 = vmatpush1.bf16.msra.mxu0 0
        %1215 = vmatprep.subr.bf16.mxu0 0
        %1216 = vmatpush1.bf16.msra.mxu0 0
        %1217 = vmatprep.subr.bf16.mxu0 0
        %1218 = vmatpush1.bf16.msra.mxu0 0
        %1219 = vmatprep.subr.bf16.mxu0 0
        %1220 = vmatpush1.bf16.msra.mxu0 0
        %1221 = vmatprep.subr.bf16.mxu0 0
        %1222 = vmatpush1.bf16.msra.mxu0 0
        %1223 = vmatprep.subr.bf16.mxu0 0
        %1224 = vmatpush1.bf16.msra.mxu0 0
        %1225 = vmatprep.subr.bf16.mxu0 0
        %1226 = vmatpush1.bf16.msra.mxu0 0
        %1227 = vmatprep.subr.bf16.mxu0 0
        %1228 = vmatpush1.bf16.msra.mxu0 0
        %1229 = vmatprep.subr.bf16.mxu0 0
        %1230 = vmatpush1.bf16.msra.mxu0 0
        %1231 = vmatprep.subr.bf16.mxu0 0
        %1232 = vmatpush1.bf16.msra.mxu0 0
        %1233 = vmatprep.subr.bf16.mxu0 0
        %1234 = vmatpush1.bf16.msra.mxu0 0
        %1235 = vmatprep.subr.bf16.mxu0 0
        %1236 = vmatpush1.bf16.msra.mxu0 0
        %1237 = vmatprep.subr.bf16.mxu0 0
        %1238 = vmatpush1.bf16.msra.mxu0 0
        %1239 = vmatprep.mubr.bf16.mxu0 0
        %1240 = vmatmul.mubr.bf16.gmra.mrb[0].mxu0 %v1205
        %v1241 = vpop.f32.mrb[0].mxu0
        %v1242 = vadd.f32 %v1190, %v1241
        %v1243 = vpop.f32.mrb[0].mxu0
        %v1244 = vpop.f32.mrb[0].mxu0
        %v1245 = vadd.f32 %v1190, %v1244
        %v1246 = vpop.f32.mrb[0].mxu0
        %1247 = vdwg.mxu0
        %v1248 = vld [vmem:[%s912] sm:$0xf]
        %v1249 = vld [vmem:[%s912 + $0x4] sm:$0xf]
        %v1250 = vld [vmem:[%s912 + $0x8] sm:$0xf]
        %v1251 = vld [vmem:[%s912 + $0xc] sm:$0xf]
        %v1252 = vld [vmem:[%s920] sm:$0x1]
        %v1254 = vlaneseq
        %v1255 = vshrl.u32 %v1254, 7
        %v1256 = vsub.s32 0, %v1255
        %v1257 = vrot.slane %v1252, %v1256
        %v1263 = vunpack.c.l.b16 %v1248
        %v1264 = vunpack.c.l.b16 %v1249
        %v1265 = vunpack.c.l.b16 %v1250
        %v1266 = vunpack.c.l.b16 %v1251
        %v1267 = vpack.c.b16 %v1264, %v1263
        %v1268 = vpack.c.b16 %v1266, %v1265
        %1271 = vmatprep.subr.bf16.mxu0 0
        %1272 = vmatpush1.bf16.msra.mxu0 %v1267
        %1273 = vmatprep.subr.bf16.mxu0 0
        %1274 = vmatpush1.bf16.msra.mxu0 %v1268
        %1275 = vmatprep.subr.bf16.mxu0 0
        %1276 = vmatpush1.bf16.msra.mxu0 0
        %1277 = vmatprep.subr.bf16.mxu0 0
        %1278 = vmatpush1.bf16.msra.mxu0 0
        %1279 = vmatprep.subr.bf16.mxu0 0
        %1280 = vmatpush1.bf16.msra.mxu0 0
        %1281 = vmatprep.subr.bf16.mxu0 0
        %1282 = vmatpush1.bf16.msra.mxu0 0
        %1283 = vmatprep.subr.bf16.mxu0 0
        %1284 = vmatpush1.bf16.msra.mxu0 0
        %1285 = vmatprep.subr.bf16.mxu0 0
        %1286 = vmatpush1.bf16.msra.mxu0 0
        %1287 = vmatprep.subr.bf16.mxu0 0
        %1288 = vmatpush1.bf16.msra.mxu0 0
        %1289 = vmatprep.subr.bf16.mxu0 0
        %1290 = vmatpush1.bf16.msra.mxu0 0
        %1291 = vmatprep.subr.bf16.mxu0 0
        %1292 = vmatpush1.bf16.msra.mxu0 0
        %1293 = vmatprep.subr.bf16.mxu0 0
        %1294 = vmatpush1.bf16.msra.mxu0 0
        %1295 = vmatprep.subr.bf16.mxu0 0
        %1296 = vmatpush1.bf16.msra.mxu0 0
        %1297 = vmatprep.subr.bf16.mxu0 0
        %1298 = vmatpush1.bf16.msra.mxu0 0
        %1299 = vmatprep.subr.bf16.mxu0 0
        %1300 = vmatpush1.bf16.msra.mxu0 0
        %1301 = vmatprep.subr.bf16.mxu0 0
        %1302 = vmatpush1.bf16.msra.mxu0 0
        %1303 = vmatprep.mubr.bf16.mxu0 0
        %1304 = vmatmul.mubr.bf16.gmra.mrb[0].mxu0 %v1205
        %v1305 = vpop.f32.mrb[0].mxu0
        %v1306 = vadd.f32 %v1257, %v1305
        %v1307 = vpop.f32.mrb[0].mxu0
        %v1308 = vpop.f32.mrb[0].mxu0
        %v1309 = vadd.f32 %v1257, %v1308
        %v1310 = vpop.f32.mrb[0].mxu0
        %1311 = vdwg.mxu0
        %v1312 = vld [vmem:[%s929] sm:$0xf]
        %v1313 = vld [vmem:[%s929 + $0x4] sm:$0xf]
        %v1314 = vld [vmem:[%s929 + $0x8] sm:$0xf]
        %v1315 = vld [vmem:[%s929 + $0xc] sm:$0xf]
        %v1316 = vld [vmem:[%s937] sm:$0x1]
        %v1318 = vlaneseq
        %v1319 = vshrl.u32 %v1318, 7
        %v1320 = vsub.s32 0, %v1319
        %v1321 = vrot.slane %v1316, %v1320
        %v1327 = vunpack.c.l.b16 %v1312
        %v1328 = vunpack.c.l.b16 %v1313
        %v1329 = vunpack.c.l.b16 %v1314
        %v1330 = vunpack.c.l.b16 %v1315
        %v1331 = vpack.c.b16 %v1328, %v1327
        %v1332 = vpack.c.b16 %v1330, %v1329
        %1335 = vmatprep.subr.bf16.mxu0 0
        %1336 = vmatpush1.bf16.msra.mxu0 %v1331
        %1337 = vmatprep.subr.bf16.mxu0 0
        %1338 = vmatpush1.bf16.msra.mxu0 %v1332
        %1339 = vmatprep.subr.bf16.mxu0 0
        %1340 = vmatpush1.bf16.msra.mxu0 0
        %1341 = vmatprep.subr.bf16.mxu0 0
        %1342 = vmatpush1.bf16.msra.mxu0 0
        %1343 = vmatprep.subr.bf16.mxu0 0
        %1344 = vmatpush1.bf16.msra.mxu0 0
        %1345 = vmatprep.subr.bf16.mxu0 0
        %1346 = vmatpush1.bf16.msra.mxu0 0
        %1347 = vmatprep.subr.bf16.mxu0 0
        %1348 = vmatpush1.bf16.msra.mxu0 0
        %1349 = vmatprep.subr.bf16.mxu0 0
        %1350 = vmatpush1.bf16.msra.mxu0 0
        %1351 = vmatprep.subr.bf16.mxu0 0
        %1352 = vmatpush1.bf16.msra.mxu0 0
        %1353 = vmatprep.subr.bf16.mxu0 0
        %1354 = vmatpush1.bf16.msra.mxu0 0
        %1355 = vmatprep.subr.bf16.mxu0 0
        %1356 = vmatpush1.bf16.msra.mxu0 0
        %1357 = vmatprep.subr.bf16.mxu0 0
        %1358 = vmatpush1.bf16.msra.mxu0 0
        %1359 = vmatprep.subr.bf16.mxu0 0
        %1360 = vmatpush1.bf16.msra.mxu0 0
        %1361 = vmatprep.subr.bf16.mxu0 0
        %1362 = vmatpush1.bf16.msra.mxu0 0
        %1363 = vmatprep.subr.bf16.mxu0 0
        %1364 = vmatpush1.bf16.msra.mxu0 0
        %1365 = vmatprep.subr.bf16.mxu0 0
        %1366 = vmatpush1.bf16.msra.mxu0 0
        %1367 = vmatprep.mubr.bf16.mxu0 0
        %1368 = vmatmul.mubr.bf16.gmra.mrb[0].mxu0 %v1205
        %v1369 = vpop.f32.mrb[0].mxu0
        %v1370 = vadd.f32 %v1321, %v1369
        %v1371 = vpop.f32.mrb[0].mxu0
        %v1372 = vpop.f32.mrb[0].mxu0
        %v1373 = vadd.f32 %v1321, %v1372
        %v1374 = vpop.f32.mrb[0].mxu0
        %1375 = vdwg.mxu0
        %1378 = vrot.lane.b32.xlu0 %v1242, 112
        %v1379 = vpop.permute.xlu0 %1378
        %1380 = vrot.lane.b32.xlu0 %v1245, 112
        %v1381 = vpop.permute.xlu0 %1380
        %v1384 = vcombine.high %v1242, 0.0
        %v1386 = vunpack.c.l.s4 1983009808
        %v1387 = vunpack.c.0.s8 %v1386
        %v1388 = vlaneseq
        %v1389 = vshrl.u32 %v1388, 7
        %v1390 = vsub.s32 %v1387, %v1389
        %v1391 = vrot.slane %v1242, %v1390
        %v1393 = vunpack.c.l.s4 1983009808
        %v1394 = vunpack.c.0.s8 %v1393
        %v1395 = vlaneseq
        %v1396 = vshrl.u32 %v1395, 7
        %v1397 = vsub.s32 %v1394, %v1396
        %v1398 = vrot.slane %v1384, %v1397
        %v1399 = vcombine.high %v1379, 0.0
        %v1401 = vunpack.c.l.s4 1983009808
        %v1402 = vunpack.c.0.s8 %v1401
        %v1403 = vlaneseq
        %v1404 = vshrl.u32 %v1403, 7
        %v1405 = vsub.s32 %v1402, %v1404
        %v1406 = vrot.slane %v1379, %v1405
        %v1408 = vunpack.c.l.s4 1983009808
        %v1409 = vunpack.c.0.s8 %v1408
        %v1410 = vlaneseq
        %v1411 = vshrl.u32 %v1410, 7
        %v1412 = vsub.s32 %v1409, %v1411
        %v1413 = vrot.slane %v1399, %v1412
        %v1414 = vcombine.low %v1391, %v1406
        %v1415 = vcombine.high %v1391, %v1406
        %v1417 = vunpack.c.l.s4 1934713408
        %v1418 = vunpack.c.0.s8 %v1417
        %v1419 = vlaneseq
        %v1420 = vshrl.u32 %v1419, 7
        %v1421 = vsub.s32 %v1418, %v1420
        %v1422 = vrot.slane %v1414, %v1421
        %v1424 = vunpack.c.l.s4 1934713408
        %v1425 = vunpack.c.0.s8 %v1424
        %v1426 = vlaneseq
        %v1427 = vshrl.u32 %v1426, 7
        %v1428 = vsub.s32 %v1425, %v1427
        %v1429 = vrot.slane %v1415, %v1428
        %v1430 = vcombine.low %v1398, %v1413
        %v1431 = vcombine.high %v1398, %v1413
        %v1433 = vunpack.c.l.s4 1934713408
        %v1434 = vunpack.c.0.s8 %v1433
        %v1435 = vlaneseq
        %v1436 = vshrl.u32 %v1435, 7
        %v1437 = vsub.s32 %v1434, %v1436
        %v1438 = vrot.slane %v1430, %v1437
        %v1440 = vunpack.c.l.s4 1934713408
        %v1441 = vunpack.c.0.s8 %v1440
        %v1442 = vlaneseq
        %v1443 = vshrl.u32 %v1442, 7
        %v1444 = vsub.s32 %v1441, %v1443
        %v1445 = vrot.slane %v1431, %v1444
        %v1446 = vcombine.high %v1422, 0.0
        %v1447 = vcombine.high %v1429, 0.0
        %v1448 = vcombine.high %v1438, 0.0
        %v1449 = vcombine.high %v1445, 0.0
        %v1450 = vcombine.high %v1245, 0.0
        %v1452 = vunpack.c.l.s4 1983009808
        %v1453 = vunpack.c.0.s8 %v1452
        %v1454 = vlaneseq
        %v1455 = vshrl.u32 %v1454, 7
        %v1456 = vsub.s32 %v1453, %v1455
        %v1457 = vrot.slane %v1245, %v1456
        %v1459 = vunpack.c.l.s4 1983009808
        %v1460 = vunpack.c.0.s8 %v1459
        %v1461 = vlaneseq
        %v1462 = vshrl.u32 %v1461, 7
        %v1463 = vsub.s32 %v1460, %v1462
        %v1464 = vrot.slane %v1450, %v1463
        %v1465 = vcombine.high %v1381, 0.0
        %v1467 = vunpack.c.l.s4 1983009808
        %v1468 = vunpack.c.0.s8 %v1467
        %v1469 = vlaneseq
        %v1470 = vshrl.u32 %v1469, 7
        %v1471 = vsub.s32 %v1468, %v1470
        %v1472 = vrot.slane %v1381, %v1471
        %v1474 = vunpack.c.l.s4 1983009808
        %v1475 = vunpack.c.0.s8 %v1474
        %v1476 = vlaneseq
        %v1477 = vshrl.u32 %v1476, 7
        %v1478 = vsub.s32 %v1475, %v1477
        %v1479 = vrot.slane %v1465, %v1478
        %v1480 = vcombine.low %v1457, %v1472
        %v1481 = vcombine.high %v1457, %v1472
        %v1483 = vunpack.c.l.s4 1934713408
        %v1484 = vunpack.c.0.s8 %v1483
        %v1485 = vlaneseq
        %v1486 = vshrl.u32 %v1485, 7
        %v1487 = vsub.s32 %v1484, %v1486
        %v1488 = vrot.slane %v1480, %v1487
        %v1490 = vunpack.c.l.s4 1934713408
        %v1491 = vunpack.c.0.s8 %v1490
        %v1492 = vlaneseq
        %v1493 = vshrl.u32 %v1492, 7
        %v1494 = vsub.s32 %v1491, %v1493
        %v1495 = vrot.slane %v1481, %v1494
        %v1496 = vcombine.low %v1464, %v1479
        %v1497 = vcombine.high %v1464, %v1479
        %v1499 = vunpack.c.l.s4 1934713408
        %v1500 = vunpack.c.0.s8 %v1499
        %v1501 = vlaneseq
        %v1502 = vshrl.u32 %v1501, 7
        %v1503 = vsub.s32 %v1500, %v1502
        %v1504 = vrot.slane %v1496, %v1503
        %v1506 = vunpack.c.l.s4 1934713408
        %v1507 = vunpack.c.0.s8 %v1506
        %v1508 = vlaneseq
        %v1509 = vshrl.u32 %v1508, 7
        %v1510 = vsub.s32 %v1507, %v1509
        %v1511 = vrot.slane %v1497, %v1510
        %v1512 = vcombine.high %v1488, 0.0
        %v1513 = vcombine.high %v1495, 0.0
        %v1514 = vcombine.high %v1504, 0.0
        %v1515 = vcombine.high %v1511, 0.0
        %v1516 = vcombine.low %v1422, %v1429
        %v1518 = vunpack.c.l.s4 1983009808
        %v1519 = vunpack.c.0.s8 %v1518
        %v1520 = vlaneseq
        %v1521 = vshrl.u32 %v1520, 7
        %v1522 = vsub.s32 %v1519, %v1521
        %v1523 = vrot.slane %v1516, %v1522
        %v1524 = vcombine.low %v1446, %v1447
        %v1526 = vunpack.c.l.s4 1983009808
        %v1527 = vunpack.c.0.s8 %v1526
        %v1528 = vlaneseq
        %v1529 = vshrl.u32 %v1528, 7
        %v1530 = vsub.s32 %v1527, %v1529
        %v1531 = vrot.slane %v1524, %v1530
        %v1532 = vcombine.low %v1438, %v1445
        %v1534 = vunpack.c.l.s4 1983009808
        %v1535 = vunpack.c.0.s8 %v1534
        %v1536 = vlaneseq
        %v1537 = vshrl.u32 %v1536, 7
        %v1538 = vsub.s32 %v1535, %v1537
        %v1539 = vrot.slane %v1532, %v1538
        %v1540 = vcombine.low %v1448, %v1449
        %v1542 = vunpack.c.l.s4 1983009808
        %v1543 = vunpack.c.0.s8 %v1542
        %v1544 = vlaneseq
        %v1545 = vshrl.u32 %v1544, 7
        %v1546 = vsub.s32 %v1543, %v1545
        %v1547 = vrot.slane %v1540, %v1546
        %v1548 = vcombine.low %v1523, %v1531
        %v1550 = vunpack.c.l.s4 1934713408
        %v1551 = vunpack.c.0.s8 %v1550
        %v1552 = vlaneseq
        %v1553 = vshrl.u32 %v1552, 7
        %v1554 = vsub.s32 %v1551, %v1553
        %v1555 = vrot.slane %v1548, %v1554
        %v1556 = vcombine.low %v1539, %v1547
        %v1558 = vunpack.c.l.s4 1934713408
        %v1559 = vunpack.c.0.s8 %v1558
        %v1560 = vlaneseq
        %v1561 = vshrl.u32 %v1560, 7
        %v1562 = vsub.s32 %v1559, %v1561
        %v1563 = vrot.slane %v1556, %v1562
        %v1564 = vcombine.low %v1555, %v1563
        %v1565 = vcombine.high %v1555, %v1563
        %v1566 = vcombine.low %v1488, %v1495
        %v1568 = vunpack.c.l.s4 1983009808
        %v1569 = vunpack.c.0.s8 %v1568
        %v1570 = vlaneseq
        %v1571 = vshrl.u32 %v1570, 7
        %v1572 = vsub.s32 %v1569, %v1571
        %v1573 = vrot.slane %v1566, %v1572
        %v1574 = vcombine.low %v1512, %v1513
        %v1576 = vunpack.c.l.s4 1983009808
        %v1577 = vunpack.c.0.s8 %v1576
        %v1578 = vlaneseq
        %v1579 = vshrl.u32 %v1578, 7
        %v1580 = vsub.s32 %v1577, %v1579
        %v1581 = vrot.slane %v1574, %v1580
        %v1582 = vcombine.low %v1504, %v1511
        %v1584 = vunpack.c.l.s4 1983009808
        %v1585 = vunpack.c.0.s8 %v1584
        %v1586 = vlaneseq
        %v1587 = vshrl.u32 %v1586, 7
        %v1588 = vsub.s32 %v1585, %v1587
        %v1589 = vrot.slane %v1582, %v1588
        %v1590 = vcombine.low %v1514, %v1515
        %v1592 = vunpack.c.l.s4 1983009808
        %v1593 = vunpack.c.0.s8 %v1592
        %v1594 = vlaneseq
        %v1595 = vshrl.u32 %v1594, 7
        %v1596 = vsub.s32 %v1593, %v1595
        %v1597 = vrot.slane %v1590, %v1596
        %v1598 = vcombine.low %v1573, %v1581
        %v1600 = vunpack.c.l.s4 1934713408
        %v1601 = vunpack.c.0.s8 %v1600
        %v1602 = vlaneseq
        %v1603 = vshrl.u32 %v1602, 7
        %v1604 = vsub.s32 %v1601, %v1603
        %v1605 = vrot.slane %v1598, %v1604
        %v1606 = vcombine.low %v1589, %v1597
        %v1608 = vunpack.c.l.s4 1934713408
        %v1609 = vunpack.c.0.s8 %v1608
        %v1610 = vlaneseq
        %v1611 = vshrl.u32 %v1610, 7
        %v1612 = vsub.s32 %v1609, %v1611
        %v1613 = vrot.slane %v1606, %v1612
        %v1614 = vcombine.low %v1605, %v1613
        %v1615 = vcombine.high %v1605, %v1613
        %1618 = vrot.lane.b32.xlu0 %v1306, 112
        %v1619 = vpop.permute.xlu0 %1618
        %1620 = vrot.lane.b32.xlu0 %v1309, 112
        %v1621 = vpop.permute.xlu0 %1620
        %v1624 = vcombine.high %v1306, 0.0
        %v1626 = vunpack.c.l.s4 1983009808
        %v1627 = vunpack.c.0.s8 %v1626
        %v1628 = vlaneseq
        %v1629 = vshrl.u32 %v1628, 7
        %v1630 = vsub.s32 %v1627, %v1629
        %v1631 = vrot.slane %v1306, %v1630
        %v1633 = vunpack.c.l.s4 1983009808
        %v1634 = vunpack.c.0.s8 %v1633
        %v1635 = vlaneseq
        %v1636 = vshrl.u32 %v1635, 7
        %v1637 = vsub.s32 %v1634, %v1636
        %v1638 = vrot.slane %v1624, %v1637
        %v1639 = vcombine.high %v1619, 0.0
        %v1641 = vunpack.c.l.s4 1983009808
        %v1642 = vunpack.c.0.s8 %v1641
        %v1643 = vlaneseq
        %v1644 = vshrl.u32 %v1643, 7
        %v1645 = vsub.s32 %v1642, %v1644
        %v1646 = vrot.slane %v1619, %v1645
        %v1648 = vunpack.c.l.s4 1983009808
        %v1649 = vunpack.c.0.s8 %v1648
        %v1650 = vlaneseq
        %v1651 = vshrl.u32 %v1650, 7
        %v1652 = vsub.s32 %v1649, %v1651
        %v1653 = vrot.slane %v1639, %v1652
        %v1654 = vcombine.low %v1631, %v1646
        %v1655 = vcombine.high %v1631, %v1646
        %v1657 = vunpack.c.l.s4 1934713408
        %v1658 = vunpack.c.0.s8 %v1657
        %v1659 = vlaneseq
        %v1660 = vshrl.u32 %v1659, 7
        %v1661 = vsub.s32 %v1658, %v1660
        %v1662 = vrot.slane %v1654, %v1661
        %v1664 = vunpack.c.l.s4 1934713408
        %v1665 = vunpack.c.0.s8 %v1664
        %v1666 = vlaneseq
        %v1667 = vshrl.u32 %v1666, 7
        %v1668 = vsub.s32 %v1665, %v1667
        %v1669 = vrot.slane %v1655, %v1668
        %v1670 = vcombine.low %v1638, %v1653
        %v1671 = vcombine.high %v1638, %v1653
        %v1673 = vunpack.c.l.s4 1934713408
        %v1674 = vunpack.c.0.s8 %v1673
        %v1675 = vlaneseq
        %v1676 = vshrl.u32 %v1675, 7
        %v1677 = vsub.s32 %v1674, %v1676
        %v1678 = vrot.slane %v1670, %v1677
        %v1680 = vunpack.c.l.s4 1934713408
        %v1681 = vunpack.c.0.s8 %v1680
        %v1682 = vlaneseq
        %v1683 = vshrl.u32 %v1682, 7
        %v1684 = vsub.s32 %v1681, %v1683
        %v1685 = vrot.slane %v1671, %v1684
        %v1686 = vcombine.high %v1662, 0.0
        %v1687 = vcombine.high %v1669, 0.0
        %v1688 = vcombine.high %v1678, 0.0
        %v1689 = vcombine.high %v1685, 0.0
        %v1690 = vcombine.high %v1309, 0.0
        %v1692 = vunpack.c.l.s4 1983009808
        %v1693 = vunpack.c.0.s8 %v1692
        %v1694 = vlaneseq
        %v1695 = vshrl.u32 %v1694, 7
        %v1696 = vsub.s32 %v1693, %v1695
        %v1697 = vrot.slane %v1309, %v1696
        %v1699 = vunpack.c.l.s4 1983009808
        %v1700 = vunpack.c.0.s8 %v1699
        %v1701 = vlaneseq
        %v1702 = vshrl.u32 %v1701, 7
        %v1703 = vsub.s32 %v1700, %v1702
        %v1704 = vrot.slane %v1690, %v1703
        %v1705 = vcombine.high %v1621, 0.0
        %v1707 = vunpack.c.l.s4 1983009808
        %v1708 = vunpack.c.0.s8 %v1707
        %v1709 = vlaneseq
        %v1710 = vshrl.u32 %v1709, 7
        %v1711 = vsub.s32 %v1708, %v1710
        %v1712 = vrot.slane %v1621, %v1711
        %v1714 = vunpack.c.l.s4 1983009808
        %v1715 = vunpack.c.0.s8 %v1714
        %v1716 = vlaneseq
        %v1717 = vshrl.u32 %v1716, 7
        %v1718 = vsub.s32 %v1715, %v1717
        %v1719 = vrot.slane %v1705, %v1718
        %v1720 = vcombine.low %v1697, %v1712
        %v1721 = vcombine.high %v1697, %v1712
        %v1723 = vunpack.c.l.s4 1934713408
        %v1724 = vunpack.c.0.s8 %v1723
        %v1725 = vlaneseq
        %v1726 = vshrl.u32 %v1725, 7
        %v1727 = vsub.s32 %v1724, %v1726
        %v1728 = vrot.slane %v1720, %v1727
        %v1730 = vunpack.c.l.s4 1934713408
        %v1731 = vunpack.c.0.s8 %v1730
        %v1732 = vlaneseq
        %v1733 = vshrl.u32 %v1732, 7
        %v1734 = vsub.s32 %v1731, %v1733
        %v1735 = vrot.slane %v1721, %v1734
        %v1736 = vcombine.low %v1704, %v1719
        %v1737 = vcombine.high %v1704, %v1719
        %v1739 = vunpack.c.l.s4 1934713408
        %v1740 = vunpack.c.0.s8 %v1739
        %v1741 = vlaneseq
        %v1742 = vshrl.u32 %v1741, 7
        %v1743 = vsub.s32 %v1740, %v1742
        %v1744 = vrot.slane %v1736, %v1743
        %v1746 = vunpack.c.l.s4 1934713408
        %v1747 = vunpack.c.0.s8 %v1746
        %v1748 = vlaneseq
        %v1749 = vshrl.u32 %v1748, 7
        %v1750 = vsub.s32 %v1747, %v1749
        %v1751 = vrot.slane %v1737, %v1750
        %v1752 = vcombine.high %v1728, 0.0
        %v1753 = vcombine.high %v1735, 0.0
        %v1754 = vcombine.high %v1744, 0.0
        %v1755 = vcombine.high %v1751, 0.0
        %v1756 = vcombine.low %v1662, %v1669
        %v1758 = vunpack.c.l.s4 1983009808
        %v1759 = vunpack.c.0.s8 %v1758
        %v1760 = vlaneseq
        %v1761 = vshrl.u32 %v1760, 7
        %v1762 = vsub.s32 %v1759, %v1761
        %v1763 = vrot.slane %v1756, %v1762
        %v1764 = vcombine.low %v1686, %v1687
        %v1766 = vunpack.c.l.s4 1983009808
        %v1767 = vunpack.c.0.s8 %v1766
        %v1768 = vlaneseq
        %v1769 = vshrl.u32 %v1768, 7
        %v1770 = vsub.s32 %v1767, %v1769
        %v1771 = vrot.slane %v1764, %v1770
        %v1772 = vcombine.low %v1678, %v1685
        %v1774 = vunpack.c.l.s4 1983009808
        %v1775 = vunpack.c.0.s8 %v1774
        %v1776 = vlaneseq
        %v1777 = vshrl.u32 %v1776, 7
        %v1778 = vsub.s32 %v1775, %v1777
        %v1779 = vrot.slane %v1772, %v1778
        %v1780 = vcombine.low %v1688, %v1689
        %v1782 = vunpack.c.l.s4 1983009808
        %v1783 = vunpack.c.0.s8 %v1782
        %v1784 = vlaneseq
        %v1785 = vshrl.u32 %v1784, 7
        %v1786 = vsub.s32 %v1783, %v1785
        %v1787 = vrot.slane %v1780, %v1786
        %v1788 = vcombine.low %v1763, %v1771
        %v1790 = vunpack.c.l.s4 1934713408
        %v1791 = vunpack.c.0.s8 %v1790
        %v1792 = vlaneseq
        %v1793 = vshrl.u32 %v1792, 7
        %v1794 = vsub.s32 %v1791, %v1793
        %v1795 = vrot.slane %v1788, %v1794
        %v1796 = vcombine.low %v1779, %v1787
        %v1798 = vunpack.c.l.s4 1934713408
        %v1799 = vunpack.c.0.s8 %v1798
        %v1800 = vlaneseq
        %v1801 = vshrl.u32 %v1800, 7
        %v1802 = vsub.s32 %v1799, %v1801
        %v1803 = vrot.slane %v1796, %v1802
        %v1804 = vcombine.low %v1795, %v1803
        %v1805 = vcombine.high %v1795, %v1803
        %v1806 = vcombine.low %v1728, %v1735
        %v1808 = vunpack.c.l.s4 1983009808
        %v1809 = vunpack.c.0.s8 %v1808
        %v1810 = vlaneseq
        %v1811 = vshrl.u32 %v1810, 7
        %v1812 = vsub.s32 %v1809, %v1811
        %v1813 = vrot.slane %v1806, %v1812
        %v1814 = vcombine.low %v1752, %v1753
        %v1816 = vunpack.c.l.s4 1983009808
        %v1817 = vunpack.c.0.s8 %v1816
        %v1818 = vlaneseq
        %v1819 = vshrl.u32 %v1818, 7
        %v1820 = vsub.s32 %v1817, %v1819
        %v1821 = vrot.slane %v1814, %v1820
        %v1822 = vcombine.low %v1744, %v1751
        %v1824 = vunpack.c.l.s4 1983009808
        %v1825 = vunpack.c.0.s8 %v1824
        %v1826 = vlaneseq
        %v1827 = vshrl.u32 %v1826, 7
        %v1828 = vsub.s32 %v1825, %v1827
        %v1829 = vrot.slane %v1822, %v1828
        %v1830 = vcombine.low %v1754, %v1755
        %v1832 = vunpack.c.l.s4 1983009808
        %v1833 = vunpack.c.0.s8 %v1832
        %v1834 = vlaneseq
        %v1835 = vshrl.u32 %v1834, 7
        %v1836 = vsub.s32 %v1833, %v1835
        %v1837 = vrot.slane %v1830, %v1836
        %v1838 = vcombine.low %v1813, %v1821
        %v1840 = vunpack.c.l.s4 1934713408
        %v1841 = vunpack.c.0.s8 %v1840
        %v1842 = vlaneseq
        %v1843 = vshrl.u32 %v1842, 7
        %v1844 = vsub.s32 %v1841, %v1843
        %v1845 = vrot.slane %v1838, %v1844
        %v1846 = vcombine.low %v1829, %v1837
        %v1848 = vunpack.c.l.s4 1934713408
        %v1849 = vunpack.c.0.s8 %v1848
        %v1850 = vlaneseq
        %v1851 = vshrl.u32 %v1850, 7
        %v1852 = vsub.s32 %v1849, %v1851
        %v1853 = vrot.slane %v1846, %v1852
        %v1854 = vcombine.low %v1845, %v1853
        %v1855 = vcombine.high %v1845, %v1853
        %1858 = vrot.lane.b32.xlu0 %v1370, 112
        %v1859 = vpop.permute.xlu0 %1858
        %1860 = vrot.lane.b32.xlu0 %v1373, 112
        %v1861 = vpop.permute.xlu0 %1860
        %v1864 = vcombine.high %v1370, 0.0
        %v1866 = vunpack.c.l.s4 1983009808
        %v1867 = vunpack.c.0.s8 %v1866
        %v1868 = vlaneseq
        %v1869 = vshrl.u32 %v1868, 7
        %v1870 = vsub.s32 %v1867, %v1869
        %v1871 = vrot.slane %v1370, %v1870
        %v1873 = vunpack.c.l.s4 1983009808
        %v1874 = vunpack.c.0.s8 %v1873
        %v1875 = vlaneseq
        %v1876 = vshrl.u32 %v1875, 7
        %v1877 = vsub.s32 %v1874, %v1876
        %v1878 = vrot.slane %v1864, %v1877
        %v1879 = vcombine.high %v1859, 0.0
        %v1881 = vunpack.c.l.s4 1983009808
        %v1882 = vunpack.c.0.s8 %v1881
        %v1883 = vlaneseq
        %v1884 = vshrl.u32 %v1883, 7
        %v1885 = vsub.s32 %v1882, %v1884
        %v1886 = vrot.slane %v1859, %v1885
        %v1888 = vunpack.c.l.s4 1983009808
        %v1889 = vunpack.c.0.s8 %v1888
        %v1890 = vlaneseq
        %v1891 = vshrl.u32 %v1890, 7
        %v1892 = vsub.s32 %v1889, %v1891
        %v1893 = vrot.slane %v1879, %v1892
        %v1894 = vcombine.low %v1871, %v1886
        %v1895 = vcombine.high %v1871, %v1886
        %v1897 = vunpack.c.l.s4 1934713408
        %v1898 = vunpack.c.0.s8 %v1897
        %v1899 = vlaneseq
        %v1900 = vshrl.u32 %v1899, 7
        %v1901 = vsub.s32 %v1898, %v1900
        %v1902 = vrot.slane %v1894, %v1901
        %v1904 = vunpack.c.l.s4 1934713408
        %v1905 = vunpack.c.0.s8 %v1904
        %v1906 = vlaneseq
        %v1907 = vshrl.u32 %v1906, 7
        %v1908 = vsub.s32 %v1905, %v1907
        %v1909 = vrot.slane %v1895, %v1908
        %v1910 = vcombine.low %v1878, %v1893
        %v1911 = vcombine.high %v1878, %v1893
        %v1913 = vunpack.c.l.s4 1934713408
        %v1914 = vunpack.c.0.s8 %v1913
        %v1915 = vlaneseq
        %v1916 = vshrl.u32 %v1915, 7
        %v1917 = vsub.s32 %v1914, %v1916
        %v1918 = vrot.slane %v1910, %v1917
        %v1920 = vunpack.c.l.s4 1934713408
        %v1921 = vunpack.c.0.s8 %v1920
        %v1922 = vlaneseq
        %v1923 = vshrl.u32 %v1922, 7
        %v1924 = vsub.s32 %v1921, %v1923
        %v1925 = vrot.slane %v1911, %v1924
        %v1926 = vcombine.high %v1902, 0.0
        %v1927 = vcombine.high %v1909, 0.0
        %v1928 = vcombine.high %v1918, 0.0
        %v1929 = vcombine.high %v1925, 0.0
        %v1930 = vcombine.high %v1373, 0.0
        %v1932 = vunpack.c.l.s4 1983009808
        %v1933 = vunpack.c.0.s8 %v1932
        %v1934 = vlaneseq
        %v1935 = vshrl.u32 %v1934, 7
        %v1936 = vsub.s32 %v1933, %v1935
        %v1937 = vrot.slane %v1373, %v1936
        %v1939 = vunpack.c.l.s4 1983009808
        %v1940 = vunpack.c.0.s8 %v1939
        %v1941 = vlaneseq
        %v1942 = vshrl.u32 %v1941, 7
        %v1943 = vsub.s32 %v1940, %v1942
        %v1944 = vrot.slane %v1930, %v1943
        %v1945 = vcombine.high %v1861, 0.0
        %v1947 = vunpack.c.l.s4 1983009808
        %v1948 = vunpack.c.0.s8 %v1947
        %v1949 = vlaneseq
        %v1950 = vshrl.u32 %v1949, 7
        %v1951 = vsub.s32 %v1948, %v1950
        %v1952 = vrot.slane %v1861, %v1951
        %v1954 = vunpack.c.l.s4 1983009808
        %v1955 = vunpack.c.0.s8 %v1954
        %v1956 = vlaneseq
        %v1957 = vshrl.u32 %v1956, 7
        %v1958 = vsub.s32 %v1955, %v1957
        %v1959 = vrot.slane %v1945, %v1958
        %v1960 = vcombine.low %v1937, %v1952
        %v1961 = vcombine.high %v1937, %v1952
        %v1963 = vunpack.c.l.s4 1934713408
        %v1964 = vunpack.c.0.s8 %v1963
        %v1965 = vlaneseq
        %v1966 = vshrl.u32 %v1965, 7
        %v1967 = vsub.s32 %v1964, %v1966
        %v1968 = vrot.slane %v1960, %v1967
        %v1970 = vunpack.c.l.s4 1934713408
        %v1971 = vunpack.c.0.s8 %v1970
        %v1972 = vlaneseq
        %v1973 = vshrl.u32 %v1972, 7
        %v1974 = vsub.s32 %v1971, %v1973
        %v1975 = vrot.slane %v1961, %v1974
        %v1976 = vcombine.low %v1944, %v1959
        %v1977 = vcombine.high %v1944, %v1959
        %v1979 = vunpack.c.l.s4 1934713408
        %v1980 = vunpack.c.0.s8 %v1979
        %v1981 = vlaneseq
        %v1982 = vshrl.u32 %v1981, 7
        %v1983 = vsub.s32 %v1980, %v1982
        %v1984 = vrot.slane %v1976, %v1983
        %v1986 = vunpack.c.l.s4 1934713408
        %v1987 = vunpack.c.0.s8 %v1986
        %v1988 = vlaneseq
        %v1989 = vshrl.u32 %v1988, 7
        %v1990 = vsub.s32 %v1987, %v1989
        %v1991 = vrot.slane %v1977, %v1990
        %v1992 = vcombine.high %v1968, 0.0
        %v1993 = vcombine.high %v1975, 0.0
        %v1994 = vcombine.high %v1984, 0.0
        %v1995 = vcombine.high %v1991, 0.0
        %v1996 = vcombine.low %v1902, %v1909
        %v1998 = vunpack.c.l.s4 1983009808
        %v1999 = vunpack.c.0.s8 %v1998
        %v2000 = vlaneseq
        %v2001 = vshrl.u32 %v2000, 7
        %v2002 = vsub.s32 %v1999, %v2001
        %v2003 = vrot.slane %v1996, %v2002
        %v2004 = vcombine.low %v1926, %v1927
        %v2006 = vunpack.c.l.s4 1983009808
        %v2007 = vunpack.c.0.s8 %v2006
        %v2008 = vlaneseq
        %v2009 = vshrl.u32 %v2008, 7
        %v2010 = vsub.s32 %v2007, %v2009
        %v2011 = vrot.slane %v2004, %v2010
        %v2012 = vcombine.low %v1918, %v1925
        %v2014 = vunpack.c.l.s4 1983009808
        %v2015 = vunpack.c.0.s8 %v2014
        %v2016 = vlaneseq
        %v2017 = vshrl.u32 %v2016, 7
        %v2018 = vsub.s32 %v2015, %v2017
        %v2019 = vrot.slane %v2012, %v2018
        %v2020 = vcombine.low %v1928, %v1929
        %v2022 = vunpack.c.l.s4 1983009808
        %v2023 = vunpack.c.0.s8 %v2022
        %v2024 = vlaneseq
        %v2025 = vshrl.u32 %v2024, 7
        %v2026 = vsub.s32 %v2023, %v2025
        %v2027 = vrot.slane %v2020, %v2026
        %v2028 = vcombine.low %v2003, %v2011
        %v2030 = vunpack.c.l.s4 1934713408
        %v2031 = vunpack.c.0.s8 %v2030
        %v2032 = vlaneseq
        %v2033 = vshrl.u32 %v2032, 7
        %v2034 = vsub.s32 %v2031, %v2033
        %v2035 = vrot.slane %v2028, %v2034
        %v2036 = vcombine.low %v2019, %v2027
        %v2038 = vunpack.c.l.s4 1934713408
        %v2039 = vunpack.c.0.s8 %v2038
        %v2040 = vlaneseq
        %v2041 = vshrl.u32 %v2040, 7
        %v2042 = vsub.s32 %v2039, %v2041
        %v2043 = vrot.slane %v2036, %v2042
        %v2044 = vcombine.low %v2035, %v2043
        %v2045 = vcombine.high %v2035, %v2043
        %v2046 = vcombine.low %v1968, %v1975
        %v2048 = vunpack.c.l.s4 1983009808
        %v2049 = vunpack.c.0.s8 %v2048
        %v2050 = vlaneseq
        %v2051 = vshrl.u32 %v2050, 7
        %v2052 = vsub.s32 %v2049, %v2051
        %v2053 = vrot.slane %v2046, %v2052
        %v2054 = vcombine.low %v1992, %v1993
        %v2056 = vunpack.c.l.s4 1983009808
        %v2057 = vunpack.c.0.s8 %v2056
        %v2058 = vlaneseq
        %v2059 = vshrl.u32 %v2058, 7
        %v2060 = vsub.s32 %v2057, %v2059
        %v2061 = vrot.slane %v2054, %v2060
        %v2062 = vcombine.low %v1984, %v1991
        %v2064 = vunpack.c.l.s4 1983009808
        %v2065 = vunpack.c.0.s8 %v2064
        %v2066 = vlaneseq
        %v2067 = vshrl.u32 %v2066, 7
        %v2068 = vsub.s32 %v2065, %v2067
        %v2069 = vrot.slane %v2062, %v2068
        %v2070 = vcombine.low %v1994, %v1995
        %v2072 = vunpack.c.l.s4 1983009808
        %v2073 = vunpack.c.0.s8 %v2072
        %v2074 = vlaneseq
        %v2075 = vshrl.u32 %v2074, 7
        %v2076 = vsub.s32 %v2073, %v2075
        %v2077 = vrot.slane %v2070, %v2076
        %v2078 = vcombine.low %v2053, %v2061
        %v2080 = vunpack.c.l.s4 1934713408
        %v2081 = vunpack.c.0.s8 %v2080
        %v2082 = vlaneseq
        %v2083 = vshrl.u32 %v2082, 7
        %v2084 = vsub.s32 %v2081, %v2083
        %v2085 = vrot.slane %v2078, %v2084
        %v2086 = vcombine.low %v2069, %v2077
        %v2088 = vunpack.c.l.s4 1934713408
        %v2089 = vunpack.c.0.s8 %v2088
        %v2090 = vlaneseq
        %v2091 = vshrl.u32 %v2090, 7
        %v2092 = vsub.s32 %v2089, %v2091
        %v2093 = vrot.slane %v2086, %v2092
        %v2094 = vcombine.low %v2085, %v2093
        %v2095 = vcombine.high %v2085, %v2093
        %v2096 = vpack.c.bf16 %v1564, %v1564
        %v2097 = vpack.c.bf16 %v1565, %v1565
        %v2098 = vpack.c.bf16 %v1614, %v1614
        %v2099 = vpack.c.bf16 %v1615, %v1615
        %v2100 = vpack.c.bf16 %v1804, %v1804
        %v2101 = vpack.c.bf16 %v1805, %v1805
        %v2102 = vpack.c.bf16 %v1854, %v1854
        %v2103 = vpack.c.bf16 %v1855, %v1855
        %vm2104 = vcmask 130048
        %v2106 = vsel %vm2104, %v2096, 0
        %v2109 = vsel %vm2104, %v2100, 0
        %2111 = vmatprep.subr.bf16.mxu0 0
        %2112 = vmatpush1.bf16.xpose.msra.mxu0 %v2109
        %2113 = vmatprep.subr.bf16.mxu0 0
        %2114 = vmatpush1.bf16.xpose.msra.mxu0 0
        %2115 = vmatprep.subr.bf16.mxu0 0
        %2116 = vmatpush1.bf16.xpose.msra.mxu0 0
        %2117 = vmatprep.subr.bf16.mxu0 0
        %2118 = vmatpush1.bf16.xpose.msra.mxu0 0
        %2119 = vmatprep.subr.bf16.mxu0 0
        %2120 = vmatpush1.bf16.xpose.msra.mxu0 0
        %2121 = vmatprep.subr.bf16.mxu0 0
        %2122 = vmatpush1.bf16.xpose.msra.mxu0 0
        %2123 = vmatprep.subr.bf16.mxu0 0
        %2124 = vmatpush1.bf16.xpose.msra.mxu0 0
        %2125 = vmatprep.subr.bf16.mxu0 0
        %2126 = vmatpush1.bf16.xpose.msra.mxu0 0
        %2127 = vmatprep.subr.bf16.mxu0 0
        %2128 = vmatpush1.bf16.xpose.msra.mxu0 0
        %2129 = vmatprep.subr.bf16.mxu0 0
        %2130 = vmatpush1.bf16.xpose.msra.mxu0 0
        %2131 = vmatprep.subr.bf16.mxu0 0
        %2132 = vmatpush1.bf16.xpose.msra.mxu0 0
        %2133 = vmatprep.subr.bf16.mxu0 0
        %2134 = vmatpush1.bf16.xpose.msra.mxu0 0
        %2135 = vmatprep.subr.bf16.mxu0 0
        %2136 = vmatpush1.bf16.xpose.msra.mxu0 0
        %2137 = vmatprep.subr.bf16.mxu0 0
        %2138 = vmatpush1.bf16.xpose.msra.mxu0 0
        %2139 = vmatprep.subr.bf16.mxu0 0
        %2140 = vmatpush1.bf16.xpose.msra.mxu0 0
        %2141 = vmatprep.subr.bf16.mxu0 0
        %2142 = vmatpush1.bf16.xpose.msra.mxu0 0
        %2143 = vmatprep.mubr.bf16.mxu0 0
        %2144 = vmatmul.mubr.bf16.gmra.mrb[0].mxu0 %v2106
        %v2145 = vpop.f32.mrb[0].mxu0
        %v2146 = vadd.f32 0.0, %v2145
        %v2147 = vpop.f32.mrb[0].mxu0
        %v2148 = vpop.f32.mrb[0].mxu0
        %v2149 = vpop.f32.mrb[0].mxu0
        %2150 = vdwg.mxu0
        %v2152 = vsel %vm2104, %v2097, 0
        %v2155 = vsel %vm2104, %v2101, 0
        %2157 = vmatprep.subr.bf16.mxu0 0
        %2158 = vmatpush1.bf16.xpose.msra.mxu0 %v2155
        %2159 = vmatprep.subr.bf16.mxu0 0
        %2160 = vmatpush1.bf16.xpose.msra.mxu0 0
        %2161 = vmatprep.subr.bf16.mxu0 0
        %2162 = vmatpush1.bf16.xpose.msra.mxu0 0
        %2163 = vmatprep.subr.bf16.mxu0 0
        %2164 = vmatpush1.bf16.xpose.msra.mxu0 0
        %2165 = vmatprep.subr.bf16.mxu0 0
        %2166 = vmatpush1.bf16.xpose.msra.mxu0 0
        %2167 = vmatprep.subr.bf16.mxu0 0
        %2168 = vmatpush1.bf16.xpose.msra.mxu0 0
        %2169 = vmatprep.subr.bf16.mxu0 0
        %2170 = vmatpush1.bf16.xpose.msra.mxu0 0
        %2171 = vmatprep.subr.bf16.mxu0 0
        %2172 = vmatpush1.bf16.xpose.msra.mxu0 0
        %2173 = vmatprep.subr.bf16.mxu0 0
        %2174 = vmatpush1.bf16.xpose.msra.mxu0 0
        %2175 = vmatprep.subr.bf16.mxu0 0
        %2176 = vmatpush1.bf16.xpose.msra.mxu0 0
        %2177 = vmatprep.subr.bf16.mxu0 0
        %2178 = vmatpush1.bf16.xpose.msra.mxu0 0
        %2179 = vmatprep.subr.bf16.mxu0 0
        %2180 = vmatpush1.bf16.xpose.msra.mxu0 0
        %2181 = vmatprep.subr.bf16.mxu0 0
        %2182 = vmatpush1.bf16.xpose.msra.mxu0 0
        %2183 = vmatprep.subr.bf16.mxu0 0
        %2184 = vmatpush1.bf16.xpose.msra.mxu0 0
        %2185 = vmatprep.subr.bf16.mxu0 0
        %2186 = vmatpush1.bf16.xpose.msra.mxu0 0
        %2187 = vmatprep.subr.bf16.mxu0 0
        %2188 = vmatpush1.bf16.xpose.msra.mxu0 0
        %2189 = vmatprep.mubr.bf16.mxu0 0
        %2190 = vmatmul.mubr.bf16.gmra.mrb[0].mxu0 %v2152
        %v2191 = vpop.f32.mrb[0].mxu0
        %v2192 = vadd.f32 0.0, %v2191
        %v2193 = vpop.f32.mrb[0].mxu0
        %v2194 = vpop.f32.mrb[0].mxu0
        %v2195 = vpop.f32.mrb[0].mxu0
        %2196 = vdwg.mxu0
        %v2198 = vsel %vm2104, %v2098, 0
        %v2201 = vsel %vm2104, %v2102, 0
        %2203 = vmatprep.subr.bf16.mxu0 0
        %2204 = vmatpush1.bf16.xpose.msra.mxu0 %v2201
        %2205 = vmatprep.subr.bf16.mxu0 0
        %2206 = vmatpush1.bf16.xpose.msra.mxu0 0
        %2207 = vmatprep.subr.bf16.mxu0 0
        %2208 = vmatpush1.bf16.xpose.msra.mxu0 0
        %2209 = vmatprep.subr.bf16.mxu0 0
        %2210 = vmatpush1.bf16.xpose.msra.mxu0 0
        %2211 = vmatprep.subr.bf16.mxu0 0
        %2212 = vmatpush1.bf16.xpose.msra.mxu0 0
        %2213 = vmatprep.subr.bf16.mxu0 0
        %2214 = vmatpush1.bf16.xpose.msra.mxu0 0
        %2215 = vmatprep.subr.bf16.mxu0 0
        %2216 = vmatpush1.bf16.xpose.msra.mxu0 0
        %2217 = vmatprep.subr.bf16.mxu0 0
        %2218 = vmatpush1.bf16.xpose.msra.mxu0 0
        %2219 = vmatprep.subr.bf16.mxu0 0
        %2220 = vmatpush1.bf16.xpose.msra.mxu0 0
        %2221 = vmatprep.subr.bf16.mxu0 0
        %2222 = vmatpush1.bf16.xpose.msra.mxu0 0
        %2223 = vmatprep.subr.bf16.mxu0 0
        %2224 = vmatpush1.bf16.xpose.msra.mxu0 0
        %2225 = vmatprep.subr.bf16.mxu0 0
        %2226 = vmatpush1.bf16.xpose.msra.mxu0 0
        %2227 = vmatprep.subr.bf16.mxu0 0
        %2228 = vmatpush1.bf16.xpose.msra.mxu0 0
        %2229 = vmatprep.subr.bf16.mxu0 0
        %2230 = vmatpush1.bf16.xpose.msra.mxu0 0
        %2231 = vmatprep.subr.bf16.mxu0 0
        %2232 = vmatpush1.bf16.xpose.msra.mxu0 0
        %2233 = vmatprep.subr.bf16.mxu0 0
        %2234 = vmatpush1.bf16.xpose.msra.mxu0 0
        %2235 = vmatprep.mubr.bf16.mxu0 0
        %2236 = vmatmul.mubr.bf16.gmra.mrb[0].mxu0 %v2198
        %v2237 = vpop.f32.mrb[0].mxu0
        %v2238 = vadd.f32 0.0, %v2237
        %v2239 = vpop.f32.mrb[0].mxu0
        %v2240 = vpop.f32.mrb[0].mxu0
        %v2241 = vpop.f32.mrb[0].mxu0
        %2242 = vdwg.mxu0
        %v2244 = vsel %vm2104, %v2099, 0
        %v2247 = vsel %vm2104, %v2103, 0
        %2249 = vmatprep.subr.bf16.mxu0 0
        %2250 = vmatpush1.bf16.xpose.msra.mxu0 %v2247
        %2251 = vmatprep.subr.bf16.mxu0 0
        %2252 = vmatpush1.bf16.xpose.msra.mxu0 0
        %2253 = vmatprep.subr.bf16.mxu0 0
        %2254 = vmatpush1.bf16.xpose.msra.mxu0 0
        %2255 = vmatprep.subr.bf16.mxu0 0
        %2256 = vmatpush1.bf16.xpose.msra.mxu0 0
        %2257 = vmatprep.subr.bf16.mxu0 0
        %2258 = vmatpush1.bf16.xpose.msra.mxu0 0
        %2259 = vmatprep.subr.bf16.mxu0 0
        %2260 = vmatpush1.bf16.xpose.msra.mxu0 0
        %2261 = vmatprep.subr.bf16.mxu0 0
        %2262 = vmatpush1.bf16.xpose.msra.mxu0 0
        %2263 = vmatprep.subr.bf16.mxu0 0
        %2264 = vmatpush1.bf16.xpose.msra.mxu0 0
        %2265 = vmatprep.subr.bf16.mxu0 0
        %2266 = vmatpush1.bf16.xpose.msra.mxu0 0
        %2267 = vmatprep.subr.bf16.mxu0 0
        %2268 = vmatpush1.bf16.xpose.msra.mxu0 0
        %2269 = vmatprep.subr.bf16.mxu0 0
        %2270 = vmatpush1.bf16.xpose.msra.mxu0 0
        %2271 = vmatprep.subr.bf16.mxu0 0
        %2272 = vmatpush1.bf16.xpose.msra.mxu0 0
        %2273 = vmatprep.subr.bf16.mxu0 0
        %2274 = vmatpush1.bf16.xpose.msra.mxu0 0
        %2275 = vmatprep.subr.bf16.mxu0 0
        %2276 = vmatpush1.bf16.xpose.msra.mxu0 0
        %2277 = vmatprep.subr.bf16.mxu0 0
        %2278 = vmatpush1.bf16.xpose.msra.mxu0 0
        %2279 = vmatprep.subr.bf16.mxu0 0
        %2280 = vmatpush1.bf16.xpose.msra.mxu0 0
        %2281 = vmatprep.mubr.bf16.mxu0 0
        %2282 = vmatmul.mubr.bf16.gmra.mrb[0].mxu0 %v2244
        %v2283 = vpop.f32.mrb[0].mxu0
        %v2284 = vadd.f32 0.0, %v2283
        %v2285 = vpop.f32.mrb[0].mxu0
        %v2286 = vpop.f32.mrb[0].mxu0
        %v2287 = vpop.f32.mrb[0].mxu0
        %2288 = vdwg.mxu0
        %v2289 = vmul.f32 %v2146, 0.25
        %v2290 = vmul.f32 %v2192, 0.25
        %v2291 = vmul.f32 %v2238, 0.25
        %v2292 = vmul.f32 %v2284, 0.25
        %v2293 = vlaneseq
        %v2294 = vshrl.u32 %v2293, 7
        %v2295 = vlaneseq
        %v2296 = vand.u32 %v2295, 127
        %vm2297 = vcmp.ge.s32.totalorder %v2294, %v2296
        %v2298 = vsel %vm2297, 1, 0
        %vm2299 = vcmp.eq.s32.totalorder %v2298, 1
        %v2300 = vsel %vm2299, %v2289, -3.4028235e+38
        %v2301 = vsel %vm2299, %v2290, -3.4028235e+38
        %v2302 = vsel %vm2299, %v2291, -3.4028235e+38
        %v2303 = vsel %vm2299, %v2292, -3.4028235e+38
        %vm2304 = vcmask 64512
        %v2305 = vsel %vm2304, %v2300, -inf
        %2306 = vmax.xlane.f32.xlu0 %v2305
        %v2307 = vpop.xlane.xlu0 %2306
        %v2308 = vsel %vm2304, %v2301, -inf
        %2309 = vmax.xlane.f32.xlu0 %v2308
        %v2310 = vpop.xlane.xlu0 %2309
        %v2311 = vsel %vm2304, %v2302, -inf
        %2312 = vmax.xlane.f32.xlu0 %v2311
        %v2313 = vpop.xlane.xlu0 %2312
        %v2314 = vsel %vm2304, %v2303, -inf
        %2315 = vmax.xlane.f32.xlu0 %v2314
        %v2316 = vpop.xlane.xlu0 %2315
        %v2317 = vsub.f32 %v2300, %v2307
        %v2318 = vsub.f32 %v2301, %v2310
        %v2319 = vsub.f32 %v2302, %v2313
        %v2320 = vsub.f32 %v2303, %v2316
        %v2321 = vmul.f32 %v2317, 1.442695
        %v2322 = vpow.pop %v2321
        %v2323 = vmul.f32 %v2318, 1.442695
        %v2324 = vpow.pop %v2323
        %v2325 = vmul.f32 %v2319, 1.442695
        %v2326 = vpow.pop %v2325
        %v2327 = vmul.f32 %v2320, 1.442695
        %v2328 = vpow.pop %v2327
        %v2329 = vsel %vm2304, %v2322, 0.0
        %2330 = vadd.xlane.f32.xlu0 %v2329
        %v2331 = vpop.xlane.xlu0 %2330
        %v2332 = vsel %vm2304, %v2324, 0.0
        %2333 = vadd.xlane.f32.xlu0 %v2332
        %v2334 = vpop.xlane.xlu0 %2333
        %v2335 = vsel %vm2304, %v2326, 0.0
        %2336 = vadd.xlane.f32.xlu0 %v2335
        %v2337 = vpop.xlane.xlu0 %2336
        %v2338 = vsel %vm2304, %v2328, 0.0
        %2339 = vadd.xlane.f32.xlu0 %v2338
        %v2340 = vpop.xlane.xlu0 %2339
        %v2341 = vrcp.pop %v2331
        %v2342 = vmul.f32 %v2322, %v2341
        %v2343 = vrcp.pop %v2334
        %v2344 = vmul.f32 %v2324, %v2343
        %v2345 = vrcp.pop %v2337
        %v2346 = vmul.f32 %v2326, %v2345
        %v2347 = vrcp.pop %v2340
        %v2348 = vmul.f32 %v2328, %v2347
        %v2349 = vpack.c.bf16 %v2342, %v2342
        %v2350 = vpack.c.bf16 %v2344, %v2344
        %v2351 = vpack.c.bf16 %v2346, %v2346
        %v2352 = vpack.c.bf16 %v2348, %v2348
        %v2353 = vpack.c.bf16 %v2044, %v2044
        %v2354 = vpack.c.bf16 %v2045, %v2045
        %v2355 = vpack.c.bf16 %v2094, %v2094
        %v2356 = vpack.c.bf16 %v2095, %v2095
        %v2358 = vsel %vm2304, %v2349, 0
        %vm2360 = vcmask 1043456
        %v2362 = vsel %vm2360, %v2353, 0
        %2364 = vmatprep.subr.bf16.mxu0 0
        %2365 = vmatpush1.bf16.msra.mxu0 %v2362
        %2366 = vmatprep.subr.bf16.mxu0 0
        %2367 = vmatpush1.bf16.msra.mxu0 0
        %2368 = vmatprep.subr.bf16.mxu0 0
        %2369 = vmatpush1.bf16.msra.mxu0 0
        %2370 = vmatprep.subr.bf16.mxu0 0
        %2371 = vmatpush1.bf16.msra.mxu0 0
        %2372 = vmatprep.subr.bf16.mxu0 0
        %2373 = vmatpush1.bf16.msra.mxu0 0
        %2374 = vmatprep.subr.bf16.mxu0 0
        %2375 = vmatpush1.bf16.msra.mxu0 0
        %2376 = vmatprep.subr.bf16.mxu0 0
        %2377 = vmatpush1.bf16.msra.mxu0 0
        %2378 = vmatprep.subr.bf16.mxu0 0
        %2379 = vmatpush1.bf16.msra.mxu0 0
        %2380 = vmatprep.subr.bf16.mxu0 0
        %2381 = vmatpush1.bf16.msra.mxu0 0
        %2382 = vmatprep.subr.bf16.mxu0 0
        %2383 = vmatpush1.bf16.msra.mxu0 0
        %2384 = vmatprep.subr.bf16.mxu0 0
        %2385 = vmatpush1.bf16.msra.mxu0 0
        %2386 = vmatprep.subr.bf16.mxu0 0
        %2387 = vmatpush1.bf16.msra.mxu0 0
        %2388 = vmatprep.subr.bf16.mxu0 0
        %2389 = vmatpush1.bf16.msra.mxu0 0
        %2390 = vmatprep.subr.bf16.mxu0 0
        %2391 = vmatpush1.bf16.msra.mxu0 0
        %2392 = vmatprep.subr.bf16.mxu0 0
        %2393 = vmatpush1.bf16.msra.mxu0 0
        %2394 = vmatprep.subr.bf16.mxu0 0
        %2395 = vmatpush1.bf16.msra.mxu0 0
        %2396 = vmatprep.mubr.bf16.mxu0 0
        %2397 = vmatmul.mubr.bf16.gmra.mrb[0].mxu0 %v2358
        %v2398 = vpop.f32.mrb[0].mxu0
        %v2399 = vadd.f32 0.0, %v2398
        %v2400 = vpop.f32.mrb[0].mxu0
        %v2401 = vpop.f32.mrb[0].mxu0
        %v2402 = vpop.f32.mrb[0].mxu0
        %2403 = vdwg.mxu0
        %v2405 = vsel %vm2304, %v2350, 0
        %v2408 = vsel %vm2360, %v2354, 0
        %2410 = vmatprep.subr.bf16.mxu0 0
        %2411 = vmatpush1.bf16.msra.mxu0 %v2408
        %2412 = vmatprep.subr.bf16.mxu0 0
        %2413 = vmatpush1.bf16.msra.mxu0 0
        %2414 = vmatprep.subr.bf16.mxu0 0
        %2415 = vmatpush1.bf16.msra.mxu0 0
        %2416 = vmatprep.subr.bf16.mxu0 0
        %2417 = vmatpush1.bf16.msra.mxu0 0
        %2418 = vmatprep.subr.bf16.mxu0 0
        %2419 = vmatpush1.bf16.msra.mxu0 0
        %2420 = vmatprep.subr.bf16.mxu0 0
        %2421 = vmatpush1.bf16.msra.mxu0 0
        %2422 = vmatprep.subr.bf16.mxu0 0
        %2423 = vmatpush1.bf16.msra.mxu0 0
        %2424 = vmatprep.subr.bf16.mxu0 0
        %2425 = vmatpush1.bf16.msra.mxu0 0
        %2426 = vmatprep.subr.bf16.mxu0 0
        %2427 = vmatpush1.bf16.msra.mxu0 0
        %2428 = vmatprep.subr.bf16.mxu0 0
        %2429 = vmatpush1.bf16.msra.mxu0 0
        %2430 = vmatprep.subr.bf16.mxu0 0
        %2431 = vmatpush1.bf16.msra.mxu0 0
        %2432 = vmatprep.subr.bf16.mxu0 0
        %2433 = vmatpush1.bf16.msra.mxu0 0
        %2434 = vmatprep.subr.bf16.mxu0 0
        %2435 = vmatpush1.bf16.msra.mxu0 0
        %2436 = vmatprep.subr.bf16.mxu0 0
        %2437 = vmatpush1.bf16.msra.mxu0 0
        %2438 = vmatprep.subr.bf16.mxu0 0
        %2439 = vmatpush1.bf16.msra.mxu0 0
        %2440 = vmatprep.subr.bf16.mxu0 0
        %2441 = vmatpush1.bf16.msra.mxu0 0
        %2442 = vmatprep.mubr.bf16.mxu0 0
        %2443 = vmatmul.mubr.bf16.gmra.mrb[0].mxu0 %v2405
        %v2444 = vpop.f32.mrb[0].mxu0
        %v2445 = vadd.f32 0.0, %v2444
        %v2446 = vpop.f32.mrb[0].mxu0
        %v2447 = vpop.f32.mrb[0].mxu0
        %v2448 = vpop.f32.mrb[0].mxu0
        %2449 = vdwg.mxu0
        %v2451 = vsel %vm2304, %v2351, 0
        %v2454 = vsel %vm2360, %v2355, 0
        %2456 = vmatprep.subr.bf16.mxu0 0
        %2457 = vmatpush1.bf16.msra.mxu0 %v2454
        %2458 = vmatprep.subr.bf16.mxu0 0
        %2459 = vmatpush1.bf16.msra.mxu0 0
        %2460 = vmatprep.subr.bf16.mxu0 0
        %2461 = vmatpush1.bf16.msra.mxu0 0
        %2462 = vmatprep.subr.bf16.mxu0 0
        %2463 = vmatpush1.bf16.msra.mxu0 0
        %2464 = vmatprep.subr.bf16.mxu0 0
        %2465 = vmatpush1.bf16.msra.mxu0 0
        %2466 = vmatprep.subr.bf16.mxu0 0
        %2467 = vmatpush1.bf16.msra.mxu0 0
        %2468 = vmatprep.subr.bf16.mxu0 0
        %2469 = vmatpush1.bf16.msra.mxu0 0
        %2470 = vmatprep.subr.bf16.mxu0 0
        %2471 = vmatpush1.bf16.msra.mxu0 0
        %2472 = vmatprep.subr.bf16.mxu0 0
        %2473 = vmatpush1.bf16.msra.mxu0 0
        %2474 = vmatprep.subr.bf16.mxu0 0
        %2475 = vmatpush1.bf16.msra.mxu0 0
        %2476 = vmatprep.subr.bf16.mxu0 0
        %2477 = vmatpush1.bf16.msra.mxu0 0
        %2478 = vmatprep.subr.bf16.mxu0 0
        %2479 = vmatpush1.bf16.msra.mxu0 0
        %2480 = vmatprep.subr.bf16.mxu0 0
        %2481 = vmatpush1.bf16.msra.mxu0 0
        %2482 = vmatprep.subr.bf16.mxu0 0
        %2483 = vmatpush1.bf16.msra.mxu0 0
        %2484 = vmatprep.subr.bf16.mxu0 0
        %2485 = vmatpush1.bf16.msra.mxu0 0
        %2486 = vmatprep.subr.bf16.mxu0 0
        %2487 = vmatpush1.bf16.msra.mxu0 0
        %2488 = vmatprep.mubr.bf16.mxu0 0
        %2489 = vmatmul.mubr.bf16.gmra.mrb[0].mxu0 %v2451
        %v2490 = vpop.f32.mrb[0].mxu0
        %v2491 = vadd.f32 0.0, %v2490
        %v2492 = vpop.f32.mrb[0].mxu0
        %v2493 = vpop.f32.mrb[0].mxu0
        %v2494 = vpop.f32.mrb[0].mxu0
        %2495 = vdwg.mxu0
        %v2497 = vsel %vm2304, %v2352, 0
        %v2500 = vsel %vm2360, %v2356, 0
        %2502 = vmatprep.subr.bf16.mxu0 0
        %2503 = vmatpush1.bf16.msra.mxu0 %v2500
        %2504 = vmatprep.subr.bf16.mxu0 0
        %2505 = vmatpush1.bf16.msra.mxu0 0
        %2506 = vmatprep.subr.bf16.mxu0 0
        %2507 = vmatpush1.bf16.msra.mxu0 0
        %2508 = vmatprep.subr.bf16.mxu0 0
        %2509 = vmatpush1.bf16.msra.mxu0 0
        %2510 = vmatprep.subr.bf16.mxu0 0
        %2511 = vmatpush1.bf16.msra.mxu0 0
        %2512 = vmatprep.subr.bf16.mxu0 0
        %2513 = vmatpush1.bf16.msra.mxu0 0
        %2514 = vmatprep.subr.bf16.mxu0 0
        %2515 = vmatpush1.bf16.msra.mxu0 0
        %2516 = vmatprep.subr.bf16.mxu0 0
        %2517 = vmatpush1.bf16.msra.mxu0 0
        %2518 = vmatprep.subr.bf16.mxu0 0
        %2519 = vmatpush1.bf16.msra.mxu0 0
        %2520 = vmatprep.subr.bf16.mxu0 0
        %2521 = vmatpush1.bf16.msra.mxu0 0
        %2522 = vmatprep.subr.bf16.mxu0 0
        %2523 = vmatpush1.bf16.msra.mxu0 0
        %2524 = vmatprep.subr.bf16.mxu0 0
        %2525 = vmatpush1.bf16.msra.mxu0 0
        %2526 = vmatprep.subr.bf16.mxu0 0
        %2527 = vmatpush1.bf16.msra.mxu0 0
        %2528 = vmatprep.subr.bf16.mxu0 0
        %2529 = vmatpush1.bf16.msra.mxu0 0
        %2530 = vmatprep.subr.bf16.mxu0 0
        %2531 = vmatpush1.bf16.msra.mxu0 0
        %2532 = vmatprep.subr.bf16.mxu0 0
        %2533 = vmatpush1.bf16.msra.mxu0 0
        %2534 = vmatprep.mubr.bf16.mxu0 0
        %2535 = vmatmul.mubr.bf16.gmra.mrb[0].mxu0 %v2497
        %v2536 = vpop.f32.mrb[0].mxu0
        %v2537 = vadd.f32 0.0, %v2536
        %v2538 = vpop.f32.mrb[0].mxu0
        %v2539 = vpop.f32.mrb[0].mxu0
        %v2540 = vpop.f32.mrb[0].mxu0
        %2541 = vdwg.mxu0
        %v2542 = vcombine.high %v2399, 0.0
        %v2544 = vunpack.c.l.s4 1983009808
        %v2545 = vunpack.c.0.s8 %v2544
        %v2546 = vlaneseq
        %v2547 = vshrl.u32 %v2546, 7
        %v2548 = vsub.s32 %v2545, %v2547
        %v2549 = vrot.slane %v2399, %v2548
        %v2551 = vunpack.c.l.s4 1983009808
        %v2552 = vunpack.c.0.s8 %v2551
        %v2553 = vlaneseq
        %v2554 = vshrl.u32 %v2553, 7
        %v2555 = vsub.s32 %v2552, %v2554
        %v2556 = vrot.slane %v2542, %v2555
        %v2557 = vcombine.high %v2445, 0.0
        %v2559 = vunpack.c.l.s4 1983009808
        %v2560 = vunpack.c.0.s8 %v2559
        %v2561 = vlaneseq
        %v2562 = vshrl.u32 %v2561, 7
        %v2563 = vsub.s32 %v2560, %v2562
        %v2564 = vrot.slane %v2445, %v2563
        %v2566 = vunpack.c.l.s4 1983009808
        %v2567 = vunpack.c.0.s8 %v2566
        %v2568 = vlaneseq
        %v2569 = vshrl.u32 %v2568, 7
        %v2570 = vsub.s32 %v2567, %v2569
        %v2571 = vrot.slane %v2557, %v2570
        %v2572 = vcombine.low %v2549, %v2564
        %v2573 = vcombine.high %v2549, %v2564
        %v2575 = vunpack.c.l.s4 1934713408
        %v2576 = vunpack.c.0.s8 %v2575
        %v2577 = vlaneseq
        %v2578 = vshrl.u32 %v2577, 7
        %v2579 = vsub.s32 %v2576, %v2578
        %v2580 = vrot.slane %v2572, %v2579
        %v2582 = vunpack.c.l.s4 1934713408
        %v2583 = vunpack.c.0.s8 %v2582
        %v2584 = vlaneseq
        %v2585 = vshrl.u32 %v2584, 7
        %v2586 = vsub.s32 %v2583, %v2585
        %v2587 = vrot.slane %v2573, %v2586
        %v2588 = vcombine.low %v2556, %v2571
        %v2589 = vcombine.high %v2556, %v2571
        %v2591 = vunpack.c.l.s4 1934713408
        %v2592 = vunpack.c.0.s8 %v2591
        %v2593 = vlaneseq
        %v2594 = vshrl.u32 %v2593, 7
        %v2595 = vsub.s32 %v2592, %v2594
        %v2596 = vrot.slane %v2588, %v2595
        %v2598 = vunpack.c.l.s4 1934713408
        %v2599 = vunpack.c.0.s8 %v2598
        %v2600 = vlaneseq
        %v2601 = vshrl.u32 %v2600, 7
        %v2602 = vsub.s32 %v2599, %v2601
        %v2603 = vrot.slane %v2589, %v2602
        %v2604 = vcombine.high %v2580, 0.0
        %v2605 = vcombine.high %v2587, 0.0
        %v2606 = vcombine.high %v2596, 0.0
        %v2607 = vcombine.high %v2603, 0.0
        %v2608 = vcombine.high %v2491, 0.0
        %v2610 = vunpack.c.l.s4 1983009808
        %v2611 = vunpack.c.0.s8 %v2610
        %v2612 = vlaneseq
        %v2613 = vshrl.u32 %v2612, 7
        %v2614 = vsub.s32 %v2611, %v2613
        %v2615 = vrot.slane %v2491, %v2614
        %v2617 = vunpack.c.l.s4 1983009808
        %v2618 = vunpack.c.0.s8 %v2617
        %v2619 = vlaneseq
        %v2620 = vshrl.u32 %v2619, 7
        %v2621 = vsub.s32 %v2618, %v2620
        %v2622 = vrot.slane %v2608, %v2621
        %v2623 = vcombine.high %v2537, 0.0
        %v2625 = vunpack.c.l.s4 1983009808
        %v2626 = vunpack.c.0.s8 %v2625
        %v2627 = vlaneseq
        %v2628 = vshrl.u32 %v2627, 7
        %v2629 = vsub.s32 %v2626, %v2628
        %v2630 = vrot.slane %v2537, %v2629
        %v2632 = vunpack.c.l.s4 1983009808
        %v2633 = vunpack.c.0.s8 %v2632
        %v2634 = vlaneseq
        %v2635 = vshrl.u32 %v2634, 7
        %v2636 = vsub.s32 %v2633, %v2635
        %v2637 = vrot.slane %v2623, %v2636
        %v2638 = vcombine.low %v2615, %v2630
        %v2639 = vcombine.high %v2615, %v2630
        %v2641 = vunpack.c.l.s4 1934713408
        %v2642 = vunpack.c.0.s8 %v2641
        %v2643 = vlaneseq
        %v2644 = vshrl.u32 %v2643, 7
        %v2645 = vsub.s32 %v2642, %v2644
        %v2646 = vrot.slane %v2638, %v2645
        %v2648 = vunpack.c.l.s4 1934713408
        %v2649 = vunpack.c.0.s8 %v2648
        %v2650 = vlaneseq
        %v2651 = vshrl.u32 %v2650, 7
        %v2652 = vsub.s32 %v2649, %v2651
        %v2653 = vrot.slane %v2639, %v2652
        %v2654 = vcombine.low %v2622, %v2637
        %v2655 = vcombine.high %v2622, %v2637
        %v2657 = vunpack.c.l.s4 1934713408
        %v2658 = vunpack.c.0.s8 %v2657
        %v2659 = vlaneseq
        %v2660 = vshrl.u32 %v2659, 7
        %v2661 = vsub.s32 %v2658, %v2660
        %v2662 = vrot.slane %v2654, %v2661
        %v2664 = vunpack.c.l.s4 1934713408
        %v2665 = vunpack.c.0.s8 %v2664
        %v2666 = vlaneseq
        %v2667 = vshrl.u32 %v2666, 7
        %v2668 = vsub.s32 %v2665, %v2667
        %v2669 = vrot.slane %v2655, %v2668
        %v2670 = vcombine.high %v2646, 0.0
        %v2671 = vcombine.high %v2653, 0.0
        %v2672 = vcombine.high %v2662, 0.0
        %v2673 = vcombine.high %v2669, 0.0
        %v2674 = vcombine.low %v2580, %v2587
        %v2676 = vunpack.c.l.s4 1983009808
        %v2677 = vunpack.c.0.s8 %v2676
        %v2678 = vlaneseq
        %v2679 = vshrl.u32 %v2678, 7
        %v2680 = vsub.s32 %v2677, %v2679
        %v2681 = vrot.slane %v2674, %v2680
        %v2682 = vcombine.low %v2604, %v2605
        %v2684 = vunpack.c.l.s4 1983009808
        %v2685 = vunpack.c.0.s8 %v2684
        %v2686 = vlaneseq
        %v2687 = vshrl.u32 %v2686, 7
        %v2688 = vsub.s32 %v2685, %v2687
        %v2689 = vrot.slane %v2682, %v2688
        %v2690 = vcombine.low %v2596, %v2603
        %v2692 = vunpack.c.l.s4 1983009808
        %v2693 = vunpack.c.0.s8 %v2692
        %v2694 = vlaneseq
        %v2695 = vshrl.u32 %v2694, 7
        %v2696 = vsub.s32 %v2693, %v2695
        %v2697 = vrot.slane %v2690, %v2696
        %v2698 = vcombine.low %v2606, %v2607
        %v2700 = vunpack.c.l.s4 1983009808
        %v2701 = vunpack.c.0.s8 %v2700
        %v2702 = vlaneseq
        %v2703 = vshrl.u32 %v2702, 7
        %v2704 = vsub.s32 %v2701, %v2703
        %v2705 = vrot.slane %v2698, %v2704
        %v2706 = vcombine.low %v2681, %v2689
        %v2708 = vunpack.c.l.s4 1934713408
        %v2709 = vunpack.c.0.s8 %v2708
        %v2710 = vlaneseq
        %v2711 = vshrl.u32 %v2710, 7
        %v2712 = vsub.s32 %v2709, %v2711
        %v2713 = vrot.slane %v2706, %v2712
        %v2714 = vcombine.low %v2697, %v2705
        %v2716 = vunpack.c.l.s4 1934713408
        %v2717 = vunpack.c.0.s8 %v2716
        %v2718 = vlaneseq
        %v2719 = vshrl.u32 %v2718, 7
        %v2720 = vsub.s32 %v2717, %v2719
        %v2721 = vrot.slane %v2714, %v2720
        %v2722 = vcombine.low %v2713, %v2721
        %v2723 = vcombine.high %v2713, %v2721
        %v2724 = vcombine.low %v2646, %v2653
        %v2726 = vunpack.c.l.s4 1983009808
        %v2727 = vunpack.c.0.s8 %v2726
        %v2728 = vlaneseq
        %v2729 = vshrl.u32 %v2728, 7
        %v2730 = vsub.s32 %v2727, %v2729
        %v2731 = vrot.slane %v2724, %v2730
        %v2732 = vcombine.low %v2670, %v2671
        %v2734 = vunpack.c.l.s4 1983009808
        %v2735 = vunpack.c.0.s8 %v2734
        %v2736 = vlaneseq
        %v2737 = vshrl.u32 %v2736, 7
        %v2738 = vsub.s32 %v2735, %v2737
        %v2739 = vrot.slane %v2732, %v2738
        %v2740 = vcombine.low %v2662, %v2669
        %v2742 = vunpack.c.l.s4 1983009808
        %v2743 = vunpack.c.0.s8 %v2742
        %v2744 = vlaneseq
        %v2745 = vshrl.u32 %v2744, 7
        %v2746 = vsub.s32 %v2743, %v2745
        %v2747 = vrot.slane %v2740, %v2746
        %v2748 = vcombine.low %v2672, %v2673
        %v2750 = vunpack.c.l.s4 1983009808
        %v2751 = vunpack.c.0.s8 %v2750
        %v2752 = vlaneseq
        %v2753 = vshrl.u32 %v2752, 7
        %v2754 = vsub.s32 %v2751, %v2753
        %v2755 = vrot.slane %v2748, %v2754
        %v2756 = vcombine.low %v2731, %v2739
        %v2758 = vunpack.c.l.s4 1934713408
        %v2759 = vunpack.c.0.s8 %v2758
        %v2760 = vlaneseq
        %v2761 = vshrl.u32 %v2760, 7
        %v2762 = vsub.s32 %v2759, %v2761
        %v2763 = vrot.slane %v2756, %v2762
        %v2764 = vcombine.low %v2747, %v2755
        %v2766 = vunpack.c.l.s4 1934713408
        %v2767 = vunpack.c.0.s8 %v2766
        %v2768 = vlaneseq
        %v2769 = vshrl.u32 %v2768, 7
        %v2770 = vsub.s32 %v2767, %v2769
        %v2771 = vrot.slane %v2764, %v2770
        %v2772 = vcombine.low %v2763, %v2771
        %v2773 = vcombine.high %v2763, %v2771
        %2776 = vrot.lane.b32.xlu0 %v2723, 16
        %v2777 = vpop.permute.xlu0 %2776
        %2778 = vrot.lane.b32.xlu0 %v2773, 16
        %v2779 = vpop.permute.xlu0 %2778
        %v2782 = vsel %vm2104, %v2722, %v2777
        %v2783 = vsel %vm2104, %v2772, %v2779
        %v2784 = vld [vmem:[%s946] sm:$0xf]
        %v2785 = vld [vmem:[%s946 + $0x4] sm:$0xf]
        %v2786 = vld [vmem:[%s946 + $0x8] sm:$0xf]
        %v2787 = vld [vmem:[%s946 + $0xc] sm:$0xf]
        %v2788 = vpack.c.bf16 %v2783, %v2782
        %v2793 = vunpack.c.l.b16 %v2784
        %v2794 = vunpack.c.l.b16 %v2785
        %v2795 = vunpack.c.l.b16 %v2786
        %v2796 = vunpack.c.l.b16 %v2787
        %v2797 = vpack.c.b16 %v2794, %v2793
        %v2798 = vpack.c.b16 %v2796, %v2795
        %v2802 = vsel %vm1136, %v2788, 0
        %2804 = vmatprep.subr.bf16.mxu0 0
        %2805 = vmatpush1.bf16.msra.mxu0 %v2797
        %2806 = vmatprep.subr.bf16.mxu0 0
        %2807 = vmatpush1.bf16.msra.mxu0 %v2798
        %2808 = vmatprep.subr.bf16.mxu0 0
        %2809 = vmatpush1.bf16.msra.mxu0 0
        %2810 = vmatprep.subr.bf16.mxu0 0
        %2811 = vmatpush1.bf16.msra.mxu0 0
        %2812 = vmatprep.subr.bf16.mxu0 0
        %2813 = vmatpush1.bf16.msra.mxu0 0
        %2814 = vmatprep.subr.bf16.mxu0 0
        %2815 = vmatpush1.bf16.msra.mxu0 0
        %2816 = vmatprep.subr.bf16.mxu0 0
        %2817 = vmatpush1.bf16.msra.mxu0 0
        %2818 = vmatprep.subr.bf16.mxu0 0
        %2819 = vmatpush1.bf16.msra.mxu0 0
        %2820 = vmatprep.subr.bf16.mxu0 0
        %2821 = vmatpush1.bf16.msra.mxu0 0
        %2822 = vmatprep.subr.bf16.mxu0 0
        %2823 = vmatpush1.bf16.msra.mxu0 0
        %2824 = vmatprep.subr.bf16.mxu0 0
        %2825 = vmatpush1.bf16.msra.mxu0 0
        %2826 = vmatprep.subr.bf16.mxu0 0
        %2827 = vmatpush1.bf16.msra.mxu0 0
        %2828 = vmatprep.subr.bf16.mxu0 0
        %2829 = vmatpush1.bf16.msra.mxu0 0
        %2830 = vmatprep.subr.bf16.mxu0 0
        %2831 = vmatpush1.bf16.msra.mxu0 0
        %2832 = vmatprep.subr.bf16.mxu0 0
        %2833 = vmatpush1.bf16.msra.mxu0 0
        %2834 = vmatprep.subr.bf16.mxu0 0
        %2835 = vmatpush1.bf16.msra.mxu0 0
        %2836 = vmatprep.mubr.bf16.mxu0 0
        %2837 = vmatmul.mubr.bf16.gmra.mrb[0].mxu0 %v2802
        %v2838 = vpop.f32.mrb[0].mxu0
        %v2839 = vadd.f32 0.0, %v2838
        %v2840 = vpop.f32.mrb[0].mxu0
        %v2841 = vpop.f32.mrb[0].mxu0
        %v2842 = vadd.f32 0.0, %v2841
        %v2843 = vpop.f32.mrb[0].mxu0
        %2844 = vdwg.mxu0
        %v2845 = vadd.f32 %v1132, %v2839
        %v2846 = vadd.f32 %v1133, %v2842
        %v2847 = vld [vmem:[%s954] sm:$0x1]
        %v2849 = vlaneseq
        %v2850 = vshrl.u32 %v2849, 7
        %v2851 = vsub.s32 0, %v2850
        %v2852 = vrot.slane %v2847, %v2851
        %v2854 = vadd.f32 %v2845, %v2852
        %v2855 = vadd.f32 %v2846, %v2852
        %v2856 = vld [vmem:[%s962] sm:$0x1]
        %v2857 = vld [vmem:[%s970] sm:$0x1]
        %v2858 = vsel %vm1136, %v2854, 0.0
        %2859 = vadd.xlane.f32.xlu0 %v2858
        %v2860 = vpop.xlane.xlu0 %2859
        %v2861 = vsel %vm1136, %v2855, 0.0
        %2862 = vadd.xlane.f32.xlu0 %v2861
        %v2863 = vpop.xlane.xlu0 %2862
        %v2864 = vmul.f32 %v2860, %v1143
        %v2865 = vmul.f32 %v2863, %v1143
        %v2866 = vsub.f32 %v2854, %v2864
        %v2867 = vsub.f32 %v2855, %v2865
        %v2868 = vmul.f32 %v2866, %v2866
        %v2869 = vmul.f32 %v2867, %v2867
        %v2870 = vsel %vm1136, %v2868, 0.0
        %2871 = vadd.xlane.f32.xlu0 %v2870
        %v2872 = vpop.xlane.xlu0 %2871
        %v2873 = vsel %vm1136, %v2869, 0.0
        %2874 = vadd.xlane.f32.xlu0 %v2873
        %v2875 = vpop.xlane.xlu0 %2874
        %v2876 = vmul.f32 %v2872, %v1143
        %v2877 = vmul.f32 %v2875, %v1143
        %v2878 = vadd.f32 %v2876, 1e-05
        %v2879 = vadd.f32 %v2877, 1e-05
        %v2880 = vrsqrt.pop %v2878
        %v2881 = vrsqrt.pop %v2879
        %v2882 = vmul.f32 %v2866, %v2880
        %v2883 = vmul.f32 %v2867, %v2881
        %v2885 = vlaneseq
        %v2886 = vshrl.u32 %v2885, 7
        %v2887 = vsub.s32 0, %v2886
        %v2888 = vrot.slane %v2856, %v2887
        %v2890 = vmul.f32 %v2882, %v2888
        %v2891 = vmul.f32 %v2883, %v2888
        %v2893 = vlaneseq
        %v2894 = vshrl.u32 %v2893, 7
        %v2895 = vsub.s32 0, %v2894
        %v2896 = vrot.slane %v2857, %v2895
        %v2898 = vadd.f32 %v2890, %v2896
        %v2899 = vadd.f32 %v2891, %v2896
        %v2900 = vld [vmem:[%s979] sm:$0xf]
        %v2901 = vld [vmem:[%s979 + $0x4] sm:$0xf]
        %v2902 = vld [vmem:[%s979 + $0x8] sm:$0xf]
        %v2903 = vld [vmem:[%s979 + $0xc] sm:$0xf]
        %v2904 = vpack.c.bf16 %v2899, %v2898
        %v2905 = vld [vmem:[%s987] sm:$0x1]
        %v2907 = vlaneseq
        %v2908 = vshrl.u32 %v2907, 7
        %v2909 = vsub.s32 0, %v2908
        %v2910 = vrot.slane %v2905, %v2909
        %v2916 = vunpack.c.l.b16 %v2900
        %v2917 = vunpack.c.l.b16 %v2901
        %v2918 = vunpack.c.l.b16 %v2902
        %v2919 = vunpack.c.l.b16 %v2903
        %v2920 = vpack.c.b16 %v2917, %v2916
        %v2921 = vpack.c.b16 %v2919, %v2918
        %v2925 = vsel %vm1136, %v2904, 0
        %2927 = vmatprep.subr.bf16.mxu0 0
        %2928 = vmatpush1.bf16.msra.mxu0 %v2920
        %2929 = vmatprep.subr.bf16.mxu0 0
        %2930 = vmatpush1.bf16.msra.mxu0 %v2921
        %2931 = vmatprep.subr.bf16.mxu0 0
        %2932 = vmatpush1.bf16.msra.mxu0 0
        %2933 = vmatprep.subr.bf16.mxu0 0
        %2934 = vmatpush1.bf16.msra.mxu0 0
        %2935 = vmatprep.subr.bf16.mxu0 0
        %2936 = vmatpush1.bf16.msra.mxu0 0
        %2937 = vmatprep.subr.bf16.mxu0 0
        %2938 = vmatpush1.bf16.msra.mxu0 0
        %2939 = vmatprep.subr.bf16.mxu0 0
        %2940 = vmatpush1.bf16.msra.mxu0 0
        %2941 = vmatprep.subr.bf16.mxu0 0
        %2942 = vmatpush1.bf16.msra.mxu0 0
        %2943 = vmatprep.subr.bf16.mxu0 0
        %2944 = vmatpush1.bf16.msra.mxu0 0
        %2945 = vmatprep.subr.bf16.mxu0 0
        %2946 = vmatpush1.bf16.msra.mxu0 0
        %2947 = vmatprep.subr.bf16.mxu0 0
        %2948 = vmatpush1.bf16.msra.mxu0 0
        %2949 = vmatprep.subr.bf16.mxu0 0
        %2950 = vmatpush1.bf16.msra.mxu0 0
        %2951 = vmatprep.subr.bf16.mxu0 0
        %2952 = vmatpush1.bf16.msra.mxu0 0
        %2953 = vmatprep.subr.bf16.mxu0 0
        %2954 = vmatpush1.bf16.msra.mxu0 0
        %2955 = vmatprep.subr.bf16.mxu0 0
        %2956 = vmatpush1.bf16.msra.mxu0 0
        %2957 = vmatprep.subr.bf16.mxu0 0
        %2958 = vmatpush1.bf16.msra.mxu0 0
        %2959 = vmatprep.mubr.bf16.mxu0 0
        %2960 = vmatmul.mubr.bf16.gmra.mrb[0].mxu0 %v2925
        %v2961 = vpop.f32.mrb[0].mxu0
        %v2962 = vadd.f32 %v2910, %v2961
        %v2963 = vpop.f32.mrb[0].mxu0
        %v2964 = vpop.f32.mrb[0].mxu0
        %v2965 = vadd.f32 %v2910, %v2964
        %v2966 = vpop.f32.mrb[0].mxu0
        %2967 = vdwg.mxu0
        %v2968 = vmax.f32 %v2962, 0.0
        %v2969 = vmax.f32 %v2965, 0.0
        %v2970 = vld [vmem:[%s996] sm:$0xf]
        %v2971 = vld [vmem:[%s996 + $0x4] sm:$0xf]
        %v2972 = vld [vmem:[%s996 + $0x8] sm:$0xf]
        %v2973 = vld [vmem:[%s996 + $0xc] sm:$0xf]
        %v2974 = vld [vmem:[%s996 + $0x10] sm:$0xf]
        %v2975 = vld [vmem:[%s996 + $0x14] sm:$0xf]
        %v2976 = vld [vmem:[%s996 + $0x18] sm:$0xf]
        %v2977 = vld [vmem:[%s996 + $0x1c] sm:$0xf]
        %v2978 = vpack.c.bf16 %v2969, %v2968
        %v2987 = vunpack.c.l.b16 %v2970
        %v2988 = vunpack.c.l.b16 %v2971
        %v2989 = vunpack.c.l.b16 %v2972
        %v2990 = vunpack.c.l.b16 %v2973
        %v2991 = vunpack.c.l.b16 %v2974
        %v2992 = vunpack.c.l.b16 %v2975
        %v2993 = vunpack.c.l.b16 %v2976
        %v2994 = vunpack.c.l.b16 %v2977
        %v2995 = vpack.c.b16 %v2988, %v2987
        %v2996 = vpack.c.b16 %v2990, %v2989
        %v2997 = vpack.c.b16 %v2992, %v2991
        %v2998 = vpack.c.b16 %v2994, %v2993
        %vm3003 = vcmask 523264
        %v3005 = vsel %vm3003, %v2978, 0
        %3007 = vmatprep.subr.bf16.mxu0 0
        %3008 = vmatpush1.bf16.msra.mxu0 %v2995
        %3009 = vmatprep.subr.bf16.mxu0 0
        %3010 = vmatpush1.bf16.msra.mxu0 %v2996
        %3011 = vmatprep.subr.bf16.mxu0 0
        %3012 = vmatpush1.bf16.msra.mxu0 %v2997
        %3013 = vmatprep.subr.bf16.mxu0 0
        %3014 = vmatpush1.bf16.msra.mxu0 %v2998
        %3015 = vmatprep.subr.bf16.mxu0 0
        %3016 = vmatpush1.bf16.msra.mxu0 0
        %3017 = vmatprep.subr.bf16.mxu0 0
        %3018 = vmatpush1.bf16.msra.mxu0 0
        %3019 = vmatprep.subr.bf16.mxu0 0
        %3020 = vmatpush1.bf16.msra.mxu0 0
        %3021 = vmatprep.subr.bf16.mxu0 0
        %3022 = vmatpush1.bf16.msra.mxu0 0
        %3023 = vmatprep.subr.bf16.mxu0 0
        %3024 = vmatpush1.bf16.msra.mxu0 0
        %3025 = vmatprep.subr.bf16.mxu0 0
        %3026 = vmatpush1.bf16.msra.mxu0 0
        %3027 = vmatprep.subr.bf16.mxu0 0
        %3028 = vmatpush1.bf16.msra.mxu0 0
        %3029 = vmatprep.subr.bf16.mxu0 0
        %3030 = vmatpush1.bf16.msra.mxu0 0
        %3031 = vmatprep.subr.bf16.mxu0 0
        %3032 = vmatpush1.bf16.msra.mxu0 0
        %3033 = vmatprep.subr.bf16.mxu0 0
        %3034 = vmatpush1.bf16.msra.mxu0 0
        %3035 = vmatprep.subr.bf16.mxu0 0
        %3036 = vmatpush1.bf16.msra.mxu0 0
        %3037 = vmatprep.subr.bf16.mxu0 0
        %3038 = vmatpush1.bf16.msra.mxu0 0
        %3039 = vmatprep.mubr.bf16.mxu0 0
        %3040 = vmatmul.mubr.bf16.gmra.mrb[0].mxu0 %v3005
        %v3041 = vpop.f32.mrb[0].mxu0
        %v3042 = vadd.f32 0.0, %v3041
        %v3043 = vpop.f32.mrb[0].mxu0
        %v3044 = vpop.f32.mrb[0].mxu0
        %v3045 = vadd.f32 0.0, %v3044
        %v3046 = vpop.f32.mrb[0].mxu0
        %3047 = vdwg.mxu0
        %v3048 = vadd.f32 %v2854, %v3042
        %v3049 = vadd.f32 %v2855, %v3045
        %v3050 = vld [vmem:[%s1004] sm:$0x1]
        %v3052 = vlaneseq
        %v3053 = vshrl.u32 %v3052, 7
        %v3054 = vsub.s32 0, %v3053
        %v3055 = vrot.slane %v3050, %v3054
        %v3057 = vadd.f32 %v3048, %v3055
        %v3058 = vadd.f32 %v3049, %v3055
        %3059 = vst.msk [vmem:[#allocation2] sm:$0xff] %vm1136, %v3057
        %3060 = vst.msk [vmem:[#allocation2 + $0x8] sm:$0xff] %vm1136, %v3058
        %3061 = vst.msk [vmem:[%s1119] sm:$0xff] %vm1136, %v3057
        %3062 = vst.msk [vmem:[%s1119 + $0x8] sm:$0xff] %vm1136, %v3058
        %s3063 = sand.u32 %s520, 1
        %s3064 = scalar_lea.sflag [#allocation5], %s3063
        %s3065 = sand.u32 %s520, 1
        %s3066 = smul.addr %s3065, 16
        %s3067 = scalar_lea.vmem [#allocation30], %s3066
        // Predicated region
        $region161: #{tpu_custom_call.1} parent=87 // pred_check
          %p3068 = pneg %p530
        $region162: #{tpu_custom_call.1} parent=87 // pred_check_branch
          %3070 = sbr.rel (%p3068) target = $region164
        $region163: #{tpu_custom_call.1} parent=87 // pred_region
          %s3071 = smul.u32 2, %s60
          %s3073 = ssub.s32 256, 256
          %3074 = vsyncadd %s3064, %s3073
          %s3075 = smul.addr %s61, 2
          %s3076 = sadd.s32 %s3071, %s3075
          %s3077 = smul.addr %s3076, 128
          %s3078 = scalar_lea.hbm %s17, %s3077
          %s3079 = sshll.u32 %s3067, 4
          %s3080 = int_to_ptr.vmem [resolvable:$true] %s3079
          %3085 = dma.vmem_to_hbm [thread:$0]  %s3080, 256, %s3078, %s3064, 128, 128, 8
        $region164: #{tpu_custom_call.1} parent=87 // pred_fallthru
          _
      $region88: #{tpu_custom_call.1} parent=5 // pred_fallthru
        _
      %p3086 = scmp.le.s32.totalorder 2, %s51
      // Predicated region
      $region165: #{tpu_custom_call.1} parent=5 // pred_check
        %p3087 = pneg %p3086
      $region166: #{tpu_custom_call.1} parent=5 // pred_check_branch
        %3089 = sbr.rel (%p3087) target = $region168
      $region167: #{tpu_custom_call.1} parent=5 // pred_region
        %s3090 = ssub.s32 %s51, 2
        // Predicated region
        $region169: #{tpu_custom_call.1} parent=167 // pred_check
          %p3091 = pneg %p536
        $region170: #{tpu_custom_call.1} parent=167 // pred_check_branch
          %3093 = sbr.rel (%p3091) target = $region172
        $region171: #{tpu_custom_call.1} parent=167 // pred_region
          %s3094 = sand.u32 %s521, 1
          %s3095 = scalar_lea.sflag [#allocation5], %s3094
          %s3096 = sand.u32 %s521, 1
          %s3097 = smul.addr %s3096, 16
          %s3098 = scalar_lea.vmem [#allocation30], %s3097
          %3099 = dma.done %s3095, 256
        $region172: #{tpu_custom_call.1} parent=167 // pred_fallthru
          _
      $region168: #{tpu_custom_call.1} parent=5 // pred_fallthru
        _
    $region6: #{tpu_custom_call.1} parent=1 // loop_footer
      %s55 = sadd.s32 1, %s51
    $region7: #{tpu_custom_call.1} parent=1 // loop_footer_branch
      %50 = sbr.rel target = $region3
    $region8: #{tpu_custom_call.1} parent=1 // loop_exit
      _
    %3100 = vsyncpa [#allocation4], 1
    %s3101 = scalar_lea.sflag [#allocation4], 1
    %3102 = vsyncpa %s3101, 1
    %3103 = vsyncpa [#allocation7], 1
    %s3104 = scalar_lea.sflag [#allocation7], 1
    %3105 = vsyncpa %s3104, 1
    %3106 = vsyncpa [#allocation10], 1
    %s3107 = scalar_lea.sflag [#allocation10], 1
    %3108 = vsyncpa %s3107, 1
    %3109 = vsyncpa [#allocation13], 1
    %s3110 = scalar_lea.sflag [#allocation13], 1
    %3111 = vsyncpa %s3110, 1
    %3112 = vsyncpa [#allocation16], 1
    %s3113 = scalar_lea.sflag [#allocation16], 1
    %3114 = vsyncpa %s3113, 1
    %3115 = vsyncpa [#allocation19], 1
    %s3116 = scalar_lea.sflag [#allocation19], 1
    %3117 = vsyncpa %s3116, 1
    %3118 = vsyncpa [#allocation22], 1
    %s3119 = scalar_lea.sflag [#allocation22], 1
    %3120 = vsyncpa %s3119, 1
    %3121 = vsyncpa [#allocation25], 1
    %s3122 = scalar_lea.sflag [#allocation25], 1
    %3123 = vsyncpa %s3122, 1
    %3124 = vsyncpa [#allocation28], 1
    %s3125 = scalar_lea.sflag [#allocation28], 1
    %3126 = vsyncpa %s3125, 1
    %3127 = vsyncpa [#allocation5], 1
    %s3128 = scalar_lea.sflag [#allocation5], 1
    %3129 = vsyncpa %s3128, 1

</llo_original>
